<compile_context>
chip_gen: v6e
topology: v6e:2x2x1
jax: 0.10.0
libtpu: 0.0.40
codegen_flags: <defaults>
</compile_context>

<pallas_src>
import jax
import jax.numpy as jnp
from jax import lax
from jax.experimental import pallas as pl
from jax.experimental.pallas import tpu as pltpu

MAX_LEN = 50          # self.max_len
EPS_COS = 1e-8        # nn.CosineSimilarity eps
EPS_BN = 1e-5         # nn.BatchNorm1d eps
MATMUL_DTYPE = jnp.bfloat16   # MXU operand dtype (f32 accumulation everywhere)


# --------------------------------------------------------------------------- #
# LSTM kernel: in-kernel fused input projection, fused [i|f|o|g] gates,        #
# hoisted length mask, length-predicated state update.                         #
# --------------------------------------------------------------------------- #
def _make_lstm_kernel(hidden_dim, masked, seq_len):
    H = hidden_dim
    G = 4 * H
    T = seq_len
    unroll = T if T <= 32 else 8   # bounded unroll: LLO visibility w/o code blowup

    def kernel(*refs):
        if masked:
            x_ref, len_ref, wih_ref, whh_ref, b_ref, out_ref, xp_ref = refs
        else:
            x_ref, wih_ref, whh_ref, b_ref, out_ref, xp_ref = refs
        _, N, E = x_ref.shape

        # ---- input projection fused into the kernel: ONE big MXU matmul ----
        # (T*N, E) @ (E, 4H) -> f32, bias folded in once, stored to VMEM scratch.
        x2d = x_ref[...].reshape(T * N, E).astype(wih_ref.dtype)
        xp = jnp.dot(x2d, wih_ref[...], preferred_element_type=jnp.float32)
        xp = xp + b_ref[...]
        xp_ref[...] = xp.reshape(T, N, G)

        whh = whh_ref[...]                              # (H, 4H) resident, bf16
        if masked:
            # hoisted: single lane-dense int tile, compared per step
            lens_b = jnp.broadcast_to(len_ref[...], (N, H))

        def step(t, carry):
            h, c = carry
            gates = xp_ref[t] + jnp.dot(h.astype(whh.dtype), whh,
                                        preferred_element_type=jnp.float32)
            # fused gate layout [i | f | o | g]: one sigmoid over 3H lanes,
            # one tanh over the last H lanes.
            sig = jax.nn.sigmoid(gates[:, :3 * H])
            g = jnp.tanh(gates[:, 3 * H:])
            i = sig[:, 0 * H:1 * H]
            f = sig[:, 1 * H:2 * H]
            o = sig[:, 2 * H:3 * H]
            c_new = f * c + i * g
            h_new = o * jnp.tanh(c_new)
            if masked:
                # state frozen after the sequence ends -> packed-sequence final ht
                upd = lens_b > t
                h_new = jnp.where(upd, h_new, h)
                c_new = jnp.where(upd, c_new, c)
            return (h_new, c_new)

        h0 = jnp.zeros((N, H), jnp.float32)
        c0 = jnp.zeros((N, H), jnp.float32)
        h_fin, _ = lax.fori_loop(0, T, step, (h0, c0), unroll=unroll)
        out_ref[...] = h_fin

    return kernel


def _pick_block_n(N, target=128):
    """Batch block: sublane-aligned (x8), capped at `target`, split into >=2
    grid programs whenever N allows (v7x dual TensorCore).  Returns
    (block_n, padded_N) with padded_N % block_n == 0."""
    n_pad8 = ((N + 7) // 8) * 8
    if n_pad8 <= 8:
        return 8, 8
    half = (((n_pad8 + 1) // 2) + 7) // 8 * 8     # ceil(N/2), 8-aligned
    bn = max(8, min(target, half))
    n_prog = -(-n_pad8 // bn)
    return bn, n_prog * bn


def _lstm_compiler_params(T, block_n, E, H):
    G = 4 * H
    est = (2 * T * block_n * E * 4        # x block, double-buffered, f32
           + T * block_n * G * 4          # x-projection scratch, f32
           + 2 * (E + H) * G * 2          # bf16 weights (double-buffered)
           + 2 * G * 4                    # bias
           + 4 * block_n * G * 4          # per-step working-set headroom
           + 2 * block_n * H * 4)         # output block, double-buffered
    kwargs = {"dimension_semantics": ("parallel",)}
    if est > (24 << 20):
        # raise scoped VMEM only when the estimate exceeds the default; cap
        # safely below v7x's 64 MiB physical VMEM.
        kwargs["vmem_limit_bytes"] = int(min(est + (8 << 20), 60 << 20))
    return pltpu.CompilerParams(**kwargs)


def run_lstm(x_tNE, wih_f, whh_f, b_f, lengths=None):
    """x_tNE: (T, N, E) f32; fused weights wih_f: (E, 4H), whh_f: (H, 4H) in
    [i|f|o|g] column order, b_f: (1, 4H); lengths: (N,) int32 or None (None ==
    all full length).  Returns final hidden state (N, H) f32."""
    T, N, E = x_tNE.shape
    G = whh_f.shape[-1]
    H = G // 4

    block_n, N_pad = _pick_block_n(N)
    if N_pad != N:
        # zero-pad the batch so it tiles evenly; padded rows are sliced off.
        x_tNE = jnp.pad(x_tNE, ((0, 0), (0, N_pad - N), (0, 0)))
        if lengths is not None:
            lengths = jnp.pad(lengths, ((0, N_pad - N),))   # len 0 -> h stays 0
    grid = (N_pad // block_n,)
    masked = lengths is not None

    in_specs = [pl.BlockSpec((T, block_n, E), lambda i: (0, i, 0))]
    args = [x_tNE]
    if masked:
        in_specs.append(pl.BlockSpec((block_n, 1), lambda i: (i, 0)))
        args.append(lengths.reshape(N_pad, 1).astype(jnp.int32))
    in_specs += [
        pl.BlockSpec((E, G), lambda i: (0, 0)),   # W_ih resident across grid
        pl.BlockSpec((H, G), lambda i: (0, 0)),   # W_hh resident across grid
        pl.BlockSpec((1, G), lambda i: (0, 0)),   # bias resident
    ]
    args += [wih_f.astype(MATMUL_DTYPE), whh_f.astype(MATMUL_DTYPE), b_f]

    out = pl.pallas_call(
        _make_lstm_kernel(H, masked, T),
        out_shape=jax.ShapeDtypeStruct((N_pad, H), jnp.float32),
        grid=grid,
        in_specs=in_specs,
        out_specs=pl.BlockSpec((block_n, H), lambda i: (i, 0)),
        scratch_shapes=[pltpu.VMEM((T, block_n, G), jnp.float32)],
        compiler_params=_lstm_compiler_params(T, block_n, E, H),
    )(*args)
    return out[:N]


# --------------------------------------------------------------------------- #
# Fused tail kernel: adjacent cosine + Linear -> ReLU -> (folded BN) -> Linear #
# -> softmax(dim=0).  Grid axis of size 2 = {sentence path, paragraph path}.   #
# --------------------------------------------------------------------------- #
def tail_kernel(v_ref, w1_ref, b1_ref, w2_ref, b2_ref, out_ref):
    # v_ref: (D, MAX_LEN+1, H) vectors, zero-padded past the true count, so the
    # padded adjacent pairs yield exactly 0 cosine (0 / max(0*||v||, eps)).
    v = v_ref[...]
    a = v[:, :MAX_LEN, :]
    b = v[:, 1:, :]
    dots = jnp.sum(a * b, axis=-1)                           # (D, MAX_LEN)
    na = jnp.sqrt(jnp.sum(a * a, axis=-1))
    nb = jnp.sqrt(jnp.sum(b * b, axis=-1))
    # NOTE: documented nn.CosineSimilarity formula max(||a||*||b||, eps);
    # differs from per-norm clamping only for pathological near-zero vectors.
    cos = dots / jnp.maximum(na * nb, EPS_COS)               # (D, MAX_LEN)

    # hidden_layer -> ReLU
    h = jnp.dot(cos, w1_ref[...], preferred_element_type=jnp.float32) + b1_ref[...]
    h = jnp.maximum(h, 0.0)
    # BatchNorm1d(eval) already folded into w2/b2; dropout(eval) == identity.
    logits = jnp.dot(h, w2_ref[...], preferred_element_type=jnp.float32) + b2_ref[...]
    # softmax over dim=0 (over the D documents of this path).  Correct because
    # the full D fits in one block (D is never tiled along the grid).
    m = jnp.max(logits, axis=0, keepdims=True)
    e = jnp.exp(logits - m)
    out_ref[...] = e / jnp.sum(e, axis=0, keepdims=True)


def run_tail(vec_stack, w1, b1, w2_folded, b2_folded):
    """vec_stack: (2, D, MAX_LEN+1, H) -> (2, D, num_labels) softmaxed preds."""
    _, D, M1, H = vec_stack.shape
    HID = w1.shape[-1]
    NL = w2_folded.shape[-1]
    return pl.pallas_call(
        tail_kernel,
        out_shape=jax.ShapeDtypeStruct((2, D, NL), jnp.float32),
        grid=(2,),
        in_specs=[
            pl.BlockSpec((None, D, M1, H), lambda p: (p, 0, 0, 0)),
            pl.BlockSpec((MAX_LEN, HID), lambda p: (0, 0)),
            pl.BlockSpec((1, HID), lambda p: (0, 0)),
            pl.BlockSpec((HID, NL), lambda p: (0, 0)),
            pl.BlockSpec((1, NL), lambda p: (0, 0)),
        ],
        out_specs=pl.BlockSpec((None, D, NL), lambda p: (p, 0, 0)),
        compiler_params=pltpu.CompilerParams(dimension_semantics=("parallel",)),
    )(vec_stack, w1, b1, w2_folded, b2_folded)


# --------------------------------------------------------------------------- #
# Parameter construction (deterministic, synthetic), fused-gate layout          #
# --------------------------------------------------------------------------- #
def xavier(key, fan_in, fan_out):
    lim = (6.0 / (fan_in + fan_out)) ** 0.5
    return jax.random.uniform(key, (fan_in, fan_out), jnp.float32, -lim, lim)


def init_params(key, vocab, embedding_dim, lstm_dim, hidden_dim, num_labels):
    ks = jax.random.split(key, 10)
    s = 1.0 / (lstm_dim ** 0.5)
    G = 4 * lstm_dim  # fused gate width; column layout [i | f | o | g]

    params = {
        "embed": 0.1 * jax.random.normal(ks[0], (vocab, embedding_dim), jnp.float32),
        # word_lstm = nn.LSTM(embedding_dim, lstm_dim), gates fused along last dim
        "word_wih": jax.random.uniform(ks[1], (embedding_dim, G), jnp.float32, -s, s),
        "word_whh": jax.random.uniform(ks[2], (lstm_dim, G), jnp.float32, -s, s),
        "word_b": jax.random.uniform(ks[3], (1, G), jnp.float32, -s, s),
        # sent_lstm = nn.LSTM(lstm_dim, lstm_dim)
        "sent_wih": jax.random.uniform(ks[4], (lstm_dim, G), jnp.float32, -s, s),
        "sent_whh": jax.random.uniform(ks[5], (lstm_dim, G), jnp.float32, -s, s),
        "sent_b": jax.random.uniform(ks[6], (1, G), jnp.float32, -s, s),
        # hidden_layer = nn.Linear(50, hidden_dim), xavier init, zero bias
        "w1": xavier(ks[7], MAX_LEN, hidden_dim),
        "b1": jnp.zeros((1, hidden_dim), jnp.float32),
        # predict_layer = nn.Linear(hidden_dim, num_labels)
        "w2": xavier(ks[8], hidden_dim, num_labels),
        "b2": jnp.zeros((1, num_labels), jnp.float32),
        # nn.BatchNorm1d(hidden_dim), eval statistics
        "bn_gamma": jnp.ones((1, hidden_dim), jnp.float32),
        "bn_beta": jnp.zeros((1, hidden_dim), jnp.float32),
        "bn_mean": jnp.zeros((1, hidden_dim), jnp.float32),
        "bn_var": jnp.ones((1, hidden_dim), jnp.float32),
    }
    return params


# --------------------------------------------------------------------------- #
# Full forward                                                                 #
# --------------------------------------------------------------------------- #
def lstm_semrel_forward(params, token_ids, lengths):
    """token_ids: (D, P, S, T) int32, lengths: (D, P, S) int32 (sorted desc per
    paragraph; original_index == identity).  Returns (pred_sent, pred_par)."""
    D, P, S, T = token_ids.shape
    E = params["embed"].shape[-1]
    H = params["word_whh"].shape[0]
    assert P * S <= MAX_LEN + 1 and P <= MAX_LEN + 1

    # embedding lookup (glue, data_obj.word_embeds)
    emb = jnp.take(params["embed"], token_ids.reshape(-1), axis=0)
    emb = emb.reshape(D * P * S, T, E).transpose(1, 0, 2)          # (T, N_sent, E)
    len_flat = lengths.reshape(-1)

    # word LSTM over every sentence of every paragraph (packed-seq final ht)
    sent_h = run_lstm(emb, params["word_wih"], params["word_whh"],
                      params["word_b"], lengths=len_flat)          # (D*P*S, H)

    # sentences_from_doc: per-doc concat of sentence vectors (original order)
    sent_vecs_doc = sent_h.reshape(D, P * S, H)

    # sentence LSTM: per paragraph, sequence of S sentence vectors, batch=1.
    # All lengths == S -> unmasked fast path (no lengths input at all).
    sent_seq = sent_h.reshape(D * P, S, H).transpose(1, 0, 2)      # (S, D*P, H)
    par_h = run_lstm(sent_seq, params["sent_wih"], params["sent_whh"],
                     params["sent_b"], lengths=None)               # (D*P, H)
    par_vecs = par_h.reshape(D, P, H)

    # Stack both paths, zero-padded to MAX_LEN+1 vectors; padded slots produce
    # exactly zero adjacent cosine, matching the np.zeros(max_len) padding.
    vec_stack = jnp.zeros((2, D, MAX_LEN + 1, H), jnp.float32)
    vec_stack = vec_stack.at[0, :, :P * S, :].set(sent_vecs_doc)
    vec_stack = vec_stack.at[1, :, :P, :].set(par_vecs)

    # Fold eval-mode BatchNorm1d into the predict layer (trace-time, tiny).
    scale = params["bn_gamma"] * lax.rsqrt(params["bn_var"] + EPS_BN)   # (1, HID)
    shift = params["bn_beta"] - params["bn_mean"] * scale               # (1, HID)
    w2_folded = params["w2"] * scale.reshape(-1, 1)                     # (HID, NL)
    b2_folded = shift @ params["w2"] + params["b2"]                     # (1, NL)

    preds = run_tail(vec_stack, params["w1"], params["b1"],
                     w2_folded, b2_folded)                              # (2, D, NL)
    return preds[0], preds[1]


# --------------------------------------------------------------------------- #
if __name__ == "__main__":
    # small shapes: 2 docs x 2 paragraphs x 4 sentences x 8 words
    D, P, S, T = 2, 2, 4, 8
    VOCAB, EMB_DIM, LSTM_DIM, HIDDEN_DIM, NUM_LABELS = 100, 32, 32, 32, 3  # task='class'

    key = jax.random.PRNGKey(0)
    k_par, k_tok, k_len = jax.random.split(key, 3)

    params = init_params(k_par, VOCAB, EMB_DIM, LSTM_DIM, HIDDEN_DIM, NUM_LABELS)

    token_ids = jax.random.randint(k_tok, (D, P, S, T), 0, VOCAB, dtype=jnp.int32)
    lengths = jax.random.randint(k_len, (D, P, S), 2, T + 1, dtype=jnp.int32)
    # pack_padded_sequence expects lengths sorted descending; original_index is
    # then the identity permutation (unsort-gather is a no-op here).
    lengths = -jnp.sort(-lengths, axis=-1)

    forward = jax.jit(lstm_semrel_forward)
    pred_sent, pred_par = forward(params, token_ids, lengths)
    jax.block_until_ready((pred_sent, pred_par))

    assert pred_sent.shape == (D, NUM_LABELS) and pred_par.shape == (D, NUM_LABELS)
    # softmax over dim=0: each column sums to 1
    assert jnp.allclose(jnp.sum(pred_sent, axis=0), 1.0, atol=1e-5)
    assert jnp.allclose(jnp.sum(pred_par, axis=0), 1.0, atol=1e-5)
    print("KERNEL_OK")
</pallas_src>

<mosaic_0001>
module attributes {stable_mosaic.version = 11 : i64} {
  func.func @kernel(%arg0: i32, %arg1: memref<8x8x32xf32, #tpu.memory_space<vmem>>, %arg2: memref<8x1xi32, #tpu.memory_space<vmem>>, %arg3: memref<32x128xbf16, #tpu.memory_space<vmem>>, %arg4: memref<32x128xbf16, #tpu.memory_space<vmem>>, %arg5: memref<1x128xf32, #tpu.memory_space<vmem>>, %arg6: memref<8x32xf32, #tpu.memory_space<vmem>>, %arg7: memref<8x8x128xf32, #tpu.memory_space<vmem>>) attributes {dimension_semantics = [#tpu.dimension_semantics<parallel>], iteration_bounds = array<i64: 2>, scalar_prefetch = 0 : i64, scratch_operands = 1 : i64, tpu.core_type = #tpu.core_type<tc>, window_params = [{transform_indices = @transform_0, window_bounds = array<i64: 8, 8, 32>}, {transform_indices = @transform_1, window_bounds = array<i64: 8, 1>}, {pipeline_mode = #tpu.pipeline_mode<synchronous>, transform_indices = @transform_2, window_bounds = array<i64: 32, 128>}, {pipeline_mode = #tpu.pipeline_mode<synchronous>, transform_indices = @transform_3, window_bounds = array<i64: 32, 128>}, {pipeline_mode = #tpu.pipeline_mode<synchronous>, transform_indices = @transform_4, window_bounds = array<i64: 1, 128>}, {transform_indices = @transform_5, window_bounds = array<i64: 8, 32>}]} {
    %c0 = arith.constant 0 : index
    %c0_0 = arith.constant 0 : index
    %c0_1 = arith.constant 0 : index
    %0 = vector.load %arg1[%c0, %c0_0, %c0_1] : memref<8x8x32xf32, #tpu.memory_space<vmem>>, vector<8x8x32xf32>
    %1 = vector.shape_cast %0 : vector<8x8x32xf32> to vector<64x32xf32>
    %2 = arith.truncf %1 : vector<64x32xf32> to vector<64x32xbf16>
    %c0_2 = arith.constant 0 : index
    %c0_3 = arith.constant 0 : index
    %3 = vector.load %arg3[%c0_2, %c0_3] : memref<32x128xbf16, #tpu.memory_space<vmem>>, vector<32x128xbf16>
    %cst = arith.constant dense<0.000000e+00> : vector<64x128xf32>
    %4 = tpu.matmul %2, %3, %cst {dimension_numbers = #tpu.dot_dimension_numbers<[1], [0], [0], [1], [0, 0, 1, 1], [], []>} : vector<64x32xbf16>, vector<32x128xbf16>, vector<64x128xf32> -> vector<64x128xf32>
    %c0_4 = arith.constant 0 : index
    %c0_5 = arith.constant 0 : index
    %5 = vector.load %arg5[%c0_4, %c0_5] : memref<1x128xf32, #tpu.memory_space<vmem>>, vector<1x128xf32>
    %6 = vector.broadcast %5 : vector<1x128xf32> to vector<64x128xf32>
    %7 = arith.addf %4, %6 : vector<64x128xf32>
    %8 = vector.shape_cast %7 : vector<64x128xf32> to vector<8x8x128xf32>
    %c0_6 = arith.constant 0 : index
    %c0_7 = arith.constant 0 : index
    %c0_8 = arith.constant 0 : index
    %9 = vector.load %arg7[%c0_6, %c0_7, %c0_8] : memref<8x8x128xf32, #tpu.memory_space<vmem>>, vector<8x8x128xf32>
    tpu.vector_store %arg7[%c0_6, %c0_7, %c0_8], %8 {strides = array<i32>} : memref<8x8x128xf32, #tpu.memory_space<vmem>>, vector<8x8x128xf32>,
    %c0_9 = arith.constant 0 : index
    %c0_10 = arith.constant 0 : index
    %10 = vector.load %arg4[%c0_9, %c0_10] : memref<32x128xbf16, #tpu.memory_space<vmem>>, vector<32x128xbf16>
    %c0_11 = arith.constant 0 : index
    %c0_12 = arith.constant 0 : index
    %11 = vector.load %arg2[%c0_11, %c0_12] : memref<8x1xi32, #tpu.memory_space<vmem>>, vector<8x1xi32>
    %12 = vector.shape_cast %11 : vector<8x1xi32> to vector<8x1xi32>
    %13 = vector.broadcast %12 : vector<8x1xi32> to vector<8x32xi32>
    %cst_13 = arith.constant 0.000000e+00 : f32
    %14 = vector.broadcast %cst_13 : f32 to vector<8x32xf32>
    %cst_14 = arith.constant 0.000000e+00 : f32
    %15 = vector.broadcast %cst_14 : f32 to vector<8x32xf32>
    %c0_i32 = arith.constant 0 : i32
    %16 = arith.index_cast %c0_i32 : i32 to index
    %c0_15 = arith.constant 0 : index
    %c0_16 = arith.constant 0 : index
    %17 = vector.load %arg7[%16, %c0_15, %c0_16] : memref<8x8x128xf32, #tpu.memory_space<vmem>>, vector<1x8x128xf32>
    %18 = vector.shape_cast %17 : vector<1x8x128xf32> to vector<8x128xf32>
    %19 = arith.truncf %14 : vector<8x32xf32> to vector<8x32xbf16>
    %cst_17 = arith.constant dense<0.000000e+00> : vector<8x128xf32>
    %20 = tpu.matmul %19, %10, %cst_17 {dimension_numbers = #tpu.dot_dimension_numbers<[1], [0], [0], [1], [0, 0, 1, 1], [], []>} : vector<8x32xbf16>, vector<32x128xbf16>, vector<8x128xf32> -> vector<8x128xf32>
    %21 = arith.addf %18, %20 : vector<8x128xf32>
    %22 = vector.extract_strided_slice %21 {offsets = [0, 0], sizes = [8, 96], strides = [1, 1]} : vector<8x128xf32> to vector<8x96xf32>
    %23 = arith.negf %22 : vector<8x96xf32>
    %24 = math.exp %23 : vector<8x96xf32>
    %cst_18 = arith.constant 1.000000e+00 : f32
    %25 = vector.broadcast %cst_18 : f32 to vector<8x96xf32>
    %26 = arith.addf %25, %24 : vector<8x96xf32>
    %27 = arith.divf %25, %26 : vector<8x96xf32>
    %28 = vector.extract_strided_slice %21 {offsets = [0, 96], sizes = [8, 32], strides = [1, 1]} : vector<8x128xf32> to vector<8x32xf32>
    %29 = math.tanh %28 : vector<8x32xf32>
    %30 = vector.extract_strided_slice %27 {offsets = [0, 0], sizes = [8, 32], strides = [1, 1]} : vector<8x96xf32> to vector<8x32xf32>
    %31 = vector.extract_strided_slice %27 {offsets = [0, 32], sizes = [8, 32], strides = [1, 1]} : vector<8x96xf32> to vector<8x32xf32>
    %32 = vector.extract_strided_slice %27 {offsets = [0, 64], sizes = [8, 32], strides = [1, 1]} : vector<8x96xf32> to vector<8x32xf32>
    %33 = arith.mulf %31, %15 : vector<8x32xf32>
    %34 = arith.mulf %30, %29 : vector<8x32xf32>
    %35 = arith.addf %33, %34 : vector<8x32xf32>
    %36 = math.tanh %35 : vector<8x32xf32>
    %37 = arith.mulf %32, %36 : vector<8x32xf32>
    %38 = vector.broadcast %c0_i32 : i32 to vector<8x32xi32>
    %39 = arith.cmpi sgt, %13, %38 : vector<8x32xi32>
    %40 = arith.select %39, %37, %14 : vector<8x32xi1>, vector<8x32xf32>
    %41 = arith.select %39, %35, %15 : vector<8x32xi1>, vector<8x32xf32>
    %c1_i32 = arith.constant 1 : i32
    %42 = arith.index_cast %c1_i32 : i32 to index
    %c0_19 = arith.constant 0 : index
    %c0_20 = arith.constant 0 : index
    %43 = vector.load %arg7[%42, %c0_19, %c0_20] : memref<8x8x128xf32, #tpu.memory_space<vmem>>, vector<1x8x128xf32>
    %44 = vector.shape_cast %43 : vector<1x8x128xf32> to vector<8x128xf32>
    %45 = arith.truncf %40 : vector<8x32xf32> to vector<8x32xbf16>
    %cst_21 = arith.constant dense<0.000000e+00> : vector<8x128xf32>
    %46 = tpu.matmul %45, %10, %cst_21 {dimension_numbers = #tpu.dot_dimension_numbers<[1], [0], [0], [1], [0, 0, 1, 1], [], []>} : vector<8x32xbf16>, vector<32x128xbf16>, vector<8x128xf32> -> vector<8x128xf32>
    %47 = arith.addf %44, %46 : vector<8x128xf32>
    %48 = vector.extract_strided_slice %47 {offsets = [0, 0], sizes = [8, 96], strides = [1, 1]} : vector<8x128xf32> to vector<8x96xf32>
    %49 = arith.negf %48 : vector<8x96xf32>
    %50 = math.exp %49 : vector<8x96xf32>
    %cst_22 = arith.constant 1.000000e+00 : f32
    %51 = vector.broadcast %cst_22 : f32 to vector<8x96xf32>
    %52 = arith.addf %51, %50 : vector<8x96xf32>
    %53 = arith.divf %51, %52 : vector<8x96xf32>
    %54 = vector.extract_strided_slice %47 {offsets = [0, 96], sizes = [8, 32], strides = [1, 1]} : vector<8x128xf32> to vector<8x32xf32>
    %55 = math.tanh %54 : vector<8x32xf32>
    %56 = vector.extract_strided_slice %53 {offsets = [0, 0], sizes = [8, 32], strides = [1, 1]} : vector<8x96xf32> to vector<8x32xf32>
    %57 = vector.extract_strided_slice %53 {offsets = [0, 32], sizes = [8, 32], strides = [1, 1]} : vector<8x96xf32> to vector<8x32xf32>
    %58 = vector.extract_strided_slice %53 {offsets = [0, 64], sizes = [8, 32], strides = [1, 1]} : vector<8x96xf32> to vector<8x32xf32>
    %59 = arith.mulf %57, %41 : vector<8x32xf32>
    %60 = arith.mulf %56, %55 : vector<8x32xf32>
    %61 = arith.addf %59, %60 : vector<8x32xf32>
    %62 = math.tanh %61 : vector<8x32xf32>
    %63 = arith.mulf %58, %62 : vector<8x32xf32>
    %64 = vector.broadcast %c1_i32 : i32 to vector<8x32xi32>
    %65 = arith.cmpi sgt, %13, %64 : vector<8x32xi32>
    %66 = arith.select %65, %63, %40 : vector<8x32xi1>, vector<8x32xf32>
    %67 = arith.select %65, %61, %41 : vector<8x32xi1>, vector<8x32xf32>
    %c2_i32 = arith.constant 2 : i32
    %68 = arith.index_cast %c2_i32 : i32 to index
    %c0_23 = arith.constant 0 : index
    %c0_24 = arith.constant 0 : index
    %69 = vector.load %arg7[%68, %c0_23, %c0_24] : memref<8x8x128xf32, #tpu.memory_space<vmem>>, vector<1x8x128xf32>
    %70 = vector.shape_cast %69 : vector<1x8x128xf32> to vector<8x128xf32>
    %71 = arith.truncf %66 : vector<8x32xf32> to vector<8x32xbf16>
    %cst_25 = arith.constant dense<0.000000e+00> : vector<8x128xf32>
    %72 = tpu.matmul %71, %10, %cst_25 {dimension_numbers = #tpu.dot_dimension_numbers<[1], [0], [0], [1], [0, 0, 1, 1], [], []>} : vector<8x32xbf16>, vector<32x128xbf16>, vector<8x128xf32> -> vector<8x128xf32>
    %73 = arith.addf %70, %72 : vector<8x128xf32>
    %74 = vector.extract_strided_slice %73 {offsets = [0, 0], sizes = [8, 96], strides = [1, 1]} : vector<8x128xf32> to vector<8x96xf32>
    %75 = arith.negf %74 : vector<8x96xf32>
    %76 = math.exp %75 : vector<8x96xf32>
    %cst_26 = arith.constant 1.000000e+00 : f32
    %77 = vector.broadcast %cst_26 : f32 to vector<8x96xf32>
    %78 = arith.addf %77, %76 : vector<8x96xf32>
    %79 = arith.divf %77, %78 : vector<8x96xf32>
    %80 = vector.extract_strided_slice %73 {offsets = [0, 96], sizes = [8, 32], strides = [1, 1]} : vector<8x128xf32> to vector<8x32xf32>
    %81 = math.tanh %80 : vector<8x32xf32>
    %82 = vector.extract_strided_slice %79 {offsets = [0, 0], sizes = [8, 32], strides = [1, 1]} : vector<8x96xf32> to vector<8x32xf32>
    %83 = vector.extract_strided_slice %79 {offsets = [0, 32], sizes = [8, 32], strides = [1, 1]} : vector<8x96xf32> to vector<8x32xf32>
    %84 = vector.extract_strided_slice %79 {offsets = [0, 64], sizes = [8, 32], strides = [1, 1]} : vector<8x96xf32> to vector<8x32xf32>
    %85 = arith.mulf %83, %67 : vector<8x32xf32>
    %86 = arith.mulf %82, %81 : vector<8x32xf32>
    %87 = arith.addf %85, %86 : vector<8x32xf32>
    %88 = math.tanh %87 : vector<8x32xf32>
    %89 = arith.mulf %84, %88 : vector<8x32xf32>
    %90 = vector.broadcast %c2_i32 : i32 to vector<8x32xi32>
    %91 = arith.cmpi sgt, %13, %90 : vector<8x32xi32>
    %92 = arith.select %91, %89, %66 : vector<8x32xi1>, vector<8x32xf32>
    %93 = arith.select %91, %87, %67 : vector<8x32xi1>, vector<8x32xf32>
    %c3_i32 = arith.constant 3 : i32
    %94 = arith.index_cast %c3_i32 : i32 to index
    %c0_27 = arith.constant 0 : index
    %c0_28 = arith.constant 0 : index
    %95 = vector.load %arg7[%94, %c0_27, %c0_28] : memref<8x8x128xf32, #tpu.memory_space<vmem>>, vector<1x8x128xf32>
    %96 = vector.shape_cast %95 : vector<1x8x128xf32> to vector<8x128xf32>
    %97 = arith.truncf %92 : vector<8x32xf32> to vector<8x32xbf16>
    %cst_29 = arith.constant dense<0.000000e+00> : vector<8x128xf32>
    %98 = tpu.matmul %97, %10, %cst_29 {dimension_numbers = #tpu.dot_dimension_numbers<[1], [0], [0], [1], [0, 0, 1, 1], [], []>} : vector<8x32xbf16>, vector<32x128xbf16>, vector<8x128xf32> -> vector<8x128xf32>
    %99 = arith.addf %96, %98 : vector<8x128xf32>
    %100 = vector.extract_strided_slice %99 {offsets = [0, 0], sizes = [8, 96], strides = [1, 1]} : vector<8x128xf32> to vector<8x96xf32>
    %101 = arith.negf %100 : vector<8x96xf32>
    %102 = math.exp %101 : vector<8x96xf32>
    %cst_30 = arith.constant 1.000000e+00 : f32
    %103 = vector.broadcast %cst_30 : f32 to vector<8x96xf32>
    %104 = arith.addf %103, %102 : vector<8x96xf32>
    %105 = arith.divf %103, %104 : vector<8x96xf32>
    %106 = vector.extract_strided_slice %99 {offsets = [0, 96], sizes = [8, 32], strides = [1, 1]} : vector<8x128xf32> to vector<8x32xf32>
    %107 = math.tanh %106 : vector<8x32xf32>
    %108 = vector.extract_strided_slice %105 {offsets = [0, 0], sizes = [8, 32], strides = [1, 1]} : vector<8x96xf32> to vector<8x32xf32>
    %109 = vector.extract_strided_slice %105 {offsets = [0, 32], sizes = [8, 32], strides = [1, 1]} : vector<8x96xf32> to vector<8x32xf32>
    %110 = vector.extract_strided_slice %105 {offsets = [0, 64], sizes = [8, 32], strides = [1, 1]} : vector<8x96xf32> to vector<8x32xf32>
    %111 = arith.mulf %109, %93 : vector<8x32xf32>
    %112 = arith.mulf %108, %107 : vector<8x32xf32>
    %113 = arith.addf %111, %112 : vector<8x32xf32>
    %114 = math.tanh %113 : vector<8x32xf32>
    %115 = arith.mulf %110, %114 : vector<8x32xf32>
    %116 = vector.broadcast %c3_i32 : i32 to vector<8x32xi32>
    %117 = arith.cmpi sgt, %13, %116 : vector<8x32xi32>
    %118 = arith.select %117, %115, %92 : vector<8x32xi1>, vector<8x32xf32>
    %119 = arith.select %117, %113, %93 : vector<8x32xi1>, vector<8x32xf32>
    %c4_i32 = arith.constant 4 : i32
    %120 = arith.index_cast %c4_i32 : i32 to index
    %c0_31 = arith.constant 0 : index
    %c0_32 = arith.constant 0 : index
    %121 = vector.load %arg7[%120, %c0_31, %c0_32] : memref<8x8x128xf32, #tpu.memory_space<vmem>>, vector<1x8x128xf32>
    %122 = vector.shape_cast %121 : vector<1x8x128xf32> to vector<8x128xf32>
    %123 = arith.truncf %118 : vector<8x32xf32> to vector<8x32xbf16>
    %cst_33 = arith.constant dense<0.000000e+00> : vector<8x128xf32>
    %124 = tpu.matmul %123, %10, %cst_33 {dimension_numbers = #tpu.dot_dimension_numbers<[1], [0], [0], [1], [0, 0, 1, 1], [], []>} : vector<8x32xbf16>, vector<32x128xbf16>, vector<8x128xf32> -> vector<8x128xf32>
    %125 = arith.addf %122, %124 : vector<8x128xf32>
    %126 = vector.extract_strided_slice %125 {offsets = [0, 0], sizes = [8, 96], strides = [1, 1]} : vector<8x128xf32> to vector<8x96xf32>
    %127 = arith.negf %126 : vector<8x96xf32>
    %128 = math.exp %127 : vector<8x96xf32>
    %cst_34 = arith.constant 1.000000e+00 : f32
    %129 = vector.broadcast %cst_34 : f32 to vector<8x96xf32>
    %130 = arith.addf %129, %128 : vector<8x96xf32>
    %131 = arith.divf %129, %130 : vector<8x96xf32>
    %132 = vector.extract_strided_slice %125 {offsets = [0, 96], sizes = [8, 32], strides = [1, 1]} : vector<8x128xf32> to vector<8x32xf32>
    %133 = math.tanh %132 : vector<8x32xf32>
    %134 = vector.extract_strided_slice %131 {offsets = [0, 0], sizes = [8, 32], strides = [1, 1]} : vector<8x96xf32> to vector<8x32xf32>
    %135 = vector.extract_strided_slice %131 {offsets = [0, 32], sizes = [8, 32], strides = [1, 1]} : vector<8x96xf32> to vector<8x32xf32>
    %136 = vector.extract_strided_slice %131 {offsets = [0, 64], sizes = [8, 32], strides = [1, 1]} : vector<8x96xf32> to vector<8x32xf32>
    %137 = arith.mulf %135, %119 : vector<8x32xf32>
    %138 = arith.mulf %134, %133 : vector<8x32xf32>
    %139 = arith.addf %137, %138 : vector<8x32xf32>
    %140 = math.tanh %139 : vector<8x32xf32>
    %141 = arith.mulf %136, %140 : vector<8x32xf32>
    %142 = vector.broadcast %c4_i32 : i32 to vector<8x32xi32>
    %143 = arith.cmpi sgt, %13, %142 : vector<8x32xi32>
    %144 = arith.select %143, %141, %118 : vector<8x32xi1>, vector<8x32xf32>
    %145 = arith.select %143, %139, %119 : vector<8x32xi1>, vector<8x32xf32>
    %c5_i32 = arith.constant 5 : i32
    %146 = arith.index_cast %c5_i32 : i32 to index
    %c0_35 = arith.constant 0 : index
    %c0_36 = arith.constant 0 : index
    %147 = vector.load %arg7[%146, %c0_35, %c0_36] : memref<8x8x128xf32, #tpu.memory_space<vmem>>, vector<1x8x128xf32>
    %148 = vector.shape_cast %147 : vector<1x8x128xf32> to vector<8x128xf32>
    %149 = arith.truncf %144 : vector<8x32xf32> to vector<8x32xbf16>
    %cst_37 = arith.constant dense<0.000000e+00> : vector<8x128xf32>
    %150 = tpu.matmul %149, %10, %cst_37 {dimension_numbers = #tpu.dot_dimension_numbers<[1], [0], [0], [1], [0, 0, 1, 1], [], []>} : vector<8x32xbf16>, vector<32x128xbf16>, vector<8x128xf32> -> vector<8x128xf32>
    %151 = arith.addf %148, %150 : vector<8x128xf32>
    %152 = vector.extract_strided_slice %151 {offsets = [0, 0], sizes = [8, 96], strides = [1, 1]} : vector<8x128xf32> to vector<8x96xf32>
    %153 = arith.negf %152 : vector<8x96xf32>
    %154 = math.exp %153 : vector<8x96xf32>
    %cst_38 = arith.constant 1.000000e+00 : f32
    %155 = vector.broadcast %cst_38 : f32 to vector<8x96xf32>
    %156 = arith.addf %155, %154 : vector<8x96xf32>
    %157 = arith.divf %155, %156 : vector<8x96xf32>
    %158 = vector.extract_strided_slice %151 {offsets = [0, 96], sizes = [8, 32], strides = [1, 1]} : vector<8x128xf32> to vector<8x32xf32>
    %159 = math.tanh %158 : vector<8x32xf32>
    %160 = vector.extract_strided_slice %157 {offsets = [0, 0], sizes = [8, 32], strides = [1, 1]} : vector<8x96xf32> to vector<8x32xf32>
    %161 = vector.extract_strided_slice %157 {offsets = [0, 32], sizes = [8, 32], strides = [1, 1]} : vector<8x96xf32> to vector<8x32xf32>
    %162 = vector.extract_strided_slice %157 {offsets = [0, 64], sizes = [8, 32], strides = [1, 1]} : vector<8x96xf32> to vector<8x32xf32>
    %163 = arith.mulf %161, %145 : vector<8x32xf32>
    %164 = arith.mulf %160, %159 : vector<8x32xf32>
    %165 = arith.addf %163, %164 : vector<8x32xf32>
    %166 = math.tanh %165 : vector<8x32xf32>
    %167 = arith.mulf %162, %166 : vector<8x32xf32>
    %168 = vector.broadcast %c5_i32 : i32 to vector<8x32xi32>
    %169 = arith.cmpi sgt, %13, %168 : vector<8x32xi32>
    %170 = arith.select %169, %167, %144 : vector<8x32xi1>, vector<8x32xf32>
    %171 = arith.select %169, %165, %145 : vector<8x32xi1>, vector<8x32xf32>
    %c6_i32 = arith.constant 6 : i32
    %172 = arith.index_cast %c6_i32 : i32 to index
    %c0_39 = arith.constant 0 : index
    %c0_40 = arith.constant 0 : index
    %173 = vector.load %arg7[%172, %c0_39, %c0_40] : memref<8x8x128xf32, #tpu.memory_space<vmem>>, vector<1x8x128xf32>
    %174 = vector.shape_cast %173 : vector<1x8x128xf32> to vector<8x128xf32>
    %175 = arith.truncf %170 : vector<8x32xf32> to vector<8x32xbf16>
    %cst_41 = arith.constant dense<0.000000e+00> : vector<8x128xf32>
    %176 = tpu.matmul %175, %10, %cst_41 {dimension_numbers = #tpu.dot_dimension_numbers<[1], [0], [0], [1], [0, 0, 1, 1], [], []>} : vector<8x32xbf16>, vector<32x128xbf16>, vector<8x128xf32> -> vector<8x128xf32>
    %177 = arith.addf %174, %176 : vector<8x128xf32>
    %178 = vector.extract_strided_slice %177 {offsets = [0, 0], sizes = [8, 96], strides = [1, 1]} : vector<8x128xf32> to vector<8x96xf32>
    %179 = arith.negf %178 : vector<8x96xf32>
    %180 = math.exp %179 : vector<8x96xf32>
    %cst_42 = arith.constant 1.000000e+00 : f32
    %181 = vector.broadcast %cst_42 : f32 to vector<8x96xf32>
    %182 = arith.addf %181, %180 : vector<8x96xf32>
    %183 = arith.divf %181, %182 : vector<8x96xf32>
    %184 = vector.extract_strided_slice %177 {offsets = [0, 96], sizes = [8, 32], strides = [1, 1]} : vector<8x128xf32> to vector<8x32xf32>
    %185 = math.tanh %184 : vector<8x32xf32>
    %186 = vector.extract_strided_slice %183 {offsets = [0, 0], sizes = [8, 32], strides = [1, 1]} : vector<8x96xf32> to vector<8x32xf32>
    %187 = vector.extract_strided_slice %183 {offsets = [0, 32], sizes = [8, 32], strides = [1, 1]} : vector<8x96xf32> to vector<8x32xf32>
    %188 = vector.extract_strided_slice %183 {offsets = [0, 64], sizes = [8, 32], strides = [1, 1]} : vector<8x96xf32> to vector<8x32xf32>
    %189 = arith.mulf %187, %171 : vector<8x32xf32>
    %190 = arith.mulf %186, %185 : vector<8x32xf32>
    %191 = arith.addf %189, %190 : vector<8x32xf32>
    %192 = math.tanh %191 : vector<8x32xf32>
    %193 = arith.mulf %188, %192 : vector<8x32xf32>
    %194 = vector.broadcast %c6_i32 : i32 to vector<8x32xi32>
    %195 = arith.cmpi sgt, %13, %194 : vector<8x32xi32>
    %196 = arith.select %195, %193, %170 : vector<8x32xi1>, vector<8x32xf32>
    %197 = arith.select %195, %191, %171 : vector<8x32xi1>, vector<8x32xf32>
    %c7_i32 = arith.constant 7 : i32
    %198 = arith.index_cast %c7_i32 : i32 to index
    %c0_43 = arith.constant 0 : index
    %c0_44 = arith.constant 0 : index
    %199 = vector.load %arg7[%198, %c0_43, %c0_44] : memref<8x8x128xf32, #tpu.memory_space<vmem>>, vector<1x8x128xf32>
    %200 = vector.shape_cast %199 : vector<1x8x128xf32> to vector<8x128xf32>
    %201 = arith.truncf %196 : vector<8x32xf32> to vector<8x32xbf16>
    %cst_45 = arith.constant dense<0.000000e+00> : vector<8x128xf32>
    %202 = tpu.matmul %201, %10, %cst_45 {dimension_numbers = #tpu.dot_dimension_numbers<[1], [0], [0], [1], [0, 0, 1, 1], [], []>} : vector<8x32xbf16>, vector<32x128xbf16>, vector<8x128xf32> -> vector<8x128xf32>
    %203 = arith.addf %200, %202 : vector<8x128xf32>
    %204 = vector.extract_strided_slice %203 {offsets = [0, 0], sizes = [8, 96], strides = [1, 1]} : vector<8x128xf32> to vector<8x96xf32>
    %205 = arith.negf %204 : vector<8x96xf32>
    %206 = math.exp %205 : vector<8x96xf32>
    %cst_46 = arith.constant 1.000000e+00 : f32
    %207 = vector.broadcast %cst_46 : f32 to vector<8x96xf32>
    %208 = arith.addf %207, %206 : vector<8x96xf32>
    %209 = arith.divf %207, %208 : vector<8x96xf32>
    %210 = vector.extract_strided_slice %203 {offsets = [0, 96], sizes = [8, 32], strides = [1, 1]} : vector<8x128xf32> to vector<8x32xf32>
    %211 = math.tanh %210 : vector<8x32xf32>
    %212 = vector.extract_strided_slice %209 {offsets = [0, 0], sizes = [8, 32], strides = [1, 1]} : vector<8x96xf32> to vector<8x32xf32>
    %213 = vector.extract_strided_slice %209 {offsets = [0, 32], sizes = [8, 32], strides = [1, 1]} : vector<8x96xf32> to vector<8x32xf32>
    %214 = vector.extract_strided_slice %209 {offsets = [0, 64], sizes = [8, 32], strides = [1, 1]} : vector<8x96xf32> to vector<8x32xf32>
    %215 = arith.mulf %213, %197 : vector<8x32xf32>
    %216 = arith.mulf %212, %211 : vector<8x32xf32>
    %217 = arith.addf %215, %216 : vector<8x32xf32>
    %218 = math.tanh %217 : vector<8x32xf32>
    %219 = arith.mulf %214, %218 : vector<8x32xf32>
    %220 = vector.broadcast %c7_i32 : i32 to vector<8x32xi32>
    %221 = arith.cmpi sgt, %13, %220 : vector<8x32xi32>
    %222 = arith.select %221, %219, %196 : vector<8x32xi1>, vector<8x32xf32>
    %223 = arith.select %221, %217, %197 : vector<8x32xi1>, vector<8x32xf32>
    %c8_i32 = arith.constant 8 : i32
    %c0_47 = arith.constant 0 : index
    %c0_48 = arith.constant 0 : index
    %224 = vector.load %arg6[%c0_47, %c0_48] : memref<8x32xf32, #tpu.memory_space<vmem>>, vector<8x32xf32>
    tpu.vector_store %arg6[%c0_47, %c0_48], %222 {strides = array<i32>} : memref<8x32xf32, #tpu.memory_space<vmem>>, vector<8x32xf32>,
    return
  }
  func.func @transform_0(%arg0: i32) -> (i32, i32, i32) {
    %c0_i32 = arith.constant 0 : i32
    %c0_i32_0 = arith.constant 0 : i32
    %c0_i32_1 = arith.constant 0 : i32
    return %c0_i32, %arg0, %c0_i32_0 : i32, i32, i32
  }
  func.func @transform_1(%arg0: i32) -> (i32, i32) {
    %c0_i32 = arith.constant 0 : i32
    %c0_i32_0 = arith.constant 0 : i32
    return %arg0, %c0_i32 : i32, i32
  }
  func.func @transform_2(%arg0: i32) -> (i32, i32) {
    %c0_i32 = arith.constant 0 : i32
    %c0_i32_0 = arith.constant 0 : i32
    %c0_i32_1 = arith.constant 0 : i32
    return %c0_i32, %c0_i32_0 : i32, i32
  }
  func.func @transform_3(%arg0: i32) -> (i32, i32) {
    %c0_i32 = arith.constant 0 : i32
    %c0_i32_0 = arith.constant 0 : i32
    %c0_i32_1 = arith.constant 0 : i32
    return %c0_i32, %c0_i32_0 : i32, i32
  }
  func.func @transform_4(%arg0: i32) -> (i32, i32) {
    %c0_i32 = arith.constant 0 : i32
    %c0_i32_0 = arith.constant 0 : i32
    %c0_i32_1 = arith.constant 0 : i32
    return %c0_i32, %c0_i32_0 : i32, i32
  }
  func.func @transform_5(%arg0: i32) -> (i32, i32) {
    %c0_i32 = arith.constant 0 : i32
    %c0_i32_0 = arith.constant 0 : i32
    return %arg0, %c0_i32 : i32, i32
  }
}

module attributes {stable_mosaic.version = 11 : i64} {
  func.func @kernel(%arg0: i32, %arg1: memref<4x8x32xf32, #tpu.memory_space<vmem>>, %arg2: memref<32x128xbf16, #tpu.memory_space<vmem>>, %arg3: memref<32x128xbf16, #tpu.memory_space<vmem>>, %arg4: memref<1x128xf32, #tpu.memory_space<vmem>>, %arg5: memref<8x32xf32, #tpu.memory_space<vmem>>, %arg6: memref<4x8x128xf32, #tpu.memory_space<vmem>>) attributes {dimension_semantics = [#tpu.dimension_semantics<parallel>], iteration_bounds = array<i64: 1>, scalar_prefetch = 0 : i64, scratch_operands = 1 : i64, tpu.core_type = #tpu.core_type<tc>, window_params = [{transform_indices = @transform_0, window_bounds = array<i64: 4, 8, 32>}, {pipeline_mode = #tpu.pipeline_mode<synchronous>, transform_indices = @transform_1, window_bounds = array<i64: 32, 128>}, {pipeline_mode = #tpu.pipeline_mode<synchronous>, transform_indices = @transform_2, window_bounds = array<i64: 32, 128>}, {pipeline_mode = #tpu.pipeline_mode<synchronous>, transform_indices = @transform_3, window_bounds = array<i64: 1, 128>}, {transform_indices = @transform_4, window_bounds = array<i64: 8, 32>}]} {
    %c0 = arith.constant 0 : index
    %c0_0 = arith.constant 0 : index
    %c0_1 = arith.constant 0 : index
    %0 = vector.load %arg1[%c0, %c0_0, %c0_1] : memref<4x8x32xf32, #tpu.memory_space<vmem>>, vector<4x8x32xf32>
    %1 = vector.shape_cast %0 : vector<4x8x32xf32> to vector<32x32xf32>
    %2 = arith.truncf %1 : vector<32x32xf32> to vector<32x32xbf16>
    %c0_2 = arith.constant 0 : index
    %c0_3 = arith.constant 0 : index
    %3 = vector.load %arg2[%c0_2, %c0_3] : memref<32x128xbf16, #tpu.memory_space<vmem>>, vector<32x128xbf16>
    %cst = arith.constant dense<0.000000e+00> : vector<32x128xf32>
    %4 = tpu.matmul %2, %3, %cst {dimension_numbers = #tpu.dot_dimension_numbers<[1], [0], [0], [1], [0, 0, 1, 1], [], []>} : vector<32x32xbf16>, vector<32x128xbf16>, vector<32x128xf32> -> vector<32x128xf32>
    %c0_4 = arith.constant 0 : index
    %c0_5 = arith.constant 0 : index
    %5 = vector.load %arg4[%c0_4, %c0_5] : memref<1x128xf32, #tpu.memory_space<vmem>>, vector<1x128xf32>
    %6 = vector.broadcast %5 : vector<1x128xf32> to vector<32x128xf32>
    %7 = arith.addf %4, %6 : vector<32x128xf32>
    %8 = vector.shape_cast %7 : vector<32x128xf32> to vector<4x8x128xf32>
    %c0_6 = arith.constant 0 : index
    %c0_7 = arith.constant 0 : index
    %c0_8 = arith.constant 0 : index
    %9 = vector.load %arg6[%c0_6, %c0_7, %c0_8] : memref<4x8x128xf32, #tpu.memory_space<vmem>>, vector<4x8x128xf32>
    tpu.vector_store %arg6[%c0_6, %c0_7, %c0_8], %8 {strides = array<i32>} : memref<4x8x128xf32, #tpu.memory_space<vmem>>, vector<4x8x128xf32>,
    %c0_9 = arith.constant 0 : index
    %c0_10 = arith.constant 0 : index
    %10 = vector.load %arg3[%c0_9, %c0_10] : memref<32x128xbf16, #tpu.memory_space<vmem>>, vector<32x128xbf16>
    %cst_11 = arith.constant 0.000000e+00 : f32
    %11 = vector.broadcast %cst_11 : f32 to vector<8x32xf32>
    %cst_12 = arith.constant 0.000000e+00 : f32
    %12 = vector.broadcast %cst_12 : f32 to vector<8x32xf32>
    %c0_i32 = arith.constant 0 : i32
    %13 = arith.index_cast %c0_i32 : i32 to index
    %c0_13 = arith.constant 0 : index
    %c0_14 = arith.constant 0 : index
    %14 = vector.load %arg6[%13, %c0_13, %c0_14] : memref<4x8x128xf32, #tpu.memory_space<vmem>>, vector<1x8x128xf32>
    %15 = vector.shape_cast %14 : vector<1x8x128xf32> to vector<8x128xf32>
    %16 = arith.truncf %11 : vector<8x32xf32> to vector<8x32xbf16>
    %cst_15 = arith.constant dense<0.000000e+00> : vector<8x128xf32>
    %17 = tpu.matmul %16, %10, %cst_15 {dimension_numbers = #tpu.dot_dimension_numbers<[1], [0], [0], [1], [0, 0, 1, 1], [], []>} : vector<8x32xbf16>, vector<32x128xbf16>, vector<8x128xf32> -> vector<8x128xf32>
    %18 = arith.addf %15, %17 : vector<8x128xf32>
    %19 = vector.extract_strided_slice %18 {offsets = [0, 0], sizes = [8, 96], strides = [1, 1]} : vector<8x128xf32> to vector<8x96xf32>
    %20 = arith.negf %19 : vector<8x96xf32>
    %21 = math.exp %20 : vector<8x96xf32>
    %cst_16 = arith.constant 1.000000e+00 : f32
    %22 = vector.broadcast %cst_16 : f32 to vector<8x96xf32>
    %23 = arith.addf %22, %21 : vector<8x96xf32>
    %24 = arith.divf %22, %23 : vector<8x96xf32>
    %25 = vector.extract_strided_slice %18 {offsets = [0, 96], sizes = [8, 32], strides = [1, 1]} : vector<8x128xf32> to vector<8x32xf32>
    %26 = math.tanh %25 : vector<8x32xf32>
    %27 = vector.extract_strided_slice %24 {offsets = [0, 0], sizes = [8, 32], strides = [1, 1]} : vector<8x96xf32> to vector<8x32xf32>
    %28 = vector.extract_strided_slice %24 {offsets = [0, 32], sizes = [8, 32], strides = [1, 1]} : vector<8x96xf32> to vector<8x32xf32>
    %29 = vector.extract_strided_slice %24 {offsets = [0, 64], sizes = [8, 32], strides = [1, 1]} : vector<8x96xf32> to vector<8x32xf32>
    %30 = arith.mulf %28, %12 : vector<8x32xf32>
    %31 = arith.mulf %27, %26 : vector<8x32xf32>
    %32 = arith.addf %30, %31 : vector<8x32xf32>
    %33 = math.tanh %32 : vector<8x32xf32>
    %34 = arith.mulf %29, %33 : vector<8x32xf32>
    %c1_i32 = arith.constant 1 : i32
    %35 = arith.index_cast %c1_i32 : i32 to index
    %c0_17 = arith.constant 0 : index
    %c0_18 = arith.constant 0 : index
    %36 = vector.load %arg6[%35, %c0_17, %c0_18] : memref<4x8x128xf32, #tpu.memory_space<vmem>>, vector<1x8x128xf32>
    %37 = vector.shape_cast %36 : vector<1x8x128xf32> to vector<8x128xf32>
    %38 = arith.truncf %34 : vector<8x32xf32> to vector<8x32xbf16>
    %cst_19 = arith.constant dense<0.000000e+00> : vector<8x128xf32>
    %39 = tpu.matmul %38, %10, %cst_19 {dimension_numbers = #tpu.dot_dimension_numbers<[1], [0], [0], [1], [0, 0, 1, 1], [], []>} : vector<8x32xbf16>, vector<32x128xbf16>, vector<8x128xf32> -> vector<8x128xf32>
    %40 = arith.addf %37, %39 : vector<8x128xf32>
    %41 = vector.extract_strided_slice %40 {offsets = [0, 0], sizes = [8, 96], strides = [1, 1]} : vector<8x128xf32> to vector<8x96xf32>
    %42 = arith.negf %41 : vector<8x96xf32>
    %43 = math.exp %42 : vector<8x96xf32>
    %cst_20 = arith.constant 1.000000e+00 : f32
    %44 = vector.broadcast %cst_20 : f32 to vector<8x96xf32>
    %45 = arith.addf %44, %43 : vector<8x96xf32>
    %46 = arith.divf %44, %45 : vector<8x96xf32>
    %47 = vector.extract_strided_slice %40 {offsets = [0, 96], sizes = [8, 32], strides = [1, 1]} : vector<8x128xf32> to vector<8x32xf32>
    %48 = math.tanh %47 : vector<8x32xf32>
    %49 = vector.extract_strided_slice %46 {offsets = [0, 0], sizes = [8, 32], strides = [1, 1]} : vector<8x96xf32> to vector<8x32xf32>
    %50 = vector.extract_strided_slice %46 {offsets = [0, 32], sizes = [8, 32], strides = [1, 1]} : vector<8x96xf32> to vector<8x32xf32>
    %51 = vector.extract_strided_slice %46 {offsets = [0, 64], sizes = [8, 32], strides = [1, 1]} : vector<8x96xf32> to vector<8x32xf32>
    %52 = arith.mulf %50, %32 : vector<8x32xf32>
    %53 = arith.mulf %49, %48 : vector<8x32xf32>
    %54 = arith.addf %52, %53 : vector<8x32xf32>
    %55 = math.tanh %54 : vector<8x32xf32>
    %56 = arith.mulf %51, %55 : vector<8x32xf32>
    %c2_i32 = arith.constant 2 : i32
    %57 = arith.index_cast %c2_i32 : i32 to index
    %c0_21 = arith.constant 0 : index
    %c0_22 = arith.constant 0 : index
    %58 = vector.load %arg6[%57, %c0_21, %c0_22] : memref<4x8x128xf32, #tpu.memory_space<vmem>>, vector<1x8x128xf32>
    %59 = vector.shape_cast %58 : vector<1x8x128xf32> to vector<8x128xf32>
    %60 = arith.truncf %56 : vector<8x32xf32> to vector<8x32xbf16>
    %cst_23 = arith.constant dense<0.000000e+00> : vector<8x128xf32>
    %61 = tpu.matmul %60, %10, %cst_23 {dimension_numbers = #tpu.dot_dimension_numbers<[1], [0], [0], [1], [0, 0, 1, 1], [], []>} : vector<8x32xbf16>, vector<32x128xbf16>, vector<8x128xf32> -> vector<8x128xf32>
    %62 = arith.addf %59, %61 : vector<8x128xf32>
    %63 = vector.extract_strided_slice %62 {offsets = [0, 0], sizes = [8, 96], strides = [1, 1]} : vector<8x128xf32> to vector<8x96xf32>
    %64 = arith.negf %63 : vector<8x96xf32>
    %65 = math.exp %64 : vector<8x96xf32>
    %cst_24 = arith.constant 1.000000e+00 : f32
    %66 = vector.broadcast %cst_24 : f32 to vector<8x96xf32>
    %67 = arith.addf %66, %65 : vector<8x96xf32>
    %68 = arith.divf %66, %67 : vector<8x96xf32>
    %69 = vector.extract_strided_slice %62 {offsets = [0, 96], sizes = [8, 32], strides = [1, 1]} : vector<8x128xf32> to vector<8x32xf32>
    %70 = math.tanh %69 : vector<8x32xf32>
    %71 = vector.extract_strided_slice %68 {offsets = [0, 0], sizes = [8, 32], strides = [1, 1]} : vector<8x96xf32> to vector<8x32xf32>
    %72 = vector.extract_strided_slice %68 {offsets = [0, 32], sizes = [8, 32], strides = [1, 1]} : vector<8x96xf32> to vector<8x32xf32>
    %73 = vector.extract_strided_slice %68 {offsets = [0, 64], sizes = [8, 32], strides = [1, 1]} : vector<8x96xf32> to vector<8x32xf32>
    %74 = arith.mulf %72, %54 : vector<8x32xf32>
    %75 = arith.mulf %71, %70 : vector<8x32xf32>
    %76 = arith.addf %74, %75 : vector<8x32xf32>
    %77 = math.tanh %76 : vector<8x32xf32>
    %78 = arith.mulf %73, %77 : vector<8x32xf32>
    %c3_i32 = arith.constant 3 : i32
    %79 = arith.index_cast %c3_i32 : i32 to index
    %c0_25 = arith.constant 0 : index
    %c0_26 = arith.constant 0 : index
    %80 = vector.load %arg6[%79, %c0_25, %c0_26] : memref<4x8x128xf32, #tpu.memory_space<vmem>>, vector<1x8x128xf32>
    %81 = vector.shape_cast %80 : vector<1x8x128xf32> to vector<8x128xf32>
    %82 = arith.truncf %78 : vector<8x32xf32> to vector<8x32xbf16>
    %cst_27 = arith.constant dense<0.000000e+00> : vector<8x128xf32>
    %83 = tpu.matmul %82, %10, %cst_27 {dimension_numbers = #tpu.dot_dimension_numbers<[1], [0], [0], [1], [0, 0, 1, 1], [], []>} : vector<8x32xbf16>, vector<32x128xbf16>, vector<8x128xf32> -> vector<8x128xf32>
    %84 = arith.addf %81, %83 : vector<8x128xf32>
    %85 = vector.extract_strided_slice %84 {offsets = [0, 0], sizes = [8, 96], strides = [1, 1]} : vector<8x128xf32> to vector<8x96xf32>
    %86 = arith.negf %85 : vector<8x96xf32>
    %87 = math.exp %86 : vector<8x96xf32>
    %cst_28 = arith.constant 1.000000e+00 : f32
    %88 = vector.broadcast %cst_28 : f32 to vector<8x96xf32>
    %89 = arith.addf %88, %87 : vector<8x96xf32>
    %90 = arith.divf %88, %89 : vector<8x96xf32>
    %91 = vector.extract_strided_slice %84 {offsets = [0, 96], sizes = [8, 32], strides = [1, 1]} : vector<8x128xf32> to vector<8x32xf32>
    %92 = math.tanh %91 : vector<8x32xf32>
    %93 = vector.extract_strided_slice %90 {offsets = [0, 0], sizes = [8, 32], strides = [1, 1]} : vector<8x96xf32> to vector<8x32xf32>
    %94 = vector.extract_strided_slice %90 {offsets = [0, 32], sizes = [8, 32], strides = [1, 1]} : vector<8x96xf32> to vector<8x32xf32>
    %95 = vector.extract_strided_slice %90 {offsets = [0, 64], sizes = [8, 32], strides = [1, 1]} : vector<8x96xf32> to vector<8x32xf32>
    %96 = arith.mulf %94, %76 : vector<8x32xf32>
    %97 = arith.mulf %93, %92 : vector<8x32xf32>
    %98 = arith.addf %96, %97 : vector<8x32xf32>
    %99 = math.tanh %98 : vector<8x32xf32>
    %100 = arith.mulf %95, %99 : vector<8x32xf32>
    %c4_i32 = arith.constant 4 : i32
    %c0_29 = arith.constant 0 : index
    %c0_30 = arith.constant 0 : index
    %101 = vector.load %arg5[%c0_29, %c0_30] : memref<8x32xf32, #tpu.memory_space<vmem>>, vector<8x32xf32>
    tpu.vector_store %arg5[%c0_29, %c0_30], %100 {strides = array<i32>} : memref<8x32xf32, #tpu.memory_space<vmem>>, vector<8x32xf32>,
    return
  }
  func.func @transform_0(%arg0: i32) -> (i32, i32, i32) {
    %c0_i32 = arith.constant 0 : i32
    %c0_i32_0 = arith.constant 0 : i32
    %c0_i32_1 = arith.constant 0 : i32
    return %c0_i32, %arg0, %c0_i32_0 : i32, i32, i32
  }
  func.func @transform_1(%arg0: i32) -> (i32, i32) {
    %c0_i32 = arith.constant 0 : i32
    %c0_i32_0 = arith.constant 0 : i32
    %c0_i32_1 = arith.constant 0 : i32
    return %c0_i32, %c0_i32_0 : i32, i32
  }
  func.func @transform_2(%arg0: i32) -> (i32, i32) {
    %c0_i32 = arith.constant 0 : i32
    %c0_i32_0 = arith.constant 0 : i32
    %c0_i32_1 = arith.constant 0 : i32
    return %c0_i32, %c0_i32_0 : i32, i32
  }
  func.func @transform_3(%arg0: i32) -> (i32, i32) {
    %c0_i32 = arith.constant 0 : i32
    %c0_i32_0 = arith.constant 0 : i32
    %c0_i32_1 = arith.constant 0 : i32
    return %c0_i32, %c0_i32_0 : i32, i32
  }
  func.func @transform_4(%arg0: i32) -> (i32, i32) {
    %c0_i32 = arith.constant 0 : i32
    %c0_i32_0 = arith.constant 0 : i32
    return %arg0, %c0_i32 : i32, i32
  }
}

module attributes {stable_mosaic.version = 11 : i64} {
  func.func @tail_kernel(%arg0: i32, %arg1: memref<1x2x51x32xf32, #tpu.memory_space<vmem>>, %arg2: memref<50x32xf32, #tpu.memory_space<vmem>>, %arg3: memref<1x32xf32, #tpu.memory_space<vmem>>, %arg4: memref<32x3xf32, #tpu.memory_space<vmem>>, %arg5: memref<1x3xf32, #tpu.memory_space<vmem>>, %arg6: memref<1x2x3xf32, #tpu.memory_space<vmem>>) attributes {dimension_semantics = [#tpu.dimension_semantics<parallel>], iteration_bounds = array<i64: 2>, scalar_prefetch = 0 : i64, scratch_operands = 0 : i64, tpu.core_type = #tpu.core_type<tc>, window_params = [{transform_indices = @transform_0, window_bounds = array<i64: 1, 2, 51, 32>}, {pipeline_mode = #tpu.pipeline_mode<synchronous>, transform_indices = @transform_1, window_bounds = array<i64: 50, 32>}, {pipeline_mode = #tpu.pipeline_mode<synchronous>, transform_indices = @transform_2, window_bounds = array<i64: 1, 32>}, {pipeline_mode = #tpu.pipeline_mode<synchronous>, transform_indices = @transform_3, window_bounds = array<i64: 32, 3>}, {pipeline_mode = #tpu.pipeline_mode<synchronous>, transform_indices = @transform_4, window_bounds = array<i64: 1, 3>}, {transform_indices = @transform_5, window_bounds = array<i64: 1, 2, 3>}]} {
    %c0 = arith.constant 0 : index
    %c0_0 = arith.constant 0 : index
    %c0_1 = arith.constant 0 : index
    %c0_2 = arith.constant 0 : index
    %0 = vector.load %arg1[%c0, %c0_0, %c0_1, %c0_2] : memref<1x2x51x32xf32, #tpu.memory_space<vmem>>, vector<1x2x51x32xf32>
    %1 = vector.shape_cast %0 : vector<1x2x51x32xf32> to vector<2x51x32xf32>
    %2 = vector.extract_strided_slice %1 {offsets = [0, 0, 0], sizes = [2, 50, 32], strides = [1, 1, 1]} : vector<2x51x32xf32> to vector<2x50x32xf32>
    %3 = vector.extract_strided_slice %1 {offsets = [0, 1, 0], sizes = [2, 50, 32], strides = [1, 1, 1]} : vector<2x51x32xf32> to vector<2x50x32xf32>
    %4 = arith.mulf %2, %3 : vector<2x50x32xf32>
    %cst = arith.constant dense<0.000000e+00> : vector<2x50xf32>
    %5 = vector.multi_reduction <add>, %4, %cst [2] : vector<2x50x32xf32> to vector<2x50xf32>
    %6 = arith.mulf %2, %2 : vector<2x50x32xf32>
    %cst_3 = arith.constant dense<0.000000e+00> : vector<2x50xf32>
    %7 = vector.multi_reduction <add>, %6, %cst_3 [2] : vector<2x50x32xf32> to vector<2x50xf32>
    %8 = math.sqrt %7 : vector<2x50xf32>
    %9 = arith.mulf %3, %3 : vector<2x50x32xf32>
    %cst_4 = arith.constant dense<0.000000e+00> : vector<2x50xf32>
    %10 = vector.multi_reduction <add>, %9, %cst_4 [2] : vector<2x50x32xf32> to vector<2x50xf32>
    %11 = math.sqrt %10 : vector<2x50xf32>
    %12 = arith.mulf %8, %11 : vector<2x50xf32>
    %cst_5 = arith.constant 9.99999993E-9 : f32
    %13 = vector.broadcast %cst_5 : f32 to vector<2x50xf32>
    %14 = arith.maximumf %12, %13 : vector<2x50xf32>
    %15 = arith.divf %5, %14 : vector<2x50xf32>
    %c0_6 = arith.constant 0 : index
    %c0_7 = arith.constant 0 : index
    %16 = vector.load %arg2[%c0_6, %c0_7] : memref<50x32xf32, #tpu.memory_space<vmem>>, vector<50x32xf32>
    %cst_8 = arith.constant dense<0.000000e+00> : vector<2x32xf32>
    %17 = tpu.matmul %15, %16, %cst_8 {dimension_numbers = #tpu.dot_dimension_numbers<[1], [0], [0], [1], [0, 0, 1, 1], [], []>} : vector<2x50xf32>, vector<50x32xf32>, vector<2x32xf32> -> vector<2x32xf32>
    %c0_9 = arith.constant 0 : index
    %c0_10 = arith.constant 0 : index
    %18 = vector.load %arg3[%c0_9, %c0_10] : memref<1x32xf32, #tpu.memory_space<vmem>>, vector<1x32xf32>
    %19 = vector.broadcast %18 : vector<1x32xf32> to vector<2x32xf32>
    %20 = arith.addf %17, %19 : vector<2x32xf32>
    %cst_11 = arith.constant 0.000000e+00 : f32
    %21 = vector.broadcast %cst_11 : f32 to vector<2x32xf32>
    %22 = arith.maximumf %20, %21 : vector<2x32xf32>
    %c0_12 = arith.constant 0 : index
    %c0_13 = arith.constant 0 : index
    %23 = vector.load %arg4[%c0_12, %c0_13] : memref<32x3xf32, #tpu.memory_space<vmem>>, vector<32x3xf32>
    %cst_14 = arith.constant dense<0.000000e+00> : vector<2x3xf32>
    %24 = tpu.matmul %22, %23, %cst_14 {dimension_numbers = #tpu.dot_dimension_numbers<[1], [0], [0], [1], [0, 0, 1, 1], [], []>} : vector<2x32xf32>, vector<32x3xf32>, vector<2x3xf32> -> vector<2x3xf32>
    %c0_15 = arith.constant 0 : index
    %c0_16 = arith.constant 0 : index
    %25 = vector.load %arg5[%c0_15, %c0_16] : memref<1x3xf32, #tpu.memory_space<vmem>>, vector<1x3xf32>
    %26 = vector.broadcast %25 : vector<1x3xf32> to vector<2x3xf32>
    %27 = arith.addf %24, %26 : vector<2x3xf32>
    %cst_17 = arith.constant dense<0xFF800000> : vector<3xf32>
    %28 = vector.multi_reduction <maximumf>, %27, %cst_17 [0] : vector<2x3xf32> to vector<3xf32>
    %29 = vector.shape_cast %28 : vector<3xf32> to vector<1x3xf32>
    %30 = vector.broadcast %29 : vector<1x3xf32> to vector<2x3xf32>
    %31 = arith.subf %27, %30 : vector<2x3xf32>
    %32 = math.exp %31 : vector<2x3xf32>
    %cst_18 = arith.constant dense<0.000000e+00> : vector<3xf32>
    %33 = vector.multi_reduction <add>, %32, %cst_18 [0] : vector<2x3xf32> to vector<3xf32>
    %34 = vector.shape_cast %33 : vector<3xf32> to vector<1x3xf32>
    %35 = vector.broadcast %34 : vector<1x3xf32> to vector<2x3xf32>
    %36 = arith.divf %32, %35 : vector<2x3xf32>
    %c0_19 = arith.constant 0 : index
    %c0_20 = arith.constant 0 : index
    %c0_21 = arith.constant 0 : index
    %37 = vector.load %arg6[%c0_19, %c0_20, %c0_21] : memref<1x2x3xf32, #tpu.memory_space<vmem>>, vector<1x2x3xf32>
    %38 = vector.shape_cast %37 : vector<1x2x3xf32> to vector<2x3xf32>
    %39 = vector.shape_cast %36 : vector<2x3xf32> to vector<1x2x3xf32>
    tpu.vector_store %arg6[%c0_19, %c0_20, %c0_21], %39 {strides = array<i32>} : memref<1x2x3xf32, #tpu.memory_space<vmem>>, vector<1x2x3xf32>,
    return
  }
  func.func @transform_0(%arg0: i32) -> (i32, i32, i32, i32) {
    %c0_i32 = arith.constant 0 : i32
    %c0_i32_0 = arith.constant 0 : i32
    %c0_i32_1 = arith.constant 0 : i32
    %c0_i32_2 = arith.constant 0 : i32
    return %arg0, %c0_i32, %c0_i32_0, %c0_i32_1 : i32, i32, i32, i32
  }
  func.func @transform_1(%arg0: i32) -> (i32, i32) {
    %c0_i32 = arith.constant 0 : i32
    %c0_i32_0 = arith.constant 0 : i32
    %c0_i32_1 = arith.constant 0 : i32
    return %c0_i32, %c0_i32_0 : i32, i32
  }
  func.func @transform_2(%arg0: i32) -> (i32, i32) {
    %c0_i32 = arith.constant 0 : i32
    %c0_i32_0 = arith.constant 0 : i32
    %c0_i32_1 = arith.constant 0 : i32
    return %c0_i32, %c0_i32_0 : i32, i32
  }
  func.func @transform_3(%arg0: i32) -> (i32, i32) {
    %c0_i32 = arith.constant 0 : i32
    %c0_i32_0 = arith.constant 0 : i32
    %c0_i32_1 = arith.constant 0 : i32
    return %c0_i32, %c0_i32_0 : i32, i32
  }
  func.func @transform_4(%arg0: i32) -> (i32, i32) {
    %c0_i32 = arith.constant 0 : i32
    %c0_i32_0 = arith.constant 0 : i32
    %c0_i32_1 = arith.constant 0 : i32
    return %c0_i32, %c0_i32_0 : i32, i32
  }
  func.func @transform_5(%arg0: i32) -> (i32, i32, i32) {
    %c0_i32 = arith.constant 0 : i32
    %c0_i32_0 = arith.constant 0 : i32
    %c0_i32_1 = arith.constant 0 : i32
    return %arg0, %c0_i32, %c0_i32_0 : i32, i32, i32
  }
}

</mosaic_0001>

<llo_original>
// kernel: lstm_semrel_forward.4
$region0: #{lstm_semrel_forward.4}
  #allocation0 [shape = 'u32[]', space=smem, size = 0x4, offset = 0x4, fixed_abs, tag = 'smem constant byte address 0x4 - core index']
  #allocation1 [shape = 'u32[144,128]{1,0:T(1,128)}', space=vmem, size = 0x12000, scoped, tag = 'internal scratch']
  #allocation2 [shape = 'f32[4,8,128]{2,1,0:T(8,128)}', space=vmem, size = 0x4000, scoped, tag = 'scratch operand']
  %s0 = inlined_call_operand.vmem [shape: f32[4,8,32], index: 0, kind: input, shape index: {}]
  %s1 = inlined_call_operand.vmem [shape: bf16[32,128], index: 1, kind: input, shape index: {}]
  %s2 = inlined_call_operand.vmem [shape: bf16[32,128], index: 2, kind: input, shape index: {}]
  %s3 = inlined_call_operand.vmem [shape: f32[1,128], index: 3, kind: input, shape index: {}]
  %s4 = inlined_call_operand.vmem [shape: f32[8,32], index: 4, kind: output, shape index: {}]
  %s5 = sld [smem:[#allocation0]]
  $region26: #{lstm_semrel_forward.4} parent=0
    _
  %s7 = ssub.s32 1, %s5
  %s8 = scalar_select 0, %s7, %s5
  // Predicated region
  $region2: #{lstm_semrel_forward.4} parent=0 // pred_check
    _
  $region3: #{lstm_semrel_forward.4} parent=0 // pred_check_branch
    %10 = sbr.rel (0) target = $region5
  $region4: #{lstm_semrel_forward.4} parent=0 // pred_region
    _
  $region5: #{lstm_semrel_forward.4} parent=0 // pred_fallthru
    _
  // Predicated region
  $region6: #{lstm_semrel_forward.4} parent=0 // pred_check
    _
  $region7: #{lstm_semrel_forward.4} parent=0 // pred_check_branch
    %12 = sbr.rel (0) target = $region9
  $region8: #{lstm_semrel_forward.4} parent=0 // pred_region
    _
  $region9: #{lstm_semrel_forward.4} parent=0 // pred_fallthru
    _
  // Predicated region
  $region10: #{lstm_semrel_forward.4} parent=0 // pred_check
    _
  $region11: #{lstm_semrel_forward.4} parent=0 // pred_check_branch
    %14 = sbr.rel (0) target = $region13
  $region12: #{lstm_semrel_forward.4} parent=0 // pred_region
    _
  $region13: #{lstm_semrel_forward.4} parent=0 // pred_fallthru
    _
  // Predicated region
  $region14: #{lstm_semrel_forward.4} parent=0 // pred_check
    _
  $region15: #{lstm_semrel_forward.4} parent=0 // pred_check_branch
    %16 = sbr.rel (0) target = $region17
  $region16: #{lstm_semrel_forward.4} parent=0 // pred_region
    _
  $region17: #{lstm_semrel_forward.4} parent=0 // pred_fallthru
    _
  %v18 = vld [vmem:[%s0] sm:$0xff]
  %v19 = vld [vmem:[%s0 + $0x8] sm:$0xff]
  %v20 = vld [vmem:[%s0 + $0x10] sm:$0xff]
  %v21 = vld [vmem:[%s0 + $0x18] sm:$0xff]
  %v22 = vpack.c.bf16 %v19, %v18
  %v23 = vpack.c.bf16 %v21, %v20
  %v24 = vld [vmem:[%s1] sm:$0xf]
  %v25 = vld [vmem:[%s1 + $0x4] sm:$0xf]
  %v26 = vld [vmem:[%s1 + $0x8] sm:$0xf]
  %v27 = vld [vmem:[%s1 + $0xc] sm:$0xf]
  %v28 = vld [vmem:[%s3] sm:$0x1]
  %v30 = vlaneseq
  %v31 = vshrl.u32 %v30, 7
  %v32 = vsub.s32 0, %v31
  %v33 = vrot.slane %v28, %v32
  %v39 = vunpack.c.l.b16 %v24
  %v40 = vunpack.c.l.b16 %v25
  %v41 = vunpack.c.l.b16 %v26
  %v42 = vunpack.c.l.b16 %v27
  %v43 = vpack.c.b16 %v40, %v39
  %v44 = vpack.c.b16 %v42, %v41
  %vm47 = vcmask 261120
  %v49 = vsel %vm47, %v22, 0
  %v52 = vsel %vm47, %v23, 0
  %54 = vmatprep.subr.bf16.mxu0 0
  %55 = vmatpush1.bf16.msra.mxu0 0
  %56 = vmatprep.subr.bf16.mxu0 0
  %57 = vmatpush1.bf16.msra.mxu0 0
  %58 = vmatprep.subr.bf16.mxu0 0
  %59 = vmatpush1.bf16.msra.mxu0 0
  %60 = vmatprep.subr.bf16.mxu0 0
  %61 = vmatpush1.bf16.msra.mxu0 0
  %62 = vmatprep.subr.bf16.mxu0 0
  %63 = vmatpush1.bf16.msra.mxu0 0
  %64 = vmatprep.subr.bf16.mxu0 0
  %65 = vmatpush1.bf16.msra.mxu0 0
  %66 = vmatprep.subr.bf16.mxu0 0
  %67 = vmatpush1.bf16.msra.mxu0 %v44
  %68 = vmatprep.subr.bf16.mxu0 0
  %69 = vmatpush1.bf16.msra.mxu0 %v43
  %70 = vmatprep.subr.bf16.mxu0 0
  %71 = vmatpush2.bf16.msra.mxu0 0
  %72 = vmatprep.subr.bf16.mxu0 0
  %73 = vmatpush2.bf16.msra.mxu0 0
  %74 = vmatprep.subr.bf16.mxu0 0
  %75 = vmatpush2.bf16.msra.mxu0 0
  %76 = vmatprep.subr.bf16.mxu0 0
  %77 = vmatpush2.bf16.msra.mxu0 0
  %78 = vmatprep.subr.bf16.mxu0 0
  %79 = vmatpush2.bf16.msra.mxu0 0
  %80 = vmatprep.subr.bf16.mxu0 0
  %81 = vmatpush2.bf16.msra.mxu0 0
  %82 = vmatprep.subr.bf16.mxu0 0
  %83 = vmatpush2.bf16.msra.mxu0 0
  %84 = vmatprep.subr.bf16.mxu0 0
  %85 = vmatpush2.bf16.msra.mxu0 0
  %86 = vmatprep.mubr.bf16.mxu0 0
  %87 = vmatmul.mubr.bf16.gmra.mxu0 %v49
  %v88 = vpop.f32.mrf.mxu0
  %v89 = vadd.f32 %v33, %v88
  %v90 = vpop.f32.mrf.mxu0
  %v91 = vpop.f32.mrf.mxu0
  %v92 = vadd.f32 %v33, %v91
  %v93 = vpop.f32.mrf.mxu0
  %94 = vmatprep.mubr.bf16.mxu0 0
  %95 = vmatmul.mubr.bf16.gmra.mxu0 %v52
  %v96 = vpop.f32.mrf.mxu0
  %v97 = vadd.f32 %v33, %v96
  %v98 = vpop.f32.mrf.mxu0
  %v99 = vpop.f32.mrf.mxu0
  %v100 = vadd.f32 %v33, %v99
  %v101 = vpop.f32.mrf.mxu0
  %102 = vdwg.mxu0
  %103 = vst [vmem:[#allocation2] sm:$0xff] %v89
  %104 = vst [vmem:[#allocation2 + $0x8] sm:$0xff] %v92
  %105 = vst [vmem:[#allocation2 + $0x10] sm:$0xff] %v97
  %106 = vst [vmem:[#allocation2 + $0x18] sm:$0xff] %v100
  %v107 = vld [vmem:[%s2] sm:$0xf]
  %v108 = vld [vmem:[%s2 + $0x4] sm:$0xf]
  %v109 = vld [vmem:[%s2 + $0x8] sm:$0xf]
  %v110 = vld [vmem:[%s2 + $0xc] sm:$0xf]
  %v111 = vld [vmem:[#allocation2] sm:$0xff]
  %v116 = vunpack.c.l.b16 %v107
  %v117 = vunpack.c.l.b16 %v108
  %v118 = vunpack.c.l.b16 %v109
  %v119 = vunpack.c.l.b16 %v110
  %v120 = vpack.c.b16 %v117, %v116
  %v121 = vpack.c.b16 %v119, %v118
  %v125 = vsel %vm47, 0, 0
  %127 = vmatprep.subr.bf16.mxu0 0
  %128 = vmatpush1.bf16.msra.mxu0 0
  %129 = vmatprep.subr.bf16.mxu0 0
  %130 = vmatpush1.bf16.msra.mxu0 0
  %131 = vmatprep.subr.bf16.mxu0 0
  %132 = vmatpush1.bf16.msra.mxu0 0
  %133 = vmatprep.subr.bf16.mxu0 0
  %134 = vmatpush1.bf16.msra.mxu0 0
  %135 = vmatprep.subr.bf16.mxu0 0
  %136 = vmatpush1.bf16.msra.mxu0 0
  %137 = vmatprep.subr.bf16.mxu0 0
  %138 = vmatpush1.bf16.msra.mxu0 0
  %139 = vmatprep.subr.bf16.mxu0 0
  %140 = vmatpush1.bf16.msra.mxu0 %v121
  %141 = vmatprep.subr.bf16.mxu0 0
  %142 = vmatpush1.bf16.msra.mxu0 %v120
  %143 = vmatprep.subr.bf16.mxu0 0
  %144 = vmatpush2.bf16.msra.mxu0 0
  %145 = vmatprep.subr.bf16.mxu0 0
  %146 = vmatpush2.bf16.msra.mxu0 0
  %147 = vmatprep.subr.bf16.mxu0 0
  %148 = vmatpush2.bf16.msra.mxu0 0
  %149 = vmatprep.subr.bf16.mxu0 0
  %150 = vmatpush2.bf16.msra.mxu0 0
  %151 = vmatprep.subr.bf16.mxu0 0
  %152 = vmatpush2.bf16.msra.mxu0 0
  %153 = vmatprep.subr.bf16.mxu0 0
  %154 = vmatpush2.bf16.msra.mxu0 0
  %155 = vmatprep.subr.bf16.mxu0 0
  %156 = vmatpush2.bf16.msra.mxu0 0
  %157 = vmatprep.subr.bf16.mxu0 0
  %158 = vmatpush2.bf16.msra.mxu0 0
  %159 = vmatprep.mubr.bf16.mxu0 0
  %160 = vmatmul.mubr.bf16.gmra.mxu0 %v125
  %v161 = vpop.f32.mrf.mxu0
  %v162 = vadd.f32 0.0, %v161
  %v163 = vpop.f32.mrf.mxu0
  %v164 = vpop.f32.mrf.mxu0
  %v165 = vpop.f32.mrf.mxu0
  %166 = vdwg.mxu0
  %v167 = vadd.f32 %v111, %v162
  %v168 = vxor.u32 %v167, 2147483648
  %v169 = vmul.f32 %v168, 1.442695
  %v170 = vpow.pop %v169
  %v171 = vadd.f32 %v170, 1.0
  %v172 = vrcp.pop %v171
  %v173 = vmul.f32 1.0, %v172
  %v174 = vtanh.pop %v167
  %v175 = vmul.f32 %v173, 0.0
  %177 = vrot.lane.b32.xlu0 %v174, 32
  %v178 = vpop.permute.xlu0 %177
  %v180 = vmul.f32 %v173, %v178
  %182 = vrot.lane.b32.xlu0 %v180, 32
  %v183 = vpop.permute.xlu0 %182
  %v185 = vadd.f32 %v175, %v183
  %v186 = vtanh.pop %v185
  %188 = vrot.lane.b32.xlu0 %v186, 32
  %v189 = vpop.permute.xlu0 %188
  %v191 = vmul.f32 %v173, %v189
  %s192 = scalar_lea.vmem [#allocation2], 8
  %v193 = vld [vmem:[%s192] sm:$0xff]
  %v194 = vpack.c.bf16 %v191, %v191
  %196 = vrot.lane.b32.xlu0 %v194, 64
  %v197 = vpop.permute.xlu0 %196
  %v199 = vsel %vm47, %v197, 0
  %201 = vmatprep.subr.bf16.mxu0 0
  %202 = vmatpush1.bf16.msra.mxu0 0
  %203 = vmatprep.subr.bf16.mxu0 0
  %204 = vmatpush1.bf16.msra.mxu0 0
  %205 = vmatprep.subr.bf16.mxu0 0
  %206 = vmatpush1.bf16.msra.mxu0 0
  %207 = vmatprep.subr.bf16.mxu0 0
  %208 = vmatpush1.bf16.msra.mxu0 0
  %209 = vmatprep.subr.bf16.mxu0 0
  %210 = vmatpush1.bf16.msra.mxu0 0
  %211 = vmatprep.subr.bf16.mxu0 0
  %212 = vmatpush1.bf16.msra.mxu0 0
  %213 = vmatprep.subr.bf16.mxu0 0
  %214 = vmatpush1.bf16.msra.mxu0 %v121
  %215 = vmatprep.subr.bf16.mxu0 0
  %216 = vmatpush1.bf16.msra.mxu0 %v120
  %217 = vmatprep.subr.bf16.mxu0 0
  %218 = vmatpush2.bf16.msra.mxu0 0
  %219 = vmatprep.subr.bf16.mxu0 0
  %220 = vmatpush2.bf16.msra.mxu0 0
  %221 = vmatprep.subr.bf16.mxu0 0
  %222 = vmatpush2.bf16.msra.mxu0 0
  %223 = vmatprep.subr.bf16.mxu0 0
  %224 = vmatpush2.bf16.msra.mxu0 0
  %225 = vmatprep.subr.bf16.mxu0 0
  %226 = vmatpush2.bf16.msra.mxu0 0
  %227 = vmatprep.subr.bf16.mxu0 0
  %228 = vmatpush2.bf16.msra.mxu0 0
  %229 = vmatprep.subr.bf16.mxu0 0
  %230 = vmatpush2.bf16.msra.mxu0 0
  %231 = vmatprep.subr.bf16.mxu0 0
  %232 = vmatpush2.bf16.msra.mxu0 0
  %233 = vmatprep.mubr.bf16.mxu0 0
  %234 = vmatmul.mubr.bf16.gmra.mxu0 %v199
  %v235 = vpop.f32.mrf.mxu0
  %v236 = vadd.f32 0.0, %v235
  %v237 = vpop.f32.mrf.mxu0
  %v238 = vpop.f32.mrf.mxu0
  %v239 = vpop.f32.mrf.mxu0
  %240 = vdwg.mxu0
  %v241 = vadd.f32 %v193, %v236
  %v242 = vxor.u32 %v241, 2147483648
  %v243 = vmul.f32 %v242, 1.442695
  %v244 = vpow.pop %v243
  %v245 = vadd.f32 %v244, 1.0
  %v246 = vrcp.pop %v245
  %v247 = vmul.f32 1.0, %v246
  %v248 = vtanh.pop %v241
  %v249 = vmul.f32 %v247, %v185
  %251 = vrot.lane.b32.xlu0 %v248, 32
  %v252 = vpop.permute.xlu0 %251
  %v254 = vmul.f32 %v247, %v252
  %256 = vrot.lane.b32.xlu0 %v254, 32
  %v257 = vpop.permute.xlu0 %256
  %v259 = vadd.f32 %v249, %v257
  %v260 = vtanh.pop %v259
  %262 = vrot.lane.b32.xlu0 %v260, 32
  %v263 = vpop.permute.xlu0 %262
  %v265 = vmul.f32 %v247, %v263
  %s266 = scalar_lea.vmem [#allocation2], 16
  %v267 = vld [vmem:[%s266] sm:$0xff]
  %v268 = vpack.c.bf16 %v265, %v265
  %270 = vrot.lane.b32.xlu0 %v268, 64
  %v271 = vpop.permute.xlu0 %270
  %v273 = vsel %vm47, %v271, 0
  %275 = vmatprep.subr.bf16.mxu0 0
  %276 = vmatpush1.bf16.msra.mxu0 0
  %277 = vmatprep.subr.bf16.mxu0 0
  %278 = vmatpush1.bf16.msra.mxu0 0
  %279 = vmatprep.subr.bf16.mxu0 0
  %280 = vmatpush1.bf16.msra.mxu0 0
  %281 = vmatprep.subr.bf16.mxu0 0
  %282 = vmatpush1.bf16.msra.mxu0 0
  %283 = vmatprep.subr.bf16.mxu0 0
  %284 = vmatpush1.bf16.msra.mxu0 0
  %285 = vmatprep.subr.bf16.mxu0 0
  %286 = vmatpush1.bf16.msra.mxu0 0
  %287 = vmatprep.subr.bf16.mxu0 0
  %288 = vmatpush1.bf16.msra.mxu0 %v121
  %289 = vmatprep.subr.bf16.mxu0 0
  %290 = vmatpush1.bf16.msra.mxu0 %v120
  %291 = vmatprep.subr.bf16.mxu0 0
  %292 = vmatpush2.bf16.msra.mxu0 0
  %293 = vmatprep.subr.bf16.mxu0 0
  %294 = vmatpush2.bf16.msra.mxu0 0
  %295 = vmatprep.subr.bf16.mxu0 0
  %296 = vmatpush2.bf16.msra.mxu0 0
  %297 = vmatprep.subr.bf16.mxu0 0
  %298 = vmatpush2.bf16.msra.mxu0 0
  %299 = vmatprep.subr.bf16.mxu0 0
  %300 = vmatpush2.bf16.msra.mxu0 0
  %301 = vmatprep.subr.bf16.mxu0 0
  %302 = vmatpush2.bf16.msra.mxu0 0
  %303 = vmatprep.subr.bf16.mxu0 0
  %304 = vmatpush2.bf16.msra.mxu0 0
  %305 = vmatprep.subr.bf16.mxu0 0
  %306 = vmatpush2.bf16.msra.mxu0 0
  %307 = vmatprep.mubr.bf16.mxu0 0
  %308 = vmatmul.mubr.bf16.gmra.mxu0 %v273
  %v309 = vpop.f32.mrf.mxu0
  %v310 = vadd.f32 0.0, %v309
  %v311 = vpop.f32.mrf.mxu0
  %v312 = vpop.f32.mrf.mxu0
  %v313 = vpop.f32.mrf.mxu0
  %314 = vdwg.mxu0
  %v315 = vadd.f32 %v267, %v310
  %v316 = vxor.u32 %v315, 2147483648
  %v317 = vmul.f32 %v316, 1.442695
  %v318 = vpow.pop %v317
  %v319 = vadd.f32 %v318, 1.0
  %v320 = vrcp.pop %v319
  %v321 = vmul.f32 1.0, %v320
  %v322 = vtanh.pop %v315
  %v323 = vmul.f32 %v321, %v259
  %325 = vrot.lane.b32.xlu0 %v322, 32
  %v326 = vpop.permute.xlu0 %325
  %v328 = vmul.f32 %v321, %v326
  %330 = vrot.lane.b32.xlu0 %v328, 32
  %v331 = vpop.permute.xlu0 %330
  %v333 = vadd.f32 %v323, %v331
  %v334 = vtanh.pop %v333
  %336 = vrot.lane.b32.xlu0 %v334, 32
  %v337 = vpop.permute.xlu0 %336
  %v339 = vmul.f32 %v321, %v337
  %s340 = scalar_lea.vmem [#allocation2], 24
  %v341 = vld [vmem:[%s340] sm:$0xff]
  %v342 = vpack.c.bf16 %v339, %v339
  %344 = vrot.lane.b32.xlu0 %v342, 64
  %v345 = vpop.permute.xlu0 %344
  %v347 = vsel %vm47, %v345, 0
  %349 = vmatprep.subr.bf16.mxu0 0
  %350 = vmatpush1.bf16.msra.mxu0 0
  %351 = vmatprep.subr.bf16.mxu0 0
  %352 = vmatpush1.bf16.msra.mxu0 0
  %353 = vmatprep.subr.bf16.mxu0 0
  %354 = vmatpush1.bf16.msra.mxu0 0
  %355 = vmatprep.subr.bf16.mxu0 0
  %356 = vmatpush1.bf16.msra.mxu0 0
  %357 = vmatprep.subr.bf16.mxu0 0
  %358 = vmatpush1.bf16.msra.mxu0 0
  %359 = vmatprep.subr.bf16.mxu0 0
  %360 = vmatpush1.bf16.msra.mxu0 0
  %361 = vmatprep.subr.bf16.mxu0 0
  %362 = vmatpush1.bf16.msra.mxu0 %v121
  %363 = vmatprep.subr.bf16.mxu0 0
  %364 = vmatpush1.bf16.msra.mxu0 %v120
  %365 = vmatprep.subr.bf16.mxu0 0
  %366 = vmatpush2.bf16.msra.mxu0 0
  %367 = vmatprep.subr.bf16.mxu0 0
  %368 = vmatpush2.bf16.msra.mxu0 0
  %369 = vmatprep.subr.bf16.mxu0 0
  %370 = vmatpush2.bf16.msra.mxu0 0
  %371 = vmatprep.subr.bf16.mxu0 0
  %372 = vmatpush2.bf16.msra.mxu0 0
  %373 = vmatprep.subr.bf16.mxu0 0
  %374 = vmatpush2.bf16.msra.mxu0 0
  %375 = vmatprep.subr.bf16.mxu0 0
  %376 = vmatpush2.bf16.msra.mxu0 0
  %377 = vmatprep.subr.bf16.mxu0 0
  %378 = vmatpush2.bf16.msra.mxu0 0
  %379 = vmatprep.subr.bf16.mxu0 0
  %380 = vmatpush2.bf16.msra.mxu0 0
  %381 = vmatprep.mubr.bf16.mxu0 0
  %382 = vmatmul.mubr.bf16.gmra.mxu0 %v347
  %v383 = vpop.f32.mrf.mxu0
  %v384 = vadd.f32 0.0, %v383
  %v385 = vpop.f32.mrf.mxu0
  %v386 = vpop.f32.mrf.mxu0
  %v387 = vpop.f32.mrf.mxu0
  %388 = vdwg.mxu0
  %v389 = vadd.f32 %v341, %v384
  %v390 = vxor.u32 %v389, 2147483648
  %v391 = vmul.f32 %v390, 1.442695
  %v392 = vpow.pop %v391
  %v393 = vadd.f32 %v392, 1.0
  %v394 = vrcp.pop %v393
  %v395 = vmul.f32 1.0, %v394
  %v396 = vtanh.pop %v389
  %v397 = vmul.f32 %v395, %v333
  %399 = vrot.lane.b32.xlu0 %v396, 32
  %v400 = vpop.permute.xlu0 %399
  %v402 = vmul.f32 %v395, %v400
  %404 = vrot.lane.b32.xlu0 %v402, 32
  %v405 = vpop.permute.xlu0 %404
  %v407 = vadd.f32 %v397, %v405
  %v408 = vtanh.pop %v407
  %410 = vrot.lane.b32.xlu0 %v408, 32
  %v411 = vpop.permute.xlu0 %410
  %v413 = vmul.f32 %v395, %v411
  %415 = vrot.lane.b32.xlu0 %v413, 64
  %v416 = vpop.permute.xlu0 %415
  %418 = vst.msk [vmem:[%s4] sm:$0xff] %vm47, %v416
  // Predicated region
  $region18: #{lstm_semrel_forward.4} parent=0 // pred_check
    _
  $region19: #{lstm_semrel_forward.4} parent=0 // pred_check_branch
    %420 = sbr.rel (0) target = $region21
  $region20: #{lstm_semrel_forward.4} parent=0 // pred_region
    _
  $region21: #{lstm_semrel_forward.4} parent=0 // pred_fallthru
    _
  // Predicated region
  $region22: #{lstm_semrel_forward.4} parent=0 // pred_check
    _
  $region23: #{lstm_semrel_forward.4} parent=0 // pred_check_branch
    %422 = sbr.rel (0) target = $region25
  $region24: #{lstm_semrel_forward.4} parent=0 // pred_region
    _
  $region25: #{lstm_semrel_forward.4} parent=0 // pred_fallthru
    _

// kernel: lstm_semrel_forward.3
$region0: #{lstm_semrel_forward.3}
  #allocation0 [shape = 'u32[]', space=smem, size = 0x4, offset = 0x4, fixed_abs, tag = 'smem constant byte address 0x4 - core index']
  #allocation1 [shape = 'u32[144,128]{1,0:T(1,128)}', space=vmem, size = 0x12000, scoped, tag = 'internal scratch']
  #allocation2 [shape = 'f32[8,8,128]{2,1,0:T(8,128)}', space=vmem, size = 0x8000, scoped, tag = 'scratch operand']
  %s0 = inlined_call_operand.vmem [shape: f32[8,16,32], index: 0, kind: input, shape index: {}]
  %s1 = inlined_call_operand.vmem [shape: s32[16,1], index: 1, kind: input, shape index: {}]
  %s2 = inlined_call_operand.vmem [shape: bf16[32,128], index: 2, kind: input, shape index: {}]
  %s3 = inlined_call_operand.vmem [shape: bf16[32,128], index: 3, kind: input, shape index: {}]
  %s4 = inlined_call_operand.vmem [shape: f32[1,128], index: 4, kind: input, shape index: {}]
  %s5 = inlined_call_operand.vmem [shape: f32[16,32], index: 5, kind: output, shape index: {}]
  %s6 = sld [smem:[#allocation0]]
  $region91: #{lstm_semrel_forward.3} parent=0
    _
  %s8 = ssub.s32 1, %s6
  %s9 = scalar_select 0, %s8, %s6
  $region1: #{lstm_semrel_forward.3} parent=0
    #allocation3 [shape = 'u8[65536]{0}', space=vmem, size = 0x10000, scoped, tag = 'input window, operand 0']
    loop: start=0, step=1, limit=4
    $region2: #{lstm_semrel_forward.3} parent=1 // loop_pre_header
      _
    $region3: #{lstm_semrel_forward.3} parent=1 // loop_header
      %s11 = sphi 0, %s15
      %p12 = scmp.ge.s32.totalorder %s11, 4
      %s21 = sphi 0, %s23
      %s24 = sphi 0, %s21
      %s25 = sphi 0, %s24
      %s41 = sphi 0, %s25
      %s47 = sphi 0, %s49
      %s50 = sphi 0, %s47
      %s51 = sphi 0, %s50
      %s67 = sphi 0, %s51
      %s71 = sphi 0, %s71
      %s73 = sphi 0, %s71
      %s74 = sphi 0, %s73
      %s88 = sphi 0, %s74
      %s92 = sphi 0, %s92
      %s94 = sphi 0, %s92
      %s95 = sphi 0, %s94
      %s109 = sphi 0, %s95
      %s113 = sphi 0, %s113
      %s115 = sphi 0, %s113
      %s116 = sphi 0, %s115
      %s130 = sphi 0, %s116
      %s136 = sphi 0, %s138
      %s139 = sphi 0, %s136
      %s140 = sphi 0, %s139
      %s156 = sphi 0, %s140
    $region4: #{lstm_semrel_forward.3} parent=1 // loop_header_branch
      %14 = sbr.rel (%p12) target = $region8
    $region5: #{lstm_semrel_forward.3} parent=1 // loop_body
      %s16 = ssub.s32 %s11, 1
      %s17 = ssub.s32 %s11, 2
      %s18 = sadd.s32 %s11, 1
      %s19 = ssub.s32 %s11, %s18
      %p20 = scmp.eq.s32.totalorder %s19, 0
      %s22 = sadd.s32 %s21, 1
      %s23 = scalar_select %p20, %s21, %s22
      %p26 = pneg %p20
      %p27 = scmp.eq.s32.totalorder %s11, 1
      %p28 = por %p26, %p27
      %p29 = scmp.ne.s32.totalorder %s21, %s24
      %p30 = scmp.eq.s32.totalorder %s11, 0
      %p31 = por %p29, %p30
      %p32 = scmp.ne.s32.totalorder %s21, %s24
      %p33 = scmp.eq.s32.totalorder %s16, 1
      %p34 = por %p32, %p33
      %p35 = scmp.ne.s32.totalorder %s24, %s25
      %p36 = scmp.eq.s32.totalorder %s16, 0
      %p37 = por %p35, %p36
      %p38 = scmp.ne.s32.totalorder %s24, %s25
      %p39 = scmp.eq.s32.totalorder %s17, 1
      %p40 = por %p38, %p39
      %p42 = scmp.ne.s32.totalorder %s25, %s41
      %p43 = scmp.eq.s32.totalorder %s17, 0
      %p44 = por %p42, %p43
      %s45 = ssub.s32 %s11, %s18
      %p46 = scmp.eq.s32.totalorder %s45, 0
      %s48 = sadd.s32 %s47, 1
      %s49 = scalar_select %p46, %s47, %s48
      %p52 = pneg %p46
      %p53 = scmp.eq.s32.totalorder %s11, 1
      %p54 = por %p52, %p53
      %p55 = scmp.ne.s32.totalorder %s47, %s50
      %p56 = scmp.eq.s32.totalorder %s11, 0
      %p57 = por %p55, %p56
      %p58 = scmp.ne.s32.totalorder %s47, %s50
      %p59 = scmp.eq.s32.totalorder %s16, 1
      %p60 = por %p58, %p59
      %p61 = scmp.ne.s32.totalorder %s50, %s51
      %p62 = scmp.eq.s32.totalorder %s16, 0
      %p63 = por %p61, %p62
      %p64 = scmp.ne.s32.totalorder %s50, %s51
      %p65 = scmp.eq.s32.totalorder %s17, 1
      %p66 = por %p64, %p65
      %p68 = scmp.ne.s32.totalorder %s51, %s67
      %p69 = scmp.eq.s32.totalorder %s17, 0
      %p70 = por %p68, %p69
      %s72 = sadd.s32 %s71, 1
      %p75 = scmp.eq.s32.totalorder %s11, 1
      %p76 = scmp.ne.s32.totalorder %s71, %s73
      %p77 = scmp.eq.s32.totalorder %s11, 0
      %p78 = por %p76, %p77
      %p79 = scmp.ne.s32.totalorder %s71, %s73
      %p80 = scmp.eq.s32.totalorder %s16, 1
      %p81 = por %p79, %p80
      %p82 = scmp.ne.s32.totalorder %s73, %s74
      %p83 = scmp.eq.s32.totalorder %s16, 0
      %p84 = por %p82, %p83
      %p85 = scmp.ne.s32.totalorder %s73, %s74
      %p86 = scmp.eq.s32.totalorder %s17, 1
      %p87 = por %p85, %p86
      %p89 = scmp.ne.s32.totalorder %s74, %s88
      %p90 = scmp.eq.s32.totalorder %s17, 0
      %p91 = por %p89, %p90
      %s93 = sadd.s32 %s92, 1
      %p96 = scmp.eq.s32.totalorder %s11, 1
      %p97 = scmp.ne.s32.totalorder %s92, %s94
      %p98 = scmp.eq.s32.totalorder %s11, 0
      %p99 = por %p97, %p98
      %p100 = scmp.ne.s32.totalorder %s92, %s94
      %p101 = scmp.eq.s32.totalorder %s16, 1
      %p102 = por %p100, %p101
      %p103 = scmp.ne.s32.totalorder %s94, %s95
      %p104 = scmp.eq.s32.totalorder %s16, 0
      %p105 = por %p103, %p104
      %p106 = scmp.ne.s32.totalorder %s94, %s95
      %p107 = scmp.eq.s32.totalorder %s17, 1
      %p108 = por %p106, %p107
      %p110 = scmp.ne.s32.totalorder %s95, %s109
      %p111 = scmp.eq.s32.totalorder %s17, 0
      %p112 = por %p110, %p111
      %s114 = sadd.s32 %s113, 1
      %p117 = scmp.eq.s32.totalorder %s11, 1
      %p118 = scmp.ne.s32.totalorder %s113, %s115
      %p119 = scmp.eq.s32.totalorder %s11, 0
      %p120 = por %p118, %p119
      %p121 = scmp.ne.s32.totalorder %s113, %s115
      %p122 = scmp.eq.s32.totalorder %s16, 1
      %p123 = por %p121, %p122
      %p124 = scmp.ne.s32.totalorder %s115, %s116
      %p125 = scmp.eq.s32.totalorder %s16, 0
      %p126 = por %p124, %p125
      %p127 = scmp.ne.s32.totalorder %s115, %s116
      %p128 = scmp.eq.s32.totalorder %s17, 1
      %p129 = por %p127, %p128
      %p131 = scmp.ne.s32.totalorder %s116, %s130
      %p132 = scmp.eq.s32.totalorder %s17, 0
      %p133 = por %p131, %p132
      %s134 = ssub.s32 %s11, %s18
      %p135 = scmp.eq.s32.totalorder %s134, 0
      %s137 = sadd.s32 %s136, 1
      %s138 = scalar_select %p135, %s136, %s137
      %p141 = pneg %p135
      %p142 = scmp.eq.s32.totalorder %s11, 1
      %p143 = por %p141, %p142
      %p144 = scmp.ne.s32.totalorder %s136, %s139
      %p145 = scmp.eq.s32.totalorder %s11, 0
      %p146 = por %p144, %p145
      %p147 = scmp.ne.s32.totalorder %s136, %s139
      %p148 = scmp.eq.s32.totalorder %s16, 1
      %p149 = por %p147, %p148
      %p150 = scmp.ne.s32.totalorder %s139, %s140
      %p151 = scmp.eq.s32.totalorder %s16, 0
      %p152 = por %p150, %p151
      %p153 = scmp.ne.s32.totalorder %s139, %s140
      %p154 = scmp.eq.s32.totalorder %s17, 1
      %p155 = por %p153, %p154
      %p157 = scmp.ne.s32.totalorder %s140, %s156
      %p158 = scmp.eq.s32.totalorder %s17, 0
      %p159 = por %p157, %p158
      %p160 = scmp.le.s32.totalorder 1, %s11
      %p161 = scmp.lt.s32.totalorder %s11, 3
      %p162 = pnand %p160, %p161
      %p163 = pneg %p162
      // Predicated region
      $region9: #{lstm_semrel_forward.3} parent=5 // pred_check
        _
      $region10: #{lstm_semrel_forward.3} parent=5 // pred_check_branch
        %165 = sbr.rel (%p162) target = $region12
      $region11: #{lstm_semrel_forward.3} parent=5 // pred_region
        %s166 = ssub.s32 %s11, 1
        // Predicated region
        $region13: #{lstm_semrel_forward.3} parent=11 // pred_check
          %p167 = pneg %p84
        $region14: #{lstm_semrel_forward.3} parent=11 // pred_check_branch
          %169 = sbr.rel (%p167) target = $region16
        $region15: #{lstm_semrel_forward.3} parent=11 // pred_region
          _
        $region16: #{lstm_semrel_forward.3} parent=11 // pred_fallthru
          _
        // Predicated region
        $region17: #{lstm_semrel_forward.3} parent=11 // pred_check
          %p170 = pneg %p105
        $region18: #{lstm_semrel_forward.3} parent=11 // pred_check_branch
          %172 = sbr.rel (%p170) target = $region20
        $region19: #{lstm_semrel_forward.3} parent=11 // pred_region
          _
        $region20: #{lstm_semrel_forward.3} parent=11 // pred_fallthru
          _
        // Predicated region
        $region21: #{lstm_semrel_forward.3} parent=11 // pred_check
          %p173 = pneg %p126
        $region22: #{lstm_semrel_forward.3} parent=11 // pred_check_branch
          %175 = sbr.rel (%p173) target = $region24
        $region23: #{lstm_semrel_forward.3} parent=11 // pred_region
          _
        $region24: #{lstm_semrel_forward.3} parent=11 // pred_fallthru
          _
      $region12: #{lstm_semrel_forward.3} parent=5 // pred_fallthru
        _
      %p176 = scmp.lt.s32.totalorder %s11, 2
      // Predicated region
      $region25: #{lstm_semrel_forward.3} parent=5 // pred_check
        %p177 = pneg %p176
      $region26: #{lstm_semrel_forward.3} parent=5 // pred_check_branch
        %179 = sbr.rel (%p177) target = $region28
      $region27: #{lstm_semrel_forward.3} parent=5 // pred_region
        // Predicated region
        $region29: #{lstm_semrel_forward.3} parent=27 // pred_check
          %p180 = pneg %p31
        $region30: #{lstm_semrel_forward.3} parent=27 // pred_check_branch
          %182 = sbr.rel (%p180) target = $region32
        $region31: #{lstm_semrel_forward.3} parent=27 // pred_region
          %s183 = sand.u32 %s21, 1
          %s184 = sand.u32 %s21, 1
          %s185 = smul.addr %s184, 64
          %s186 = scalar_lea.vmem [#allocation3], %s185
          %s187 = smul.addr %s11, 8
          %s188 = scalar_lea.vmem %s0, %s187
          // Predicated region
          $region33: #{lstm_semrel_forward.3} parent=31 // pred_check
            _
          $region34: #{lstm_semrel_forward.3} parent=31 // pred_check_branch
            %190 = sbr.rel (0) target = $region36
          $region35: #{lstm_semrel_forward.3} parent=31 // pred_region
            // Predicated region
            $region37: #{lstm_semrel_forward.3} parent=35 // pred_check
              _
            $region38: #{lstm_semrel_forward.3} parent=35 // pred_check_branch
              %192 = sbr.rel (0) target = $region40
            $region39: #{lstm_semrel_forward.3} parent=35 // pred_region
              // Predicated region
              $region52: #{lstm_semrel_forward.3} parent=39 // pred_check
                _
              $region53: #{lstm_semrel_forward.3} parent=39 // pred_check_branch
                %222 = sbr.rel (0) target = $region55
              $region54: #{lstm_semrel_forward.3} parent=39 // pred_region
                loop: start=0, step=1, limit=1
                $region56: #{lstm_semrel_forward.3} parent=54 // loop_pre_header
                  _
                $region57: #{lstm_semrel_forward.3} parent=54 // loop_header
                  %s224 = sphi 0, %s228
                  %p225 = scmp.ge.s32.totalorder %s224, 1
                  %s229 = sphi %s188, %s188
                  %s230 = sphi %s186, %s186
                $region58: #{lstm_semrel_forward.3} parent=54 // loop_header_branch
                  %227 = sbr.rel (%p225) target = $region62
                $region59: #{lstm_semrel_forward.3} parent=54 // loop_body
                  %v231 = vld [vmem:[%s229] sm:$0xff]
                  %232 = vst [vmem:[%s230] sm:$0xff] %v231
                  %v233 = vld [vmem:[%s229 + $0x10] sm:$0xff]
                  %234 = vst [vmem:[%s230 + $0x8] sm:$0xff] %v233
                  %v235 = vld [vmem:[%s229 + $0x20] sm:$0xff]
                  %236 = vst [vmem:[%s230 + $0x10] sm:$0xff] %v235
                  %v237 = vld [vmem:[%s229 + $0x30] sm:$0xff]
                  %238 = vst [vmem:[%s230 + $0x18] sm:$0xff] %v237
                  %v239 = vld [vmem:[%s229 + $0x40] sm:$0xff]
                  %240 = vst [vmem:[%s230 + $0x20] sm:$0xff] %v239
                  %v241 = vld [vmem:[%s229 + $0x50] sm:$0xff]
                  %242 = vst [vmem:[%s230 + $0x28] sm:$0xff] %v241
                  %v243 = vld [vmem:[%s229 + $0x60] sm:$0xff]
                  %244 = vst [vmem:[%s230 + $0x30] sm:$0xff] %v243
                  %v245 = vld [vmem:[%s229 + $0x70] sm:$0xff]
                  %246 = vst [vmem:[%s230 + $0x38] sm:$0xff] %v245
                $region60: #{lstm_semrel_forward.3} parent=54 // loop_footer
                  %s228 = sadd.s32 1, %s224
                $region61: #{lstm_semrel_forward.3} parent=54 // loop_footer_branch
                  %223 = sbr.rel target = $region57
                $region62: #{lstm_semrel_forward.3} parent=54 // loop_exit
                  _
              $region55: #{lstm_semrel_forward.3} parent=39 // pred_fallthru
                _
              // Predicated region
              $region63: #{lstm_semrel_forward.3} parent=39 // pred_check
                _
              $region64: #{lstm_semrel_forward.3} parent=39 // pred_check_branch
                %248 = sbr.rel target = $region66
              $region65: #{lstm_semrel_forward.3} parent=39 // pred_region
                _
              $region66: #{lstm_semrel_forward.3} parent=39 // pred_fallthru
                _
            $region40: #{lstm_semrel_forward.3} parent=35 // pred_fallthru
              _
            // Predicated region
            $region41: #{lstm_semrel_forward.3} parent=35 // pred_check
              _
            $region42: #{lstm_semrel_forward.3} parent=35 // pred_check_branch
              %194 = sbr.rel target = $region44
            $region43: #{lstm_semrel_forward.3} parent=35 // pred_region
              %s196 = ssub.s32 256, 1
              loop: start=0, step=1, limit=1
              $region45: #{lstm_semrel_forward.3} parent=43 // loop_pre_header
                _
              $region46: #{lstm_semrel_forward.3} parent=43 // loop_header
                %s198 = sphi 0, %s202
                %p199 = scmp.ge.s32.totalorder %s198, 1
                %s203 = sphi %s188, %s188
                %s204 = sphi %s186, %s186
              $region47: #{lstm_semrel_forward.3} parent=43 // loop_header_branch
                %201 = sbr.rel (%p199) target = $region51
              $region48: #{lstm_semrel_forward.3} parent=43 // loop_body
                %v205 = vld [vmem:[%s203] sm:%s196]
                %206 = vst [vmem:[%s204] sm:%s196] %v205
                %v207 = vld [vmem:[%s203 + $0x10] sm:%s196]
                %208 = vst [vmem:[%s204 + $0x8] sm:%s196] %v207
                %v209 = vld [vmem:[%s203 + $0x20] sm:%s196]
                %210 = vst [vmem:[%s204 + $0x10] sm:%s196] %v209
                %v211 = vld [vmem:[%s203 + $0x30] sm:%s196]
                %212 = vst [vmem:[%s204 + $0x18] sm:%s196] %v211
                %v213 = vld [vmem:[%s203 + $0x40] sm:%s196]
                %214 = vst [vmem:[%s204 + $0x20] sm:%s196] %v213
                %v215 = vld [vmem:[%s203 + $0x50] sm:%s196]
                %216 = vst [vmem:[%s204 + $0x28] sm:%s196] %v215
                %v217 = vld [vmem:[%s203 + $0x60] sm:%s196]
                %218 = vst [vmem:[%s204 + $0x30] sm:%s196] %v217
                %v219 = vld [vmem:[%s203 + $0x70] sm:%s196]
                %220 = vst [vmem:[%s204 + $0x38] sm:%s196] %v219
              $region49: #{lstm_semrel_forward.3} parent=43 // loop_footer
                %s202 = sadd.s32 1, %s198
              $region50: #{lstm_semrel_forward.3} parent=43 // loop_footer_branch
                %197 = sbr.rel target = $region46
              $region51: #{lstm_semrel_forward.3} parent=43 // loop_exit
                _
            $region44: #{lstm_semrel_forward.3} parent=35 // pred_fallthru
              _
          $region36: #{lstm_semrel_forward.3} parent=31 // pred_fallthru
            _
          %249 = vnop
        $region32: #{lstm_semrel_forward.3} parent=27 // pred_fallthru
          _
        // Predicated region
        $region67: #{lstm_semrel_forward.3} parent=27 // pred_check
          %p250 = pneg %p57
        $region68: #{lstm_semrel_forward.3} parent=27 // pred_check_branch
          %252 = sbr.rel (%p250) target = $region70
        $region69: #{lstm_semrel_forward.3} parent=27 // pred_region
          %p253 = scmp.lt.s32.totalorder %s11, 1
          %s254 = scalar_select %p253, %s11, 1
          %s255 = smul.addr %s254, 8
          %s256 = scalar_lea.vmem %s1, %s255
        $region70: #{lstm_semrel_forward.3} parent=27 // pred_fallthru
          _
      $region28: #{lstm_semrel_forward.3} parent=5 // pred_fallthru
        _
      %p257 = scmp.le.s32.totalorder 1, %s11
      %p258 = scmp.lt.s32.totalorder %s11, 3
      %p259 = pnand %p257, %p258
      %p260 = pneg %p259
      // Predicated region
      $region71: #{lstm_semrel_forward.3} parent=5 // pred_check
        _
      $region72: #{lstm_semrel_forward.3} parent=5 // pred_check_branch
        %262 = sbr.rel (%p259) target = $region74
      $region73: #{lstm_semrel_forward.3} parent=5 // pred_region
        %s263 = ssub.s32 %s11, 1
        %s264 = sand.u32 %s24, 1
        %s265 = sand.u32 %s24, 1
        %s266 = smul.addr %s265, 64
        %s267 = scalar_lea.vmem [#allocation3], %s266
        // Predicated region
        $region75: #{lstm_semrel_forward.3} parent=73 // pred_check
          %p268 = pneg %p37
        $region76: #{lstm_semrel_forward.3} parent=73 // pred_check_branch
          %270 = sbr.rel (%p268) target = $region78
        $region77: #{lstm_semrel_forward.3} parent=73 // pred_region
          _
        $region78: #{lstm_semrel_forward.3} parent=73 // pred_fallthru
          _
        %s271 = sand.u32 %s24, 1
        %s272 = sand.u32 %s24, 1
        %s273 = smul.addr %s272, 64
        %s274 = scalar_lea.vmem [#allocation3], %s273
        %p275 = pneg %p37
        %p276 = pneg %p34
        %p277 = scmp.lt.s32.totalorder %s16, 1
        %s278 = scalar_select %p277, %s16, 1
        %s279 = smul.addr %s278, 8
        %s280 = scalar_lea.vmem %s1, %s279
        %p281 = pneg %p63
        %p282 = pneg %p60
        %p283 = pneg %p84
        %p284 = pneg %p81
        %p285 = pneg %p105
        %p286 = pneg %p102
        %p287 = pneg %p126
        %p288 = pneg %p123
        %p289 = pneg %p152
        %p290 = pneg %p149
        %p291 = scmp.lt.s32.totalorder %s16, 1
        %s292 = scalar_select %p291, %s16, 1
        %s293 = smul.addr %s292, 8
        %s294 = scalar_lea.vmem %s5, %s293
        %p295 = scmp.lt.s32.totalorder %s16, 1
        %s296 = scalar_select %p295, %s16, 1
        %s297 = smul.addr %s296, 8
        %s298 = scalar_lea.vmem %s1, %s297
        %p299 = scmp.lt.s32.totalorder %s16, 1
        %s300 = scalar_select %p299, %s16, 1
        %s301 = smul.addr %s300, 8
        %s302 = scalar_lea.vmem %s5, %s301
        %v304 = vld [vmem:[%s267] sm:$0xff]
        %v305 = vld [vmem:[%s267 + $0x8] sm:$0xff]
        %v306 = vld [vmem:[%s267 + $0x10] sm:$0xff]
        %v307 = vld [vmem:[%s267 + $0x18] sm:$0xff]
        %v308 = vld [vmem:[%s267 + $0x20] sm:$0xff]
        %v309 = vld [vmem:[%s267 + $0x28] sm:$0xff]
        %v310 = vld [vmem:[%s267 + $0x30] sm:$0xff]
        %v311 = vld [vmem:[%s267 + $0x38] sm:$0xff]
        %v312 = vpack.c.bf16 %v305, %v304
        %v313 = vpack.c.bf16 %v307, %v306
        %v314 = vpack.c.bf16 %v309, %v308
        %v315 = vpack.c.bf16 %v311, %v310
        %v316 = vld [vmem:[%s2] sm:$0xf]
        %v317 = vld [vmem:[%s2 + $0x4] sm:$0xf]
        %v318 = vld [vmem:[%s2 + $0x8] sm:$0xf]
        %v319 = vld [vmem:[%s2 + $0xc] sm:$0xf]
        %v320 = vld [vmem:[%s4] sm:$0x1]
        %v322 = vlaneseq
        %v323 = vshrl.u32 %v322, 7
        %v324 = vsub.s32 0, %v323
        %v325 = vrot.slane %v320, %v324
        %v331 = vunpack.c.l.b16 %v316
        %v332 = vunpack.c.l.b16 %v317
        %v333 = vunpack.c.l.b16 %v318
        %v334 = vunpack.c.l.b16 %v319
        %v335 = vpack.c.b16 %v332, %v331
        %v336 = vpack.c.b16 %v334, %v333
        %vm339 = vcmask 261120
        %v341 = vsel %vm339, %v312, 0
        %v344 = vsel %vm339, %v313, 0
        %v347 = vsel %vm339, %v314, 0
        %v350 = vsel %vm339, %v315, 0
        %352 = vmatprep.subr.bf16.mxu0 0
        %353 = vmatpush1.bf16.msra.mxu0 0
        %354 = vmatprep.subr.bf16.mxu0 0
        %355 = vmatpush1.bf16.msra.mxu0 0
        %356 = vmatprep.subr.bf16.mxu0 0
        %357 = vmatpush1.bf16.msra.mxu0 0
        %358 = vmatprep.subr.bf16.mxu0 0
        %359 = vmatpush1.bf16.msra.mxu0 0
        %360 = vmatprep.subr.bf16.mxu0 0
        %361 = vmatpush1.bf16.msra.mxu0 0
        %362 = vmatprep.subr.bf16.mxu0 0
        %363 = vmatpush1.bf16.msra.mxu0 0
        %364 = vmatprep.subr.bf16.mxu0 0
        %365 = vmatpush1.bf16.msra.mxu0 %v336
        %366 = vmatprep.subr.bf16.mxu0 0
        %367 = vmatpush1.bf16.msra.mxu0 %v335
        %368 = vmatprep.subr.bf16.mxu0 0
        %369 = vmatpush2.bf16.msra.mxu0 0
        %370 = vmatprep.subr.bf16.mxu0 0
        %371 = vmatpush2.bf16.msra.mxu0 0
        %372 = vmatprep.subr.bf16.mxu0 0
        %373 = vmatpush2.bf16.msra.mxu0 0
        %374 = vmatprep.subr.bf16.mxu0 0
        %375 = vmatpush2.bf16.msra.mxu0 0
        %376 = vmatprep.subr.bf16.mxu0 0
        %377 = vmatpush2.bf16.msra.mxu0 0
        %378 = vmatprep.subr.bf16.mxu0 0
        %379 = vmatpush2.bf16.msra.mxu0 0
        %380 = vmatprep.subr.bf16.mxu0 0
        %381 = vmatpush2.bf16.msra.mxu0 0
        %382 = vmatprep.subr.bf16.mxu0 0
        %383 = vmatpush2.bf16.msra.mxu0 0
        %384 = vmatprep.mubr.bf16.mxu0 0
        %385 = vmatmul.mubr.bf16.gmra.mxu0 %v341
        %v386 = vpop.f32.mrf.mxu0
        %v387 = vadd.f32 %v325, %v386
        %v388 = vpop.f32.mrf.mxu0
        %v389 = vpop.f32.mrf.mxu0
        %v390 = vadd.f32 %v325, %v389
        %v391 = vpop.f32.mrf.mxu0
        %392 = vmatprep.mubr.bf16.mxu0 0
        %393 = vmatmul.mubr.bf16.gmra.mxu0 %v344
        %v394 = vpop.f32.mrf.mxu0
        %v395 = vadd.f32 %v325, %v394
        %v396 = vpop.f32.mrf.mxu0
        %v397 = vpop.f32.mrf.mxu0
        %v398 = vadd.f32 %v325, %v397
        %v399 = vpop.f32.mrf.mxu0
        %400 = vmatprep.mubr.bf16.mxu0 0
        %401 = vmatmul.mubr.bf16.gmra.mxu0 %v347
        %v402 = vpop.f32.mrf.mxu0
        %v403 = vadd.f32 %v325, %v402
        %v404 = vpop.f32.mrf.mxu0
        %v405 = vpop.f32.mrf.mxu0
        %v406 = vadd.f32 %v325, %v405
        %v407 = vpop.f32.mrf.mxu0
        %408 = vmatprep.mubr.bf16.mxu0 0
        %409 = vmatmul.mubr.bf16.gmra.mxu0 %v350
        %v410 = vpop.f32.mrf.mxu0
        %v411 = vadd.f32 %v325, %v410
        %v412 = vpop.f32.mrf.mxu0
        %v413 = vpop.f32.mrf.mxu0
        %v414 = vadd.f32 %v325, %v413
        %v415 = vpop.f32.mrf.mxu0
        %416 = vdwg.mxu0
        %417 = vst [vmem:[#allocation2] sm:$0xff] %v387
        %418 = vst [vmem:[#allocation2 + $0x8] sm:$0xff] %v390
        %419 = vst [vmem:[#allocation2 + $0x10] sm:$0xff] %v395
        %420 = vst [vmem:[#allocation2 + $0x18] sm:$0xff] %v398
        %421 = vst [vmem:[#allocation2 + $0x20] sm:$0xff] %v403
        %422 = vst [vmem:[#allocation2 + $0x28] sm:$0xff] %v406
        %423 = vst [vmem:[#allocation2 + $0x30] sm:$0xff] %v411
        %424 = vst [vmem:[#allocation2 + $0x38] sm:$0xff] %v414
        %v425 = vld [vmem:[%s3] sm:$0xf]
        %v426 = vld [vmem:[%s3 + $0x4] sm:$0xf]
        %v427 = vld [vmem:[%s3 + $0x8] sm:$0xf]
        %v428 = vld [vmem:[%s3 + $0xc] sm:$0xf]
        %v429 = vld [vmem:[%s298] sm:$0xff]
        %430 = vset.pattern.permute.xlu0 0
        %431 = vperm.xlu0 %430, %v429
        %v432 = vpop.permute.xlu0 %431
        %v433 = vld [vmem:[#allocation2] sm:$0xff]
        %v438 = vunpack.c.l.b16 %v425
        %v439 = vunpack.c.l.b16 %v426
        %v440 = vunpack.c.l.b16 %v427
        %v441 = vunpack.c.l.b16 %v428
        %v442 = vpack.c.b16 %v439, %v438
        %v443 = vpack.c.b16 %v441, %v440
        %v447 = vsel %vm339, 0, 0
        %449 = vmatprep.subr.bf16.mxu0 0
        %450 = vmatpush1.bf16.msra.mxu0 0
        %451 = vmatprep.subr.bf16.mxu0 0
        %452 = vmatpush1.bf16.msra.mxu0 0
        %453 = vmatprep.subr.bf16.mxu0 0
        %454 = vmatpush1.bf16.msra.mxu0 0
        %455 = vmatprep.subr.bf16.mxu0 0
        %456 = vmatpush1.bf16.msra.mxu0 0
        %457 = vmatprep.subr.bf16.mxu0 0
        %458 = vmatpush1.bf16.msra.mxu0 0
        %459 = vmatprep.subr.bf16.mxu0 0
        %460 = vmatpush1.bf16.msra.mxu0 0
        %461 = vmatprep.subr.bf16.mxu0 0
        %462 = vmatpush1.bf16.msra.mxu0 %v443
        %463 = vmatprep.subr.bf16.mxu0 0
        %464 = vmatpush1.bf16.msra.mxu0 %v442
        %465 = vmatprep.subr.bf16.mxu0 0
        %466 = vmatpush2.bf16.msra.mxu0 0
        %467 = vmatprep.subr.bf16.mxu0 0
        %468 = vmatpush2.bf16.msra.mxu0 0
        %469 = vmatprep.subr.bf16.mxu0 0
        %470 = vmatpush2.bf16.msra.mxu0 0
        %471 = vmatprep.subr.bf16.mxu0 0
        %472 = vmatpush2.bf16.msra.mxu0 0
        %473 = vmatprep.subr.bf16.mxu0 0
        %474 = vmatpush2.bf16.msra.mxu0 0
        %475 = vmatprep.subr.bf16.mxu0 0
        %476 = vmatpush2.bf16.msra.mxu0 0
        %477 = vmatprep.subr.bf16.mxu0 0
        %478 = vmatpush2.bf16.msra.mxu0 0
        %479 = vmatprep.subr.bf16.mxu0 0
        %480 = vmatpush2.bf16.msra.mxu0 0
        %481 = vmatprep.mubr.bf16.mxu0 0
        %482 = vmatmul.mubr.bf16.gmra.mxu0 %v447
        %v483 = vpop.f32.mrf.mxu0
        %v484 = vadd.f32 0.0, %v483
        %v485 = vpop.f32.mrf.mxu0
        %v486 = vpop.f32.mrf.mxu0
        %v487 = vpop.f32.mrf.mxu0
        %488 = vdwg.mxu0
        %v489 = vadd.f32 %v433, %v484
        %v490 = vxor.u32 %v489, 2147483648
        %v491 = vmul.f32 %v490, 1.442695
        %v492 = vpow.pop %v491
        %v493 = vadd.f32 %v492, 1.0
        %v494 = vrcp.pop %v493
        %v495 = vmul.f32 1.0, %v494
        %v496 = vtanh.pop %v489
        %v497 = vmul.f32 %v495, 0.0
        %499 = vrot.lane.b32.xlu0 %v496, 32
        %v500 = vpop.permute.xlu0 %499
        %v502 = vmul.f32 %v495, %v500
        %504 = vrot.lane.b32.xlu0 %v502, 32
        %v505 = vpop.permute.xlu0 %504
        %v507 = vadd.f32 %v497, %v505
        %v508 = vtanh.pop %v507
        %510 = vrot.lane.b32.xlu0 %v508, 32
        %v511 = vpop.permute.xlu0 %510
        %v513 = vmul.f32 %v495, %v511
        %vm514 = vcmp.gt.s32.totalorder %v432, 0
        %v515 = vsel %vm514, %v513, 0.0
        %v516 = vsel %vm514, %v507, 0.0
        %s517 = scalar_lea.vmem [#allocation2], 8
        %v518 = vld [vmem:[%s517] sm:$0xff]
        %v519 = vpack.c.bf16 %v515, %v515
        %521 = vrot.lane.b32.xlu0 %v519, 64
        %v522 = vpop.permute.xlu0 %521
        %v524 = vsel %vm339, %v522, 0
        %526 = vmatprep.subr.bf16.mxu0 0
        %527 = vmatpush1.bf16.msra.mxu0 0
        %528 = vmatprep.subr.bf16.mxu0 0
        %529 = vmatpush1.bf16.msra.mxu0 0
        %530 = vmatprep.subr.bf16.mxu0 0
        %531 = vmatpush1.bf16.msra.mxu0 0
        %532 = vmatprep.subr.bf16.mxu0 0
        %533 = vmatpush1.bf16.msra.mxu0 0
        %534 = vmatprep.subr.bf16.mxu0 0
        %535 = vmatpush1.bf16.msra.mxu0 0
        %536 = vmatprep.subr.bf16.mxu0 0
        %537 = vmatpush1.bf16.msra.mxu0 0
        %538 = vmatprep.subr.bf16.mxu0 0
        %539 = vmatpush1.bf16.msra.mxu0 %v443
        %540 = vmatprep.subr.bf16.mxu0 0
        %541 = vmatpush1.bf16.msra.mxu0 %v442
        %542 = vmatprep.subr.bf16.mxu0 0
        %543 = vmatpush2.bf16.msra.mxu0 0
        %544 = vmatprep.subr.bf16.mxu0 0
        %545 = vmatpush2.bf16.msra.mxu0 0
        %546 = vmatprep.subr.bf16.mxu0 0
        %547 = vmatpush2.bf16.msra.mxu0 0
        %548 = vmatprep.subr.bf16.mxu0 0
        %549 = vmatpush2.bf16.msra.mxu0 0
        %550 = vmatprep.subr.bf16.mxu0 0
        %551 = vmatpush2.bf16.msra.mxu0 0
        %552 = vmatprep.subr.bf16.mxu0 0
        %553 = vmatpush2.bf16.msra.mxu0 0
        %554 = vmatprep.subr.bf16.mxu0 0
        %555 = vmatpush2.bf16.msra.mxu0 0
        %556 = vmatprep.subr.bf16.mxu0 0
        %557 = vmatpush2.bf16.msra.mxu0 0
        %558 = vmatprep.mubr.bf16.mxu0 0
        %559 = vmatmul.mubr.bf16.gmra.mxu0 %v524
        %v560 = vpop.f32.mrf.mxu0
        %v561 = vadd.f32 0.0, %v560
        %v562 = vpop.f32.mrf.mxu0
        %v563 = vpop.f32.mrf.mxu0
        %v564 = vpop.f32.mrf.mxu0
        %565 = vdwg.mxu0
        %v566 = vadd.f32 %v518, %v561
        %v567 = vxor.u32 %v566, 2147483648
        %v568 = vmul.f32 %v567, 1.442695
        %v569 = vpow.pop %v568
        %v570 = vadd.f32 %v569, 1.0
        %v571 = vrcp.pop %v570
        %v572 = vmul.f32 1.0, %v571
        %v573 = vtanh.pop %v566
        %v574 = vmul.f32 %v572, %v516
        %576 = vrot.lane.b32.xlu0 %v573, 32
        %v577 = vpop.permute.xlu0 %576
        %v579 = vmul.f32 %v572, %v577
        %581 = vrot.lane.b32.xlu0 %v579, 32
        %v582 = vpop.permute.xlu0 %581
        %v584 = vadd.f32 %v574, %v582
        %v585 = vtanh.pop %v584
        %587 = vrot.lane.b32.xlu0 %v585, 32
        %v588 = vpop.permute.xlu0 %587
        %v590 = vmul.f32 %v572, %v588
        %vm591 = vcmp.gt.s32.totalorder %v432, 1
        %v592 = vsel %vm591, %v590, %v515
        %v593 = vsel %vm591, %v584, %v516
        %s594 = scalar_lea.vmem [#allocation2], 16
        %v595 = vld [vmem:[%s594] sm:$0xff]
        %v596 = vpack.c.bf16 %v592, %v592
        %598 = vrot.lane.b32.xlu0 %v596, 64
        %v599 = vpop.permute.xlu0 %598
        %v601 = vsel %vm339, %v599, 0
        %603 = vmatprep.subr.bf16.mxu0 0
        %604 = vmatpush1.bf16.msra.mxu0 0
        %605 = vmatprep.subr.bf16.mxu0 0
        %606 = vmatpush1.bf16.msra.mxu0 0
        %607 = vmatprep.subr.bf16.mxu0 0
        %608 = vmatpush1.bf16.msra.mxu0 0
        %609 = vmatprep.subr.bf16.mxu0 0
        %610 = vmatpush1.bf16.msra.mxu0 0
        %611 = vmatprep.subr.bf16.mxu0 0
        %612 = vmatpush1.bf16.msra.mxu0 0
        %613 = vmatprep.subr.bf16.mxu0 0
        %614 = vmatpush1.bf16.msra.mxu0 0
        %615 = vmatprep.subr.bf16.mxu0 0
        %616 = vmatpush1.bf16.msra.mxu0 %v443
        %617 = vmatprep.subr.bf16.mxu0 0
        %618 = vmatpush1.bf16.msra.mxu0 %v442
        %619 = vmatprep.subr.bf16.mxu0 0
        %620 = vmatpush2.bf16.msra.mxu0 0
        %621 = vmatprep.subr.bf16.mxu0 0
        %622 = vmatpush2.bf16.msra.mxu0 0
        %623 = vmatprep.subr.bf16.mxu0 0
        %624 = vmatpush2.bf16.msra.mxu0 0
        %625 = vmatprep.subr.bf16.mxu0 0
        %626 = vmatpush2.bf16.msra.mxu0 0
        %627 = vmatprep.subr.bf16.mxu0 0
        %628 = vmatpush2.bf16.msra.mxu0 0
        %629 = vmatprep.subr.bf16.mxu0 0
        %630 = vmatpush2.bf16.msra.mxu0 0
        %631 = vmatprep.subr.bf16.mxu0 0
        %632 = vmatpush2.bf16.msra.mxu0 0
        %633 = vmatprep.subr.bf16.mxu0 0
        %634 = vmatpush2.bf16.msra.mxu0 0
        %635 = vmatprep.mubr.bf16.mxu0 0
        %636 = vmatmul.mubr.bf16.gmra.mxu0 %v601
        %v637 = vpop.f32.mrf.mxu0
        %v638 = vadd.f32 0.0, %v637
        %v639 = vpop.f32.mrf.mxu0
        %v640 = vpop.f32.mrf.mxu0
        %v641 = vpop.f32.mrf.mxu0
        %642 = vdwg.mxu0
        %v643 = vadd.f32 %v595, %v638
        %v644 = vxor.u32 %v643, 2147483648
        %v645 = vmul.f32 %v644, 1.442695
        %v646 = vpow.pop %v645
        %v647 = vadd.f32 %v646, 1.0
        %v648 = vrcp.pop %v647
        %v649 = vmul.f32 1.0, %v648
        %v650 = vtanh.pop %v643
        %v651 = vmul.f32 %v649, %v593
        %653 = vrot.lane.b32.xlu0 %v650, 32
        %v654 = vpop.permute.xlu0 %653
        %v656 = vmul.f32 %v649, %v654
        %658 = vrot.lane.b32.xlu0 %v656, 32
        %v659 = vpop.permute.xlu0 %658
        %v661 = vadd.f32 %v651, %v659
        %v662 = vtanh.pop %v661
        %664 = vrot.lane.b32.xlu0 %v662, 32
        %v665 = vpop.permute.xlu0 %664
        %v667 = vmul.f32 %v649, %v665
        %vm668 = vcmp.gt.s32.totalorder %v432, 2
        %v669 = vsel %vm668, %v667, %v592
        %v670 = vsel %vm668, %v661, %v593
        %s671 = scalar_lea.vmem [#allocation2], 24
        %v672 = vld [vmem:[%s671] sm:$0xff]
        %v673 = vpack.c.bf16 %v669, %v669
        %675 = vrot.lane.b32.xlu0 %v673, 64
        %v676 = vpop.permute.xlu0 %675
        %v678 = vsel %vm339, %v676, 0
        %680 = vmatprep.subr.bf16.mxu0 0
        %681 = vmatpush1.bf16.msra.mxu0 0
        %682 = vmatprep.subr.bf16.mxu0 0
        %683 = vmatpush1.bf16.msra.mxu0 0
        %684 = vmatprep.subr.bf16.mxu0 0
        %685 = vmatpush1.bf16.msra.mxu0 0
        %686 = vmatprep.subr.bf16.mxu0 0
        %687 = vmatpush1.bf16.msra.mxu0 0
        %688 = vmatprep.subr.bf16.mxu0 0
        %689 = vmatpush1.bf16.msra.mxu0 0
        %690 = vmatprep.subr.bf16.mxu0 0
        %691 = vmatpush1.bf16.msra.mxu0 0
        %692 = vmatprep.subr.bf16.mxu0 0
        %693 = vmatpush1.bf16.msra.mxu0 %v443
        %694 = vmatprep.subr.bf16.mxu0 0
        %695 = vmatpush1.bf16.msra.mxu0 %v442
        %696 = vmatprep.subr.bf16.mxu0 0
        %697 = vmatpush2.bf16.msra.mxu0 0
        %698 = vmatprep.subr.bf16.mxu0 0
        %699 = vmatpush2.bf16.msra.mxu0 0
        %700 = vmatprep.subr.bf16.mxu0 0
        %701 = vmatpush2.bf16.msra.mxu0 0
        %702 = vmatprep.subr.bf16.mxu0 0
        %703 = vmatpush2.bf16.msra.mxu0 0
        %704 = vmatprep.subr.bf16.mxu0 0
        %705 = vmatpush2.bf16.msra.mxu0 0
        %706 = vmatprep.subr.bf16.mxu0 0
        %707 = vmatpush2.bf16.msra.mxu0 0
        %708 = vmatprep.subr.bf16.mxu0 0
        %709 = vmatpush2.bf16.msra.mxu0 0
        %710 = vmatprep.subr.bf16.mxu0 0
        %711 = vmatpush2.bf16.msra.mxu0 0
        %712 = vmatprep.mubr.bf16.mxu0 0
        %713 = vmatmul.mubr.bf16.gmra.mxu0 %v678
        %v714 = vpop.f32.mrf.mxu0
        %v715 = vadd.f32 0.0, %v714
        %v716 = vpop.f32.mrf.mxu0
        %v717 = vpop.f32.mrf.mxu0
        %v718 = vpop.f32.mrf.mxu0
        %719 = vdwg.mxu0
        %v720 = vadd.f32 %v672, %v715
        %v721 = vxor.u32 %v720, 2147483648
        %v722 = vmul.f32 %v721, 1.442695
        %v723 = vpow.pop %v722
        %v724 = vadd.f32 %v723, 1.0
        %v725 = vrcp.pop %v724
        %v726 = vmul.f32 1.0, %v725
        %v727 = vtanh.pop %v720
        %v728 = vmul.f32 %v726, %v670
        %730 = vrot.lane.b32.xlu0 %v727, 32
        %v731 = vpop.permute.xlu0 %730
        %v733 = vmul.f32 %v726, %v731
        %735 = vrot.lane.b32.xlu0 %v733, 32
        %v736 = vpop.permute.xlu0 %735
        %v738 = vadd.f32 %v728, %v736
        %v739 = vtanh.pop %v738
        %741 = vrot.lane.b32.xlu0 %v739, 32
        %v742 = vpop.permute.xlu0 %741
        %v744 = vmul.f32 %v726, %v742
        %vm745 = vcmp.gt.s32.totalorder %v432, 3
        %v746 = vsel %vm745, %v744, %v669
        %v747 = vsel %vm745, %v738, %v670
        %s748 = scalar_lea.vmem [#allocation2], 32
        %v749 = vld [vmem:[%s748] sm:$0xff]
        %v750 = vpack.c.bf16 %v746, %v746
        %752 = vrot.lane.b32.xlu0 %v750, 64
        %v753 = vpop.permute.xlu0 %752
        %v755 = vsel %vm339, %v753, 0
        %757 = vmatprep.subr.bf16.mxu0 0
        %758 = vmatpush1.bf16.msra.mxu0 0
        %759 = vmatprep.subr.bf16.mxu0 0
        %760 = vmatpush1.bf16.msra.mxu0 0
        %761 = vmatprep.subr.bf16.mxu0 0
        %762 = vmatpush1.bf16.msra.mxu0 0
        %763 = vmatprep.subr.bf16.mxu0 0
        %764 = vmatpush1.bf16.msra.mxu0 0
        %765 = vmatprep.subr.bf16.mxu0 0
        %766 = vmatpush1.bf16.msra.mxu0 0
        %767 = vmatprep.subr.bf16.mxu0 0
        %768 = vmatpush1.bf16.msra.mxu0 0
        %769 = vmatprep.subr.bf16.mxu0 0
        %770 = vmatpush1.bf16.msra.mxu0 %v443
        %771 = vmatprep.subr.bf16.mxu0 0
        %772 = vmatpush1.bf16.msra.mxu0 %v442
        %773 = vmatprep.subr.bf16.mxu0 0
        %774 = vmatpush2.bf16.msra.mxu0 0
        %775 = vmatprep.subr.bf16.mxu0 0
        %776 = vmatpush2.bf16.msra.mxu0 0
        %777 = vmatprep.subr.bf16.mxu0 0
        %778 = vmatpush2.bf16.msra.mxu0 0
        %779 = vmatprep.subr.bf16.mxu0 0
        %780 = vmatpush2.bf16.msra.mxu0 0
        %781 = vmatprep.subr.bf16.mxu0 0
        %782 = vmatpush2.bf16.msra.mxu0 0
        %783 = vmatprep.subr.bf16.mxu0 0
        %784 = vmatpush2.bf16.msra.mxu0 0
        %785 = vmatprep.subr.bf16.mxu0 0
        %786 = vmatpush2.bf16.msra.mxu0 0
        %787 = vmatprep.subr.bf16.mxu0 0
        %788 = vmatpush2.bf16.msra.mxu0 0
        %789 = vmatprep.mubr.bf16.mxu0 0
        %790 = vmatmul.mubr.bf16.gmra.mxu0 %v755
        %v791 = vpop.f32.mrf.mxu0
        %v792 = vadd.f32 0.0, %v791
        %v793 = vpop.f32.mrf.mxu0
        %v794 = vpop.f32.mrf.mxu0
        %v795 = vpop.f32.mrf.mxu0
        %796 = vdwg.mxu0
        %v797 = vadd.f32 %v749, %v792
        %v798 = vxor.u32 %v797, 2147483648
        %v799 = vmul.f32 %v798, 1.442695
        %v800 = vpow.pop %v799
        %v801 = vadd.f32 %v800, 1.0
        %v802 = vrcp.pop %v801
        %v803 = vmul.f32 1.0, %v802
        %v804 = vtanh.pop %v797
        %v805 = vmul.f32 %v803, %v747
        %807 = vrot.lane.b32.xlu0 %v804, 32
        %v808 = vpop.permute.xlu0 %807
        %v810 = vmul.f32 %v803, %v808
        %812 = vrot.lane.b32.xlu0 %v810, 32
        %v813 = vpop.permute.xlu0 %812
        %v815 = vadd.f32 %v805, %v813
        %v816 = vtanh.pop %v815
        %818 = vrot.lane.b32.xlu0 %v816, 32
        %v819 = vpop.permute.xlu0 %818
        %v821 = vmul.f32 %v803, %v819
        %vm822 = vcmp.gt.s32.totalorder %v432, 4
        %v823 = vsel %vm822, %v821, %v746
        %v824 = vsel %vm822, %v815, %v747
        %s825 = scalar_lea.vmem [#allocation2], 40
        %v826 = vld [vmem:[%s825] sm:$0xff]
        %v827 = vpack.c.bf16 %v823, %v823
        %829 = vrot.lane.b32.xlu0 %v827, 64
        %v830 = vpop.permute.xlu0 %829
        %v832 = vsel %vm339, %v830, 0
        %834 = vmatprep.subr.bf16.mxu0 0
        %835 = vmatpush1.bf16.msra.mxu0 0
        %836 = vmatprep.subr.bf16.mxu0 0
        %837 = vmatpush1.bf16.msra.mxu0 0
        %838 = vmatprep.subr.bf16.mxu0 0
        %839 = vmatpush1.bf16.msra.mxu0 0
        %840 = vmatprep.subr.bf16.mxu0 0
        %841 = vmatpush1.bf16.msra.mxu0 0
        %842 = vmatprep.subr.bf16.mxu0 0
        %843 = vmatpush1.bf16.msra.mxu0 0
        %844 = vmatprep.subr.bf16.mxu0 0
        %845 = vmatpush1.bf16.msra.mxu0 0
        %846 = vmatprep.subr.bf16.mxu0 0
        %847 = vmatpush1.bf16.msra.mxu0 %v443
        %848 = vmatprep.subr.bf16.mxu0 0
        %849 = vmatpush1.bf16.msra.mxu0 %v442
        %850 = vmatprep.subr.bf16.mxu0 0
        %851 = vmatpush2.bf16.msra.mxu0 0
        %852 = vmatprep.subr.bf16.mxu0 0
        %853 = vmatpush2.bf16.msra.mxu0 0
        %854 = vmatprep.subr.bf16.mxu0 0
        %855 = vmatpush2.bf16.msra.mxu0 0
        %856 = vmatprep.subr.bf16.mxu0 0
        %857 = vmatpush2.bf16.msra.mxu0 0
        %858 = vmatprep.subr.bf16.mxu0 0
        %859 = vmatpush2.bf16.msra.mxu0 0
        %860 = vmatprep.subr.bf16.mxu0 0
        %861 = vmatpush2.bf16.msra.mxu0 0
        %862 = vmatprep.subr.bf16.mxu0 0
        %863 = vmatpush2.bf16.msra.mxu0 0
        %864 = vmatprep.subr.bf16.mxu0 0
        %865 = vmatpush2.bf16.msra.mxu0 0
        %866 = vmatprep.mubr.bf16.mxu0 0
        %867 = vmatmul.mubr.bf16.gmra.mxu0 %v832
        %v868 = vpop.f32.mrf.mxu0
        %v869 = vadd.f32 0.0, %v868
        %v870 = vpop.f32.mrf.mxu0
        %v871 = vpop.f32.mrf.mxu0
        %v872 = vpop.f32.mrf.mxu0
        %873 = vdwg.mxu0
        %v874 = vadd.f32 %v826, %v869
        %v875 = vxor.u32 %v874, 2147483648
        %v876 = vmul.f32 %v875, 1.442695
        %v877 = vpow.pop %v876
        %v878 = vadd.f32 %v877, 1.0
        %v879 = vrcp.pop %v878
        %v880 = vmul.f32 1.0, %v879
        %v881 = vtanh.pop %v874
        %v882 = vmul.f32 %v880, %v824
        %884 = vrot.lane.b32.xlu0 %v881, 32
        %v885 = vpop.permute.xlu0 %884
        %v887 = vmul.f32 %v880, %v885
        %889 = vrot.lane.b32.xlu0 %v887, 32
        %v890 = vpop.permute.xlu0 %889
        %v892 = vadd.f32 %v882, %v890
        %v893 = vtanh.pop %v892
        %895 = vrot.lane.b32.xlu0 %v893, 32
        %v896 = vpop.permute.xlu0 %895
        %v898 = vmul.f32 %v880, %v896
        %vm899 = vcmp.gt.s32.totalorder %v432, 5
        %v900 = vsel %vm899, %v898, %v823
        %v901 = vsel %vm899, %v892, %v824
        %s902 = scalar_lea.vmem [#allocation2], 48
        %v903 = vld [vmem:[%s902] sm:$0xff]
        %v904 = vpack.c.bf16 %v900, %v900
        %906 = vrot.lane.b32.xlu0 %v904, 64
        %v907 = vpop.permute.xlu0 %906
        %v909 = vsel %vm339, %v907, 0
        %911 = vmatprep.subr.bf16.mxu0 0
        %912 = vmatpush1.bf16.msra.mxu0 0
        %913 = vmatprep.subr.bf16.mxu0 0
        %914 = vmatpush1.bf16.msra.mxu0 0
        %915 = vmatprep.subr.bf16.mxu0 0
        %916 = vmatpush1.bf16.msra.mxu0 0
        %917 = vmatprep.subr.bf16.mxu0 0
        %918 = vmatpush1.bf16.msra.mxu0 0
        %919 = vmatprep.subr.bf16.mxu0 0
        %920 = vmatpush1.bf16.msra.mxu0 0
        %921 = vmatprep.subr.bf16.mxu0 0
        %922 = vmatpush1.bf16.msra.mxu0 0
        %923 = vmatprep.subr.bf16.mxu0 0
        %924 = vmatpush1.bf16.msra.mxu0 %v443
        %925 = vmatprep.subr.bf16.mxu0 0
        %926 = vmatpush1.bf16.msra.mxu0 %v442
        %927 = vmatprep.subr.bf16.mxu0 0
        %928 = vmatpush2.bf16.msra.mxu0 0
        %929 = vmatprep.subr.bf16.mxu0 0
        %930 = vmatpush2.bf16.msra.mxu0 0
        %931 = vmatprep.subr.bf16.mxu0 0
        %932 = vmatpush2.bf16.msra.mxu0 0
        %933 = vmatprep.subr.bf16.mxu0 0
        %934 = vmatpush2.bf16.msra.mxu0 0
        %935 = vmatprep.subr.bf16.mxu0 0
        %936 = vmatpush2.bf16.msra.mxu0 0
        %937 = vmatprep.subr.bf16.mxu0 0
        %938 = vmatpush2.bf16.msra.mxu0 0
        %939 = vmatprep.subr.bf16.mxu0 0
        %940 = vmatpush2.bf16.msra.mxu0 0
        %941 = vmatprep.subr.bf16.mxu0 0
        %942 = vmatpush2.bf16.msra.mxu0 0
        %943 = vmatprep.mubr.bf16.mxu0 0
        %944 = vmatmul.mubr.bf16.gmra.mxu0 %v909
        %v945 = vpop.f32.mrf.mxu0
        %v946 = vadd.f32 0.0, %v945
        %v947 = vpop.f32.mrf.mxu0
        %v948 = vpop.f32.mrf.mxu0
        %v949 = vpop.f32.mrf.mxu0
        %950 = vdwg.mxu0
        %v951 = vadd.f32 %v903, %v946
        %v952 = vxor.u32 %v951, 2147483648
        %v953 = vmul.f32 %v952, 1.442695
        %v954 = vpow.pop %v953
        %v955 = vadd.f32 %v954, 1.0
        %v956 = vrcp.pop %v955
        %v957 = vmul.f32 1.0, %v956
        %v958 = vtanh.pop %v951
        %v959 = vmul.f32 %v957, %v901
        %961 = vrot.lane.b32.xlu0 %v958, 32
        %v962 = vpop.permute.xlu0 %961
        %v964 = vmul.f32 %v957, %v962
        %966 = vrot.lane.b32.xlu0 %v964, 32
        %v967 = vpop.permute.xlu0 %966
        %v969 = vadd.f32 %v959, %v967
        %v970 = vtanh.pop %v969
        %972 = vrot.lane.b32.xlu0 %v970, 32
        %v973 = vpop.permute.xlu0 %972
        %v975 = vmul.f32 %v957, %v973
        %vm976 = vcmp.gt.s32.totalorder %v432, 6
        %v977 = vsel %vm976, %v975, %v900
        %v978 = vsel %vm976, %v969, %v901
        %s979 = scalar_lea.vmem [#allocation2], 56
        %v980 = vld [vmem:[%s979] sm:$0xff]
        %v981 = vpack.c.bf16 %v977, %v977
        %983 = vrot.lane.b32.xlu0 %v981, 64
        %v984 = vpop.permute.xlu0 %983
        %v986 = vsel %vm339, %v984, 0
        %988 = vmatprep.subr.bf16.mxu0 0
        %989 = vmatpush1.bf16.msra.mxu0 0
        %990 = vmatprep.subr.bf16.mxu0 0
        %991 = vmatpush1.bf16.msra.mxu0 0
        %992 = vmatprep.subr.bf16.mxu0 0
        %993 = vmatpush1.bf16.msra.mxu0 0
        %994 = vmatprep.subr.bf16.mxu0 0
        %995 = vmatpush1.bf16.msra.mxu0 0
        %996 = vmatprep.subr.bf16.mxu0 0
        %997 = vmatpush1.bf16.msra.mxu0 0
        %998 = vmatprep.subr.bf16.mxu0 0
        %999 = vmatpush1.bf16.msra.mxu0 0
        %1000 = vmatprep.subr.bf16.mxu0 0
        %1001 = vmatpush1.bf16.msra.mxu0 %v443
        %1002 = vmatprep.subr.bf16.mxu0 0
        %1003 = vmatpush1.bf16.msra.mxu0 %v442
        %1004 = vmatprep.subr.bf16.mxu0 0
        %1005 = vmatpush2.bf16.msra.mxu0 0
        %1006 = vmatprep.subr.bf16.mxu0 0
        %1007 = vmatpush2.bf16.msra.mxu0 0
        %1008 = vmatprep.subr.bf16.mxu0 0
        %1009 = vmatpush2.bf16.msra.mxu0 0
        %1010 = vmatprep.subr.bf16.mxu0 0
        %1011 = vmatpush2.bf16.msra.mxu0 0
        %1012 = vmatprep.subr.bf16.mxu0 0
        %1013 = vmatpush2.bf16.msra.mxu0 0
        %1014 = vmatprep.subr.bf16.mxu0 0
        %1015 = vmatpush2.bf16.msra.mxu0 0
        %1016 = vmatprep.subr.bf16.mxu0 0
        %1017 = vmatpush2.bf16.msra.mxu0 0
        %1018 = vmatprep.subr.bf16.mxu0 0
        %1019 = vmatpush2.bf16.msra.mxu0 0
        %1020 = vmatprep.mubr.bf16.mxu0 0
        %1021 = vmatmul.mubr.bf16.gmra.mxu0 %v986
        %v1022 = vpop.f32.mrf.mxu0
        %v1023 = vadd.f32 0.0, %v1022
        %v1024 = vpop.f32.mrf.mxu0
        %v1025 = vpop.f32.mrf.mxu0
        %v1026 = vpop.f32.mrf.mxu0
        %1027 = vdwg.mxu0
        %v1028 = vadd.f32 %v980, %v1023
        %v1029 = vxor.u32 %v1028, 2147483648
        %v1030 = vmul.f32 %v1029, 1.442695
        %v1031 = vpow.pop %v1030
        %v1032 = vadd.f32 %v1031, 1.0
        %v1033 = vrcp.pop %v1032
        %v1034 = vmul.f32 1.0, %v1033
        %v1035 = vtanh.pop %v1028
        %v1036 = vmul.f32 %v1034, %v978
        %1038 = vrot.lane.b32.xlu0 %v1035, 32
        %v1039 = vpop.permute.xlu0 %1038
        %v1041 = vmul.f32 %v1034, %v1039
        %1043 = vrot.lane.b32.xlu0 %v1041, 32
        %v1044 = vpop.permute.xlu0 %1043
        %v1046 = vadd.f32 %v1036, %v1044
        %v1047 = vtanh.pop %v1046
        %1049 = vrot.lane.b32.xlu0 %v1047, 32
        %v1050 = vpop.permute.xlu0 %1049
        %v1052 = vmul.f32 %v1034, %v1050
        %vm1053 = vcmp.gt.s32.totalorder %v432, 7
        %v1054 = vsel %vm1053, %v1052, %v977
        %1056 = vrot.lane.b32.xlu0 %v1054, 64
        %v1057 = vpop.permute.xlu0 %1056
        %1059 = vst.msk [vmem:[%s302] sm:$0xff] %vm339, %v1057
        %p1060 = scmp.lt.s32.totalorder %s16, 1
        %s1061 = scalar_select %p1060, %s16, 1
        %s1062 = smul.addr %s1061, 8
        %s1063 = scalar_lea.vmem %s5, %s1062
        // Predicated region
        $region79: #{lstm_semrel_forward.3} parent=73 // pred_check
          %p1064 = pneg %p149
        $region80: #{lstm_semrel_forward.3} parent=73 // pred_check_branch
          %1066 = sbr.rel (%p1064) target = $region82
        $region81: #{lstm_semrel_forward.3} parent=73 // pred_region
          _
        $region82: #{lstm_semrel_forward.3} parent=73 // pred_fallthru
          _
      $region74: #{lstm_semrel_forward.3} parent=5 // pred_fallthru
        _
      %p1067 = scmp.le.s32.totalorder 2, %s11
      // Predicated region
      $region83: #{lstm_semrel_forward.3} parent=5 // pred_check
        %p1068 = pneg %p1067
      $region84: #{lstm_semrel_forward.3} parent=5 // pred_check_branch
        %1070 = sbr.rel (%p1068) target = $region86
      $region85: #{lstm_semrel_forward.3} parent=5 // pred_region
        %s1071 = ssub.s32 %s11, 2
        // Predicated region
        $region87: #{lstm_semrel_forward.3} parent=85 // pred_check
          %p1072 = pneg %p155
        $region88: #{lstm_semrel_forward.3} parent=85 // pred_check_branch
          %1074 = sbr.rel (%p1072) target = $region90
        $region89: #{lstm_semrel_forward.3} parent=85 // pred_region
          %p1075 = scmp.lt.s32.totalorder %s17, 1
          %s1076 = scalar_select %p1075, %s17, 1
          %s1077 = smul.addr %s1076, 8
          %s1078 = scalar_lea.vmem %s5, %s1077
        $region90: #{lstm_semrel_forward.3} parent=85 // pred_fallthru
          _
      $region86: #{lstm_semrel_forward.3} parent=5 // pred_fallthru
        _
    $region6: #{lstm_semrel_forward.3} parent=1 // loop_footer
      %s15 = sadd.s32 1, %s11
    $region7: #{lstm_semrel_forward.3} parent=1 // loop_footer_branch
      %10 = sbr.rel target = $region3
    $region8: #{lstm_semrel_forward.3} parent=1 // loop_exit
      _

// kernel: lstm_semrel_forward.5
$region0: #{lstm_semrel_forward.5}
  #allocation0 [shape = 'u32[]', space=smem, size = 0x4, offset = 0x4, fixed_abs, tag = 'smem constant byte address 0x4 - core index']
  #allocation1 [shape = 'u32[144,128]{1,0:T(1,128)}', space=vmem, size = 0x12000, scoped, tag = 'internal scratch']
  %s0 = inlined_call_operand.vmem [shape: f32[2,2,51,32], index: 0, kind: input, shape index: {}]
  %s1 = inlined_call_operand.vmem [shape: f32[50,32], index: 1, kind: input, shape index: {}]
  %s2 = inlined_call_operand.vmem [shape: f32[1,32], index: 2, kind: input, shape index: {}]
  %s3 = inlined_call_operand.vmem [shape: f32[32,3], index: 3, kind: input, shape index: {}]
  %s4 = inlined_call_operand.vmem [shape: f32[1,3], index: 4, kind: input, shape index: {}]
  %s5 = inlined_call_operand.vmem [shape: f32[2,2,3], index: 5, kind: output, shape index: {}]
  %s6 = sld [smem:[#allocation0]]
  $region53: #{lstm_semrel_forward.5} parent=0
    _
  %s8 = ssub.s32 1, %s6
  %s9 = scalar_select 0, %s8, %s6
  loop: start=0, step=1, limit=4
  $region2: #{lstm_semrel_forward.5} parent=0 // loop_pre_header
    _
  $region3: #{lstm_semrel_forward.5} parent=0 // loop_header
    %s11 = sphi 0, %s15
    %p12 = scmp.ge.s32.totalorder %s11, 4
    %s21 = sphi 0, %s23
    %s24 = sphi 0, %s21
    %s25 = sphi 0, %s24
    %s41 = sphi 0, %s25
    %s45 = sphi 0, %s45
    %s47 = sphi 0, %s45
    %s48 = sphi 0, %s47
    %s62 = sphi 0, %s48
    %s66 = sphi 0, %s66
    %s68 = sphi 0, %s66
    %s69 = sphi 0, %s68
    %s83 = sphi 0, %s69
    %s87 = sphi 0, %s87
    %s89 = sphi 0, %s87
    %s90 = sphi 0, %s89
    %s104 = sphi 0, %s90
    %s108 = sphi 0, %s108
    %s110 = sphi 0, %s108
    %s111 = sphi 0, %s110
    %s125 = sphi 0, %s111
    %s131 = sphi 0, %s133
    %s134 = sphi 0, %s131
    %s135 = sphi 0, %s134
    %s151 = sphi 0, %s135
  $region4: #{lstm_semrel_forward.5} parent=0 // loop_header_branch
    %14 = sbr.rel (%p12) target = $region8
  $region5: #{lstm_semrel_forward.5} parent=0 // loop_body
    %s16 = ssub.s32 %s11, 1
    %s17 = ssub.s32 %s11, 2
    %s18 = sadd.s32 %s11, 1
    %s19 = ssub.s32 %s11, %s18
    %p20 = scmp.eq.s32.totalorder %s19, 0
    %s22 = sadd.s32 %s21, 1
    %s23 = scalar_select %p20, %s21, %s22
    %p26 = pneg %p20
    %p27 = scmp.eq.s32.totalorder %s11, 1
    %p28 = por %p26, %p27
    %p29 = scmp.ne.s32.totalorder %s21, %s24
    %p30 = scmp.eq.s32.totalorder %s11, 0
    %p31 = por %p29, %p30
    %p32 = scmp.ne.s32.totalorder %s21, %s24
    %p33 = scmp.eq.s32.totalorder %s16, 1
    %p34 = por %p32, %p33
    %p35 = scmp.ne.s32.totalorder %s24, %s25
    %p36 = scmp.eq.s32.totalorder %s16, 0
    %p37 = por %p35, %p36
    %p38 = scmp.ne.s32.totalorder %s24, %s25
    %p39 = scmp.eq.s32.totalorder %s17, 1
    %p40 = por %p38, %p39
    %p42 = scmp.ne.s32.totalorder %s25, %s41
    %p43 = scmp.eq.s32.totalorder %s17, 0
    %p44 = por %p42, %p43
    %s46 = sadd.s32 %s45, 1
    %p49 = scmp.eq.s32.totalorder %s11, 1
    %p50 = scmp.ne.s32.totalorder %s45, %s47
    %p51 = scmp.eq.s32.totalorder %s11, 0
    %p52 = por %p50, %p51
    %p53 = scmp.ne.s32.totalorder %s45, %s47
    %p54 = scmp.eq.s32.totalorder %s16, 1
    %p55 = por %p53, %p54
    %p56 = scmp.ne.s32.totalorder %s47, %s48
    %p57 = scmp.eq.s32.totalorder %s16, 0
    %p58 = por %p56, %p57
    %p59 = scmp.ne.s32.totalorder %s47, %s48
    %p60 = scmp.eq.s32.totalorder %s17, 1
    %p61 = por %p59, %p60
    %p63 = scmp.ne.s32.totalorder %s48, %s62
    %p64 = scmp.eq.s32.totalorder %s17, 0
    %p65 = por %p63, %p64
    %s67 = sadd.s32 %s66, 1
    %p70 = scmp.eq.s32.totalorder %s11, 1
    %p71 = scmp.ne.s32.totalorder %s66, %s68
    %p72 = scmp.eq.s32.totalorder %s11, 0
    %p73 = por %p71, %p72
    %p74 = scmp.ne.s32.totalorder %s66, %s68
    %p75 = scmp.eq.s32.totalorder %s16, 1
    %p76 = por %p74, %p75
    %p77 = scmp.ne.s32.totalorder %s68, %s69
    %p78 = scmp.eq.s32.totalorder %s16, 0
    %p79 = por %p77, %p78
    %p80 = scmp.ne.s32.totalorder %s68, %s69
    %p81 = scmp.eq.s32.totalorder %s17, 1
    %p82 = por %p80, %p81
    %p84 = scmp.ne.s32.totalorder %s69, %s83
    %p85 = scmp.eq.s32.totalorder %s17, 0
    %p86 = por %p84, %p85
    %s88 = sadd.s32 %s87, 1
    %p91 = scmp.eq.s32.totalorder %s11, 1
    %p92 = scmp.ne.s32.totalorder %s87, %s89
    %p93 = scmp.eq.s32.totalorder %s11, 0
    %p94 = por %p92, %p93
    %p95 = scmp.ne.s32.totalorder %s87, %s89
    %p96 = scmp.eq.s32.totalorder %s16, 1
    %p97 = por %p95, %p96
    %p98 = scmp.ne.s32.totalorder %s89, %s90
    %p99 = scmp.eq.s32.totalorder %s16, 0
    %p100 = por %p98, %p99
    %p101 = scmp.ne.s32.totalorder %s89, %s90
    %p102 = scmp.eq.s32.totalorder %s17, 1
    %p103 = por %p101, %p102
    %p105 = scmp.ne.s32.totalorder %s90, %s104
    %p106 = scmp.eq.s32.totalorder %s17, 0
    %p107 = por %p105, %p106
    %s109 = sadd.s32 %s108, 1
    %p112 = scmp.eq.s32.totalorder %s11, 1
    %p113 = scmp.ne.s32.totalorder %s108, %s110
    %p114 = scmp.eq.s32.totalorder %s11, 0
    %p115 = por %p113, %p114
    %p116 = scmp.ne.s32.totalorder %s108, %s110
    %p117 = scmp.eq.s32.totalorder %s16, 1
    %p118 = por %p116, %p117
    %p119 = scmp.ne.s32.totalorder %s110, %s111
    %p120 = scmp.eq.s32.totalorder %s16, 0
    %p121 = por %p119, %p120
    %p122 = scmp.ne.s32.totalorder %s110, %s111
    %p123 = scmp.eq.s32.totalorder %s17, 1
    %p124 = por %p122, %p123
    %p126 = scmp.ne.s32.totalorder %s111, %s125
    %p127 = scmp.eq.s32.totalorder %s17, 0
    %p128 = por %p126, %p127
    %s129 = ssub.s32 %s11, %s18
    %p130 = scmp.eq.s32.totalorder %s129, 0
    %s132 = sadd.s32 %s131, 1
    %s133 = scalar_select %p130, %s131, %s132
    %p136 = pneg %p130
    %p137 = scmp.eq.s32.totalorder %s11, 1
    %p138 = por %p136, %p137
    %p139 = scmp.ne.s32.totalorder %s131, %s134
    %p140 = scmp.eq.s32.totalorder %s11, 0
    %p141 = por %p139, %p140
    %p142 = scmp.ne.s32.totalorder %s131, %s134
    %p143 = scmp.eq.s32.totalorder %s16, 1
    %p144 = por %p142, %p143
    %p145 = scmp.ne.s32.totalorder %s134, %s135
    %p146 = scmp.eq.s32.totalorder %s16, 0
    %p147 = por %p145, %p146
    %p148 = scmp.ne.s32.totalorder %s134, %s135
    %p149 = scmp.eq.s32.totalorder %s17, 1
    %p150 = por %p148, %p149
    %p152 = scmp.ne.s32.totalorder %s135, %s151
    %p153 = scmp.eq.s32.totalorder %s17, 0
    %p154 = por %p152, %p153
    %p155 = scmp.le.s32.totalorder 1, %s11
    %p156 = scmp.lt.s32.totalorder %s11, 3
    %p157 = pnand %p155, %p156
    %p158 = pneg %p157
    // Predicated region
    $region9: #{lstm_semrel_forward.5} parent=5 // pred_check
      _
    $region10: #{lstm_semrel_forward.5} parent=5 // pred_check_branch
      %160 = sbr.rel (%p157) target = $region12
    $region11: #{lstm_semrel_forward.5} parent=5 // pred_region
      %s161 = ssub.s32 %s11, 1
      // Predicated region
      $region13: #{lstm_semrel_forward.5} parent=11 // pred_check
        %p162 = pneg %p58
      $region14: #{lstm_semrel_forward.5} parent=11 // pred_check_branch
        %164 = sbr.rel (%p162) target = $region16
      $region15: #{lstm_semrel_forward.5} parent=11 // pred_region
        _
      $region16: #{lstm_semrel_forward.5} parent=11 // pred_fallthru
        _
      // Predicated region
      $region17: #{lstm_semrel_forward.5} parent=11 // pred_check
        %p165 = pneg %p79
      $region18: #{lstm_semrel_forward.5} parent=11 // pred_check_branch
        %167 = sbr.rel (%p165) target = $region20
      $region19: #{lstm_semrel_forward.5} parent=11 // pred_region
        _
      $region20: #{lstm_semrel_forward.5} parent=11 // pred_fallthru
        _
      // Predicated region
      $region21: #{lstm_semrel_forward.5} parent=11 // pred_check
        %p168 = pneg %p100
      $region22: #{lstm_semrel_forward.5} parent=11 // pred_check_branch
        %170 = sbr.rel (%p168) target = $region24
      $region23: #{lstm_semrel_forward.5} parent=11 // pred_region
        _
      $region24: #{lstm_semrel_forward.5} parent=11 // pred_fallthru
        _
      // Predicated region
      $region25: #{lstm_semrel_forward.5} parent=11 // pred_check
        %p171 = pneg %p121
      $region26: #{lstm_semrel_forward.5} parent=11 // pred_check_branch
        %173 = sbr.rel (%p171) target = $region28
      $region27: #{lstm_semrel_forward.5} parent=11 // pred_region
        _
      $region28: #{lstm_semrel_forward.5} parent=11 // pred_fallthru
        _
    $region12: #{lstm_semrel_forward.5} parent=5 // pred_fallthru
      _
    %p174 = scmp.lt.s32.totalorder %s11, 2
    // Predicated region
    $region29: #{lstm_semrel_forward.5} parent=5 // pred_check
      %p175 = pneg %p174
    $region30: #{lstm_semrel_forward.5} parent=5 // pred_check_branch
      %177 = sbr.rel (%p175) target = $region32
    $region31: #{lstm_semrel_forward.5} parent=5 // pred_region
      // Predicated region
      $region33: #{lstm_semrel_forward.5} parent=31 // pred_check
        %p178 = pneg %p31
      $region34: #{lstm_semrel_forward.5} parent=31 // pred_check_branch
        %180 = sbr.rel (%p178) target = $region36
      $region35: #{lstm_semrel_forward.5} parent=31 // pred_region
        %p181 = scmp.lt.s32.totalorder %s11, 1
        %s182 = scalar_select %p181, %s11, 1
        %s183 = smul.addr %s182, 14
        %s184 = smul.addr %s183, 8
        %s185 = scalar_lea.vmem %s0, %s184
      $region36: #{lstm_semrel_forward.5} parent=31 // pred_fallthru
        _
    $region32: #{lstm_semrel_forward.5} parent=5 // pred_fallthru
      _
    %p186 = scmp.le.s32.totalorder 1, %s11
    %p187 = scmp.lt.s32.totalorder %s11, 3
    %p188 = pnand %p186, %p187
    %p189 = pneg %p188
    // Predicated region
    $region37: #{lstm_semrel_forward.5} parent=5 // pred_check
      _
    $region38: #{lstm_semrel_forward.5} parent=5 // pred_check_branch
      %191 = sbr.rel (%p188) target = $region40
    $region39: #{lstm_semrel_forward.5} parent=5 // pred_region
      %s192 = ssub.s32 %s11, 1
      %p193 = scmp.lt.s32.totalorder %s16, 1
      %s194 = scalar_select %p193, %s16, 1
      %s195 = smul.addr %s194, 14
      %s196 = smul.addr %s195, 8
      %s197 = scalar_lea.vmem %s0, %s196
      %p198 = pneg %p37
      %p199 = pneg %p34
      %p200 = pneg %p58
      %p201 = pneg %p55
      %p202 = pneg %p79
      %p203 = pneg %p76
      %p204 = pneg %p100
      %p205 = pneg %p97
      %p206 = pneg %p121
      %p207 = pneg %p118
      %p208 = pneg %p147
      %p209 = pneg %p144
      %p210 = scmp.lt.s32.totalorder %s16, 1
      %s211 = scalar_select %p210, %s16, 1
      %s212 = smul.addr %s211, 2
      %s213 = scalar_lea.vmem %s5, %s212
      %p214 = scmp.lt.s32.totalorder %s16, 1
      %s215 = scalar_select %p214, %s16, 1
      %s216 = smul.addr %s215, 14
      %s217 = smul.addr %s216, 8
      %s218 = scalar_lea.vmem %s0, %s217
      %p219 = scmp.lt.s32.totalorder %s16, 1
      %s220 = scalar_select %p219, %s16, 1
      %s221 = smul.addr %s220, 2
      %s222 = scalar_lea.vmem %s5, %s221
      %v223 = vld [vmem:[%s218] sm:$0xff]
      %v224 = vld [vmem:[%s218 + $0x8] sm:$0xff]
      %v225 = vld [vmem:[%s218 + $0x10] sm:$0xff]
      %v226 = vld [vmem:[%s218 + $0x18] sm:$0xff]
      %v227 = vld [vmem:[%s218 + $0x20] sm:$0xff]
      %v228 = vld [vmem:[%s218 + $0x28] sm:$0xff]
      %v229 = vld [vmem:[%s218 + $0x30] sm:$0x7]
      %v230 = vld [vmem:[%s218 + $0x38] sm:$0xff]
      %v231 = vld [vmem:[%s218 + $0x40] sm:$0xff]
      %v232 = vld [vmem:[%s218 + $0x48] sm:$0xff]
      %v233 = vld [vmem:[%s218 + $0x50] sm:$0xff]
      %v234 = vld [vmem:[%s218 + $0x58] sm:$0xff]
      %v235 = vld [vmem:[%s218 + $0x60] sm:$0xff]
      %v236 = vld [vmem:[%s218 + $0x68] sm:$0x7]
      %vm251 = vcmask 1046528
      %v252 = vrot.slane %v223, 1
      %v253 = vrot.slane %v224, 1
      %v254 = vsel %vm251, %v252, %v253
      %v255 = vrot.slane %v225, 1
      %v256 = vsel %vm251, %v253, %v255
      %v257 = vrot.slane %v226, 1
      %v258 = vsel %vm251, %v255, %v257
      %v259 = vrot.slane %v227, 1
      %v260 = vsel %vm251, %v257, %v259
      %v261 = vrot.slane %v228, 1
      %v262 = vsel %vm251, %v259, %v261
      %v263 = vrot.slane %v229, 1
      %v264 = vsel %vm251, %v261, %v263
      %v265 = vrot.slane %v230, 1
      %v266 = vrot.slane %v231, 1
      %v267 = vsel %vm251, %v265, %v266
      %v268 = vrot.slane %v232, 1
      %v269 = vsel %vm251, %v266, %v268
      %v270 = vrot.slane %v233, 1
      %v271 = vsel %vm251, %v268, %v270
      %v272 = vrot.slane %v234, 1
      %v273 = vsel %vm251, %v270, %v272
      %v274 = vrot.slane %v235, 1
      %v275 = vsel %vm251, %v272, %v274
      %v276 = vrot.slane %v236, 1
      %v277 = vsel %vm251, %v274, %v276
      %v292 = vmul.f32 %v223, %v254
      %v293 = vmul.f32 %v224, %v256
      %v294 = vmul.f32 %v225, %v258
      %v295 = vmul.f32 %v226, %v260
      %v296 = vmul.f32 %v227, %v262
      %v297 = vmul.f32 %v228, %v264
      %v298 = vmul.f32 %v229, %v263
      %v299 = vmul.f32 %v230, %v267
      %v300 = vmul.f32 %v231, %v269
      %v301 = vmul.f32 %v232, %v271
      %v302 = vmul.f32 %v233, %v273
      %v303 = vmul.f32 %v234, %v275
      %v304 = vmul.f32 %v235, %v277
      %v305 = vmul.f32 %v236, %v276
      %vm306 = vcmask 261120
      %v307 = vsel %vm306, %v292, 0.0
      %308 = vadd.xlane.f32.xlu0 %v307
      %v309 = vpop.xlane.xlu0 %308
      %v310 = vsel %vm306, %v293, 0.0
      %311 = vadd.xlane.f32.xlu0 %v310
      %v312 = vpop.xlane.xlu0 %311
      %v313 = vsel %vm306, %v294, 0.0
      %314 = vadd.xlane.f32.xlu0 %v313
      %v315 = vpop.xlane.xlu0 %314
      %v316 = vsel %vm306, %v295, 0.0
      %317 = vadd.xlane.f32.xlu0 %v316
      %v318 = vpop.xlane.xlu0 %317
      %v319 = vsel %vm306, %v296, 0.0
      %320 = vadd.xlane.f32.xlu0 %v319
      %v321 = vpop.xlane.xlu0 %320
      %v322 = vsel %vm306, %v297, 0.0
      %323 = vadd.xlane.f32.xlu0 %v322
      %v324 = vpop.xlane.xlu0 %323
      %vm325 = vcmask 254976
      %v326 = vsel %vm325, %v298, 0.0
      %327 = vadd.xlane.f32.xlu0 %v326
      %v328 = vpop.xlane.xlu0 %327
      %v329 = vsel %vm306, %v299, 0.0
      %330 = vadd.xlane.f32.xlu0 %v329
      %v331 = vpop.xlane.xlu0 %330
      %v332 = vsel %vm306, %v300, 0.0
      %333 = vadd.xlane.f32.xlu0 %v332
      %v334 = vpop.xlane.xlu0 %333
      %v335 = vsel %vm306, %v301, 0.0
      %336 = vadd.xlane.f32.xlu0 %v335
      %v337 = vpop.xlane.xlu0 %336
      %v338 = vsel %vm306, %v302, 0.0
      %339 = vadd.xlane.f32.xlu0 %v338
      %v340 = vpop.xlane.xlu0 %339
      %v341 = vsel %vm306, %v303, 0.0
      %342 = vadd.xlane.f32.xlu0 %v341
      %v343 = vpop.xlane.xlu0 %342
      %v344 = vsel %vm306, %v304, 0.0
      %345 = vadd.xlane.f32.xlu0 %v344
      %v346 = vpop.xlane.xlu0 %345
      %v347 = vsel %vm325, %v305, 0.0
      %348 = vadd.xlane.f32.xlu0 %v347
      %v349 = vpop.xlane.xlu0 %348
      %v350 = vmul.f32 %v223, %v223
      %v351 = vmul.f32 %v224, %v224
      %v352 = vmul.f32 %v225, %v225
      %v353 = vmul.f32 %v226, %v226
      %v354 = vmul.f32 %v227, %v227
      %v355 = vmul.f32 %v228, %v228
      %v356 = vmul.f32 %v229, %v229
      %v357 = vmul.f32 %v230, %v230
      %v358 = vmul.f32 %v231, %v231
      %v359 = vmul.f32 %v232, %v232
      %v360 = vmul.f32 %v233, %v233
      %v361 = vmul.f32 %v234, %v234
      %v362 = vmul.f32 %v235, %v235
      %v363 = vmul.f32 %v236, %v236
      %v364 = vsel %vm306, %v350, 0.0
      %365 = vadd.xlane.f32.xlu0 %v364
      %v366 = vpop.xlane.xlu0 %365
      %v367 = vsel %vm306, %v351, 0.0
      %368 = vadd.xlane.f32.xlu0 %v367
      %v369 = vpop.xlane.xlu0 %368
      %v370 = vsel %vm306, %v352, 0.0
      %371 = vadd.xlane.f32.xlu0 %v370
      %v372 = vpop.xlane.xlu0 %371
      %v373 = vsel %vm306, %v353, 0.0
      %374 = vadd.xlane.f32.xlu0 %v373
      %v375 = vpop.xlane.xlu0 %374
      %v376 = vsel %vm306, %v354, 0.0
      %377 = vadd.xlane.f32.xlu0 %v376
      %v378 = vpop.xlane.xlu0 %377
      %v379 = vsel %vm306, %v355, 0.0
      %380 = vadd.xlane.f32.xlu0 %v379
      %v381 = vpop.xlane.xlu0 %380
      %v382 = vsel %vm325, %v356, 0.0
      %383 = vadd.xlane.f32.xlu0 %v382
      %v384 = vpop.xlane.xlu0 %383
      %v385 = vsel %vm306, %v357, 0.0
      %386 = vadd.xlane.f32.xlu0 %v385
      %v387 = vpop.xlane.xlu0 %386
      %v388 = vsel %vm306, %v358, 0.0
      %389 = vadd.xlane.f32.xlu0 %v388
      %v390 = vpop.xlane.xlu0 %389
      %v391 = vsel %vm306, %v359, 0.0
      %392 = vadd.xlane.f32.xlu0 %v391
      %v393 = vpop.xlane.xlu0 %392
      %v394 = vsel %vm306, %v360, 0.0
      %395 = vadd.xlane.f32.xlu0 %v394
      %v396 = vpop.xlane.xlu0 %395
      %v397 = vsel %vm306, %v361, 0.0
      %398 = vadd.xlane.f32.xlu0 %v397
      %v399 = vpop.xlane.xlu0 %398
      %v400 = vsel %vm306, %v362, 0.0
      %401 = vadd.xlane.f32.xlu0 %v400
      %v402 = vpop.xlane.xlu0 %401
      %v403 = vsel %vm325, %v363, 0.0
      %404 = vadd.xlane.f32.xlu0 %v403
      %v405 = vpop.xlane.xlu0 %404
      %v406 = vrsqrt.pop %v366
      %v407 = vmul.f32 %v366, %v406
      %vm408 = vcmp.eq.f32.partialorder %v366, inf
      %v409 = vsel %vm408, %v366, %v407
      %vm410 = vcmp.eq.f32.partialorder %v366, 0.0
      %v411 = vand.u32 %v366, 2147483648
      %v412 = vsel %vm410, %v411, %v409
      %v413 = vrsqrt.pop %v369
      %v414 = vmul.f32 %v369, %v413
      %vm415 = vcmp.eq.f32.partialorder %v369, inf
      %v416 = vsel %vm415, %v369, %v414
      %vm417 = vcmp.eq.f32.partialorder %v369, 0.0
      %v418 = vand.u32 %v369, 2147483648
      %v419 = vsel %vm417, %v418, %v416
      %v420 = vrsqrt.pop %v372
      %v421 = vmul.f32 %v372, %v420
      %vm422 = vcmp.eq.f32.partialorder %v372, inf
      %v423 = vsel %vm422, %v372, %v421
      %vm424 = vcmp.eq.f32.partialorder %v372, 0.0
      %v425 = vand.u32 %v372, 2147483648
      %v426 = vsel %vm424, %v425, %v423
      %v427 = vrsqrt.pop %v375
      %v428 = vmul.f32 %v375, %v427
      %vm429 = vcmp.eq.f32.partialorder %v375, inf
      %v430 = vsel %vm429, %v375, %v428
      %vm431 = vcmp.eq.f32.partialorder %v375, 0.0
      %v432 = vand.u32 %v375, 2147483648
      %v433 = vsel %vm431, %v432, %v430
      %v434 = vrsqrt.pop %v378
      %v435 = vmul.f32 %v378, %v434
      %vm436 = vcmp.eq.f32.partialorder %v378, inf
      %v437 = vsel %vm436, %v378, %v435
      %vm438 = vcmp.eq.f32.partialorder %v378, 0.0
      %v439 = vand.u32 %v378, 2147483648
      %v440 = vsel %vm438, %v439, %v437
      %v441 = vrsqrt.pop %v381
      %v442 = vmul.f32 %v381, %v441
      %vm443 = vcmp.eq.f32.partialorder %v381, inf
      %v444 = vsel %vm443, %v381, %v442
      %vm445 = vcmp.eq.f32.partialorder %v381, 0.0
      %v446 = vand.u32 %v381, 2147483648
      %v447 = vsel %vm445, %v446, %v444
      %v448 = vrsqrt.pop %v384
      %v449 = vmul.f32 %v384, %v448
      %vm450 = vcmp.eq.f32.partialorder %v384, inf
      %v451 = vsel %vm450, %v384, %v449
      %vm452 = vcmp.eq.f32.partialorder %v384, 0.0
      %v453 = vand.u32 %v384, 2147483648
      %v454 = vsel %vm452, %v453, %v451
      %v455 = vrsqrt.pop %v387
      %v456 = vmul.f32 %v387, %v455
      %vm457 = vcmp.eq.f32.partialorder %v387, inf
      %v458 = vsel %vm457, %v387, %v456
      %vm459 = vcmp.eq.f32.partialorder %v387, 0.0
      %v460 = vand.u32 %v387, 2147483648
      %v461 = vsel %vm459, %v460, %v458
      %v462 = vrsqrt.pop %v390
      %v463 = vmul.f32 %v390, %v462
      %vm464 = vcmp.eq.f32.partialorder %v390, inf
      %v465 = vsel %vm464, %v390, %v463
      %vm466 = vcmp.eq.f32.partialorder %v390, 0.0
      %v467 = vand.u32 %v390, 2147483648
      %v468 = vsel %vm466, %v467, %v465
      %v469 = vrsqrt.pop %v393
      %v470 = vmul.f32 %v393, %v469
      %vm471 = vcmp.eq.f32.partialorder %v393, inf
      %v472 = vsel %vm471, %v393, %v470
      %vm473 = vcmp.eq.f32.partialorder %v393, 0.0
      %v474 = vand.u32 %v393, 2147483648
      %v475 = vsel %vm473, %v474, %v472
      %v476 = vrsqrt.pop %v396
      %v477 = vmul.f32 %v396, %v476
      %vm478 = vcmp.eq.f32.partialorder %v396, inf
      %v479 = vsel %vm478, %v396, %v477
      %vm480 = vcmp.eq.f32.partialorder %v396, 0.0
      %v481 = vand.u32 %v396, 2147483648
      %v482 = vsel %vm480, %v481, %v479
      %v483 = vrsqrt.pop %v399
      %v484 = vmul.f32 %v399, %v483
      %vm485 = vcmp.eq.f32.partialorder %v399, inf
      %v486 = vsel %vm485, %v399, %v484
      %vm487 = vcmp.eq.f32.partialorder %v399, 0.0
      %v488 = vand.u32 %v399, 2147483648
      %v489 = vsel %vm487, %v488, %v486
      %v490 = vrsqrt.pop %v402
      %v491 = vmul.f32 %v402, %v490
      %vm492 = vcmp.eq.f32.partialorder %v402, inf
      %v493 = vsel %vm492, %v402, %v491
      %vm494 = vcmp.eq.f32.partialorder %v402, 0.0
      %v495 = vand.u32 %v402, 2147483648
      %v496 = vsel %vm494, %v495, %v493
      %v497 = vrsqrt.pop %v405
      %v498 = vmul.f32 %v405, %v497
      %vm499 = vcmp.eq.f32.partialorder %v405, inf
      %v500 = vsel %vm499, %v405, %v498
      %vm501 = vcmp.eq.f32.partialorder %v405, 0.0
      %v502 = vand.u32 %v405, 2147483648
      %v503 = vsel %vm501, %v502, %v500
      %vm504 = vcmask 261121
      %v505 = vsel %vm504, %v350, 0.0
      %506 = vadd.xlane.f32.xlu0 %v505
      %v507 = vpop.xlane.xlu0 %506
      %vm508 = vcmask 256000
      %v509 = vsel %vm508, %v356, 0.0
      %510 = vadd.xlane.f32.xlu0 %v509
      %v511 = vpop.xlane.xlu0 %510
      %v512 = vsel %vm504, %v357, 0.0
      %513 = vadd.xlane.f32.xlu0 %v512
      %v514 = vpop.xlane.xlu0 %513
      %v515 = vsel %vm508, %v363, 0.0
      %516 = vadd.xlane.f32.xlu0 %v515
      %v517 = vpop.xlane.xlu0 %516
      %v518 = vrsqrt.pop %v507
      %v519 = vmul.f32 %v507, %v518
      %vm520 = vcmp.eq.f32.partialorder %v507, inf
      %v521 = vsel %vm520, %v507, %v519
      %vm522 = vcmp.eq.f32.partialorder %v507, 0.0
      %v523 = vand.u32 %v507, 2147483648
      %v524 = vsel %vm522, %v523, %v521
      %v525 = vrsqrt.pop %v511
      %v526 = vmul.f32 %v511, %v525
      %vm527 = vcmp.eq.f32.partialorder %v511, inf
      %v528 = vsel %vm527, %v511, %v526
      %vm529 = vcmp.eq.f32.partialorder %v511, 0.0
      %v530 = vand.u32 %v511, 2147483648
      %v531 = vsel %vm529, %v530, %v528
      %v532 = vrsqrt.pop %v514
      %v533 = vmul.f32 %v514, %v532
      %vm534 = vcmp.eq.f32.partialorder %v514, inf
      %v535 = vsel %vm534, %v514, %v533
      %vm536 = vcmp.eq.f32.partialorder %v514, 0.0
      %v537 = vand.u32 %v514, 2147483648
      %v538 = vsel %vm536, %v537, %v535
      %v539 = vrsqrt.pop %v517
      %v540 = vmul.f32 %v517, %v539
      %vm541 = vcmp.eq.f32.partialorder %v517, inf
      %v542 = vsel %vm541, %v517, %v540
      %vm543 = vcmp.eq.f32.partialorder %v517, 0.0
      %v544 = vand.u32 %v517, 2147483648
      %v545 = vsel %vm543, %v544, %v542
      %v560 = vrot.slane %v524, 1
      %v561 = vrot.slane %v419, 1
      %v562 = vsel %vm251, %v560, %v561
      %v563 = vrot.slane %v426, 1
      %v564 = vsel %vm251, %v561, %v563
      %v565 = vrot.slane %v433, 1
      %v566 = vsel %vm251, %v563, %v565
      %v567 = vrot.slane %v440, 1
      %v568 = vsel %vm251, %v565, %v567
      %v569 = vrot.slane %v447, 1
      %v570 = vsel %vm251, %v567, %v569
      %v571 = vrot.slane %v531, 1
      %v572 = vsel %vm251, %v569, %v571
      %v573 = vrot.slane %v538, 1
      %v574 = vrot.slane %v468, 1
      %v575 = vsel %vm251, %v573, %v574
      %v576 = vrot.slane %v475, 1
      %v577 = vsel %vm251, %v574, %v576
      %v578 = vrot.slane %v482, 1
      %v579 = vsel %vm251, %v576, %v578
      %v580 = vrot.slane %v489, 1
      %v581 = vsel %vm251, %v578, %v580
      %v582 = vrot.slane %v496, 1
      %v583 = vsel %vm251, %v580, %v582
      %v584 = vrot.slane %v545, 1
      %v585 = vsel %vm251, %v582, %v584
      %v600 = vmul.f32 %v412, %v562
      %v601 = vmul.f32 %v419, %v564
      %v602 = vmul.f32 %v426, %v566
      %v603 = vmul.f32 %v433, %v568
      %v604 = vmul.f32 %v440, %v570
      %v605 = vmul.f32 %v447, %v572
      %v606 = vmul.f32 %v454, %v571
      %v607 = vmul.f32 %v461, %v575
      %v608 = vmul.f32 %v468, %v577
      %v609 = vmul.f32 %v475, %v579
      %v610 = vmul.f32 %v482, %v581
      %v611 = vmul.f32 %v489, %v583
      %v612 = vmul.f32 %v496, %v585
      %v613 = vmul.f32 %v503, %v584
      %v614 = vmax.f32 %v600, 1e-08
      %v615 = vmax.f32 %v601, 1e-08
      %v616 = vmax.f32 %v602, 1e-08
      %v617 = vmax.f32 %v603, 1e-08
      %v618 = vmax.f32 %v604, 1e-08
      %v619 = vmax.f32 %v605, 1e-08
      %v620 = vmax.f32 %v606, 1e-08
      %v621 = vmax.f32 %v607, 1e-08
      %v622 = vmax.f32 %v608, 1e-08
      %v623 = vmax.f32 %v609, 1e-08
      %v624 = vmax.f32 %v610, 1e-08
      %v625 = vmax.f32 %v611, 1e-08
      %v626 = vmax.f32 %v612, 1e-08
      %v627 = vmax.f32 %v613, 1e-08
      %v628 = vrcp.pop %v614
      %v629 = vmul.f32 %v309, %v628
      %v630 = vrcp.pop %v615
      %v631 = vmul.f32 %v312, %v630
      %v632 = vrcp.pop %v616
      %v633 = vmul.f32 %v315, %v632
      %v634 = vrcp.pop %v617
      %v635 = vmul.f32 %v318, %v634
      %v636 = vrcp.pop %v618
      %v637 = vmul.f32 %v321, %v636
      %v638 = vrcp.pop %v619
      %v639 = vmul.f32 %v324, %v638
      %v640 = vrcp.pop %v620
      %v641 = vmul.f32 %v328, %v640
      %v642 = vrcp.pop %v621
      %v643 = vmul.f32 %v331, %v642
      %v644 = vrcp.pop %v622
      %v645 = vmul.f32 %v334, %v644
      %v646 = vrcp.pop %v623
      %v647 = vmul.f32 %v337, %v646
      %v648 = vrcp.pop %v624
      %v649 = vmul.f32 %v340, %v648
      %v650 = vrcp.pop %v625
      %v651 = vmul.f32 %v343, %v650
      %v652 = vrcp.pop %v626
      %v653 = vmul.f32 %v346, %v652
      %v654 = vrcp.pop %v627
      %v655 = vmul.f32 %v349, %v654
      %v656 = vld [vmem:[%s1] sm:$0xff]
      %v657 = vld [vmem:[%s1 + $0x8] sm:$0xff]
      %v658 = vld [vmem:[%s1 + $0x10] sm:$0xff]
      %v659 = vld [vmem:[%s1 + $0x18] sm:$0xff]
      %v660 = vld [vmem:[%s1 + $0x20] sm:$0xff]
      %v661 = vld [vmem:[%s1 + $0x28] sm:$0xff]
      %v662 = vld [vmem:[%s1 + $0x30] sm:$0x3]
      %v663 = vld [vmem:[%s2] sm:$0x1]
      %v665 = vlaneseq
      %v666 = vshrl.u32 %v665, 7
      %v667 = vsub.s32 0, %v666
      %v668 = vrot.slane %v663, %v667
      %684 = vset.pattern.permute.xlu0 0
      %685 = vperm.xlu0 %684, %v629
      %v686 = vpop.permute.xlu0 %685
      %687 = vset.pattern.permute.xlu0 0
      %688 = vperm.xlu0 %687, %v631
      %v689 = vpop.permute.xlu0 %688
      %690 = vset.pattern.permute.xlu0 0
      %691 = vperm.xlu0 %690, %v633
      %v692 = vpop.permute.xlu0 %691
      %693 = vset.pattern.permute.xlu0 0
      %694 = vperm.xlu0 %693, %v635
      %v695 = vpop.permute.xlu0 %694
      %696 = vset.pattern.permute.xlu0 0
      %697 = vperm.xlu0 %696, %v637
      %v698 = vpop.permute.xlu0 %697
      %699 = vset.pattern.permute.xlu0 0
      %700 = vperm.xlu0 %699, %v639
      %v701 = vpop.permute.xlu0 %700
      %702 = vset.pattern.permute.xlu0 0
      %703 = vperm.xlu0 %702, %v641
      %v704 = vpop.permute.xlu0 %703
      %705 = vset.pattern.permute.xlu0 0
      %706 = vperm.xlu0 %705, %v643
      %v707 = vpop.permute.xlu0 %706
      %708 = vset.pattern.permute.xlu0 0
      %709 = vperm.xlu0 %708, %v645
      %v710 = vpop.permute.xlu0 %709
      %711 = vset.pattern.permute.xlu0 0
      %712 = vperm.xlu0 %711, %v647
      %v713 = vpop.permute.xlu0 %712
      %714 = vset.pattern.permute.xlu0 0
      %715 = vperm.xlu0 %714, %v649
      %v716 = vpop.permute.xlu0 %715
      %717 = vset.pattern.permute.xlu0 0
      %718 = vperm.xlu0 %717, %v651
      %v719 = vpop.permute.xlu0 %718
      %720 = vset.pattern.permute.xlu0 0
      %721 = vperm.xlu0 %720, %v653
      %v722 = vpop.permute.xlu0 %721
      %723 = vset.pattern.permute.xlu0 0
      %724 = vperm.xlu0 %723, %v655
      %v725 = vpop.permute.xlu0 %724
      %v726 = vlaneseq
      %v727 = vand.u32 %v726, 127
      %v728 = vlaneseq
      %v729 = vshrl.u32 %v728, 7
      %v730 = vsub.s32 %v727, %v729
      %v731 = vrot.slane %v686, %v730
      %v732 = vadd.s32 %v727, 4294967288
      %v733 = vlaneseq
      %v734 = vshrl.u32 %v733, 7
      %v735 = vsub.s32 %v732, %v734
      %v736 = vrot.slane %v689, %v735
      %vm737 = vcmask 130112
      %v738 = vsel %vm737, %v736, %v731
      %v739 = vadd.s32 %v727, 4294967280
      %v740 = vlaneseq
      %v741 = vshrl.u32 %v740, 7
      %v742 = vsub.s32 %v739, %v741
      %v743 = vrot.slane %v692, %v742
      %vm744 = vcmask 195712
      %v745 = vsel %vm744, %v743, %v738
      %v746 = vadd.s32 %v727, 4294967272
      %v747 = vlaneseq
      %v748 = vshrl.u32 %v747, 7
      %v749 = vsub.s32 %v746, %v748
      %v750 = vrot.slane %v695, %v749
      %vm751 = vcmask 261312
      %v752 = vsel %vm751, %v750, %v745
      %v753 = vadd.s32 %v727, 4294967264
      %v754 = vlaneseq
      %v755 = vshrl.u32 %v754, 7
      %v756 = vsub.s32 %v753, %v755
      %v757 = vrot.slane %v698, %v756
      %vm758 = vcmask 326912
      %v759 = vsel %vm758, %v757, %v752
      %v760 = vadd.s32 %v727, 4294967256
      %v761 = vlaneseq
      %v762 = vshrl.u32 %v761, 7
      %v763 = vsub.s32 %v760, %v762
      %v764 = vrot.slane %v701, %v763
      %vm765 = vcmask 392512
      %v766 = vsel %vm765, %v764, %v759
      %v767 = vadd.s32 %v727, 4294967248
      %v768 = vlaneseq
      %v769 = vshrl.u32 %v768, 7
      %v770 = vsub.s32 %v767, %v769
      %v771 = vrot.slane %v704, %v770
      %vm772 = vcmask 458112
      %v773 = vsel %vm772, %v771, %v766
      %v774 = vlaneseq
      %v775 = vshrl.u32 %v774, 7
      %v776 = vsub.s32 %v727, %v775
      %v777 = vrot.slane %v707, %v776
      %v778 = vlaneseq
      %v779 = vshrl.u32 %v778, 7
      %v780 = vsub.s32 %v732, %v779
      %v781 = vrot.slane %v710, %v780
      %v782 = vsel %vm737, %v781, %v777
      %v783 = vlaneseq
      %v784 = vshrl.u32 %v783, 7
      %v785 = vsub.s32 %v739, %v784
      %v786 = vrot.slane %v713, %v785
      %v787 = vsel %vm744, %v786, %v782
      %v788 = vlaneseq
      %v789 = vshrl.u32 %v788, 7
      %v790 = vsub.s32 %v746, %v789
      %v791 = vrot.slane %v716, %v790
      %v792 = vsel %vm751, %v791, %v787
      %v793 = vlaneseq
      %v794 = vshrl.u32 %v793, 7
      %v795 = vsub.s32 %v753, %v794
      %v796 = vrot.slane %v719, %v795
      %v797 = vsel %vm758, %v796, %v792
      %v798 = vlaneseq
      %v799 = vshrl.u32 %v798, 7
      %v800 = vsub.s32 %v760, %v799
      %v801 = vrot.slane %v722, %v800
      %v802 = vsel %vm765, %v801, %v797
      %v803 = vlaneseq
      %v804 = vshrl.u32 %v803, 7
      %v805 = vsub.s32 %v767, %v804
      %v806 = vrot.slane %v725, %v805
      %v807 = vsel %vm772, %v806, %v802
      %vm808 = vcmask 1041409
      %v809 = vsel %vm808, %v807, %v773
      %vm810 = vcmask 408576
      %v811 = vsel %vm810, %v809, 0
      %vm813 = vcmask 1041408
      %v815 = vsel %vm813, %v662, 0
      %817 = vmatprep.subr.mxu0 0.0
      %818 = vmatpush1.msra.mxu0 0.0
      %819 = vmatprep.subr.mxu0 0.0
      %820 = vmatpush1.msra.mxu0 0.0
      %821 = vmatprep.subr.mxu0 0.0
      %822 = vmatpush1.msra.mxu0 0.0
      %823 = vmatprep.subr.mxu0 0.0
      %824 = vmatpush1.msra.mxu0 0.0
      %825 = vmatprep.subr.mxu0 0.0
      %826 = vmatpush1.msra.mxu0 0.0
      %827 = vmatprep.subr.mxu0 0.0
      %828 = vmatpush1.msra.mxu0 0.0
      %829 = vmatprep.subr.mxu0 0.0
      %830 = vmatpush1.msra.mxu0 0.0
      %831 = vmatprep.subr.mxu0 0.0
      %832 = vmatpush1.msra.mxu0 0.0
      %833 = vmatprep.subr.mxu0 0.0
      %834 = vmatpush1.msra.mxu0 0.0
      %835 = vmatprep.subr.mxu0 0.0
      %836 = vmatpush1.msra.mxu0 %v815
      %837 = vmatprep.subr.mxu0 0.0
      %838 = vmatpush1.msra.mxu0 %v661
      %839 = vmatprep.subr.mxu0 0.0
      %840 = vmatpush1.msra.mxu0 %v660
      %841 = vmatprep.subr.mxu0 0.0
      %842 = vmatpush1.msra.mxu0 %v659
      %843 = vmatprep.subr.mxu0 0.0
      %844 = vmatpush1.msra.mxu0 %v658
      %845 = vmatprep.subr.mxu0 0.0
      %846 = vmatpush1.msra.mxu0 %v657
      %847 = vmatprep.subr.mxu0 0.0
      %848 = vmatpush1.msra.mxu0 %v656
      %849 = vmatprep.subr.mxu0 0.0
      %850 = vmatpush2.msra.mxu0 0.0
      %851 = vmatprep.subr.mxu0 0.0
      %852 = vmatpush2.msra.mxu0 0.0
      %853 = vmatprep.subr.mxu0 0.0
      %854 = vmatpush2.msra.mxu0 0.0
      %855 = vmatprep.subr.mxu0 0.0
      %856 = vmatpush2.msra.mxu0 0.0
      %857 = vmatprep.subr.mxu0 0.0
      %858 = vmatpush2.msra.mxu0 0.0
      %859 = vmatprep.subr.mxu0 0.0
      %860 = vmatpush2.msra.mxu0 0.0
      %861 = vmatprep.subr.mxu0 0.0
      %862 = vmatpush2.msra.mxu0 0.0
      %863 = vmatprep.subr.mxu0 0.0
      %864 = vmatpush2.msra.mxu0 0.0
      %865 = vmatprep.subr.mxu0 0.0
      %866 = vmatpush2.msra.mxu0 0.0
      %867 = vmatprep.subr.mxu0 0.0
      %868 = vmatpush2.msra.mxu0 0.0
      %869 = vmatprep.subr.mxu0 0.0
      %870 = vmatpush2.msra.mxu0 0.0
      %871 = vmatprep.subr.mxu0 0.0
      %872 = vmatpush2.msra.mxu0 0.0
      %873 = vmatprep.subr.mxu0 0.0
      %874 = vmatpush2.msra.mxu0 0.0
      %875 = vmatprep.subr.mxu0 0.0
      %876 = vmatpush2.msra.mxu0 0.0
      %877 = vmatprep.subr.mxu0 0.0
      %878 = vmatpush2.msra.mxu0 0.0
      %879 = vmatprep.subr.mxu0 0.0
      %880 = vmatpush2.msra.mxu0 0.0
      %881 = vmatprep.mubr.f32.mxu0 0.0
      %882 = vmatmul.mubr.f32.gmra.mxu0 %v811
      %v883 = vpop.f32.mrf.mxu0
      %v884 = vadd.f32 %v668, %v883
      %v885 = vpop.f32.mrf.mxu0
      %886 = vdwg.mxu0
      %v887 = vmax.f32 %v884, 0.0
      %v888 = vld [vmem:[%s3] sm:$0xff]
      %v889 = vld [vmem:[%s3 + $0x8] sm:$0xff]
      %v890 = vld [vmem:[%s3 + $0x10] sm:$0xff]
      %v891 = vld [vmem:[%s3 + $0x18] sm:$0xff]
      %v892 = vld [vmem:[%s4] sm:$0x1]
      %v894 = vlaneseq
      %v895 = vshrl.u32 %v894, 7
      %v896 = vsub.s32 0, %v895
      %v897 = vrot.slane %v892, %v896
      %v900 = vsel %vm306, %v887, 0
      %902 = vmatprep.subr.mxu0 0.0
      %903 = vmatpush1.msra.mxu0 0.0
      %904 = vmatprep.subr.mxu0 0.0
      %905 = vmatpush1.msra.mxu0 0.0
      %906 = vmatprep.subr.mxu0 0.0
      %907 = vmatpush1.msra.mxu0 0.0
      %908 = vmatprep.subr.mxu0 0.0
      %909 = vmatpush1.msra.mxu0 0.0
      %910 = vmatprep.subr.mxu0 0.0
      %911 = vmatpush1.msra.mxu0 0.0
      %912 = vmatprep.subr.mxu0 0.0
      %913 = vmatpush1.msra.mxu0 0.0
      %914 = vmatprep.subr.mxu0 0.0
      %915 = vmatpush1.msra.mxu0 0.0
      %916 = vmatprep.subr.mxu0 0.0
      %917 = vmatpush1.msra.mxu0 0.0
      %918 = vmatprep.subr.mxu0 0.0
      %919 = vmatpush1.msra.mxu0 0.0
      %920 = vmatprep.subr.mxu0 0.0
      %921 = vmatpush1.msra.mxu0 0.0
      %922 = vmatprep.subr.mxu0 0.0
      %923 = vmatpush1.msra.mxu0 0.0
      %924 = vmatprep.subr.mxu0 0.0
      %925 = vmatpush1.msra.mxu0 0.0
      %926 = vmatprep.subr.mxu0 0.0
      %927 = vmatpush1.msra.mxu0 %v891
      %928 = vmatprep.subr.mxu0 0.0
      %929 = vmatpush1.msra.mxu0 %v890
      %930 = vmatprep.subr.mxu0 0.0
      %931 = vmatpush1.msra.mxu0 %v889
      %932 = vmatprep.subr.mxu0 0.0
      %933 = vmatpush1.msra.mxu0 %v888
      %934 = vmatprep.subr.mxu0 0.0
      %935 = vmatpush2.msra.mxu0 0.0
      %936 = vmatprep.subr.mxu0 0.0
      %937 = vmatpush2.msra.mxu0 0.0
      %938 = vmatprep.subr.mxu0 0.0
      %939 = vmatpush2.msra.mxu0 0.0
      %940 = vmatprep.subr.mxu0 0.0
      %941 = vmatpush2.msra.mxu0 0.0
      %942 = vmatprep.subr.mxu0 0.0
      %943 = vmatpush2.msra.mxu0 0.0
      %944 = vmatprep.subr.mxu0 0.0
      %945 = vmatpush2.msra.mxu0 0.0
      %946 = vmatprep.subr.mxu0 0.0
      %947 = vmatpush2.msra.mxu0 0.0
      %948 = vmatprep.subr.mxu0 0.0
      %949 = vmatpush2.msra.mxu0 0.0
      %950 = vmatprep.subr.mxu0 0.0
      %951 = vmatpush2.msra.mxu0 0.0
      %952 = vmatprep.subr.mxu0 0.0
      %953 = vmatpush2.msra.mxu0 0.0
      %954 = vmatprep.subr.mxu0 0.0
      %955 = vmatpush2.msra.mxu0 0.0
      %956 = vmatprep.subr.mxu0 0.0
      %957 = vmatpush2.msra.mxu0 0.0
      %958 = vmatprep.subr.mxu0 0.0
      %959 = vmatpush2.msra.mxu0 0.0
      %960 = vmatprep.subr.mxu0 0.0
      %961 = vmatpush2.msra.mxu0 0.0
      %962 = vmatprep.subr.mxu0 0.0
      %963 = vmatpush2.msra.mxu0 0.0
      %964 = vmatprep.subr.mxu0 0.0
      %965 = vmatpush2.msra.mxu0 0.0
      %966 = vmatprep.mubr.f32.mxu0 0.0
      %967 = vmatmul.mubr.f32.gmra.mxu0 %v900
      %v968 = vpop.f32.mrf.mxu0
      %v969 = vadd.f32 %v897, %v968
      %v970 = vpop.f32.mrf.mxu0
      %971 = vdwg.mxu0
      %vm972 = vcmask 17408
      %v973 = vsel %vm972, %v969, -inf
      %v974 = vrot.slane %v973, 4
      %v975 = vmax.f32 %v973, %v974
      %v976 = vrot.slane %v975, 2
      %v977 = vmax.f32 %v975, %v976
      %v978 = vrot.slane %v977, 1
      %v979 = vmax.f32 %v977, %v978
      %v980 = vsub.f32 %v969, %v979
      %v981 = vmul.f32 %v980, 1.442695
      %v982 = vpow.pop %v981
      %v983 = vsel %vm972, %v982, 0.0
      %v984 = vrot.slane %v983, 4
      %v985 = vadd.f32 %v983, %v984
      %v986 = vrot.slane %v985, 2
      %v987 = vadd.f32 %v985, %v986
      %v988 = vrot.slane %v987, 1
      %v989 = vadd.f32 %v987, %v988
      %v990 = vrcp.pop %v989
      %v991 = vmul.f32 %v982, %v990
      %992 = vst.msk [vmem:[%s222] sm:$0x3] %vm972, %v991
      %p993 = scmp.lt.s32.totalorder %s16, 1
      %s994 = scalar_select %p993, %s16, 1
      %s995 = smul.addr %s994, 2
      %s996 = scalar_lea.vmem %s5, %s995
      // Predicated region
      $region41: #{lstm_semrel_forward.5} parent=39 // pred_check
        %p997 = pneg %p144
      $region42: #{lstm_semrel_forward.5} parent=39 // pred_check_branch
        %999 = sbr.rel (%p997) target = $region44
      $region43: #{lstm_semrel_forward.5} parent=39 // pred_region
        _
      $region44: #{lstm_semrel_forward.5} parent=39 // pred_fallthru
        _
    $region40: #{lstm_semrel_forward.5} parent=5 // pred_fallthru
      _
    %p1000 = scmp.le.s32.totalorder 2, %s11
    // Predicated region
    $region45: #{lstm_semrel_forward.5} parent=5 // pred_check
      %p1001 = pneg %p1000
    $region46: #{lstm_semrel_forward.5} parent=5 // pred_check_branch
      %1003 = sbr.rel (%p1001) target = $region48
    $region47: #{lstm_semrel_forward.5} parent=5 // pred_region
      %s1004 = ssub.s32 %s11, 2
      // Predicated region
      $region49: #{lstm_semrel_forward.5} parent=47 // pred_check
        %p1005 = pneg %p150
      $region50: #{lstm_semrel_forward.5} parent=47 // pred_check_branch
        %1007 = sbr.rel (%p1005) target = $region52
      $region51: #{lstm_semrel_forward.5} parent=47 // pred_region
        %p1008 = scmp.lt.s32.totalorder %s17, 1
        %s1009 = scalar_select %p1008, %s17, 1
        %s1010 = smul.addr %s1009, 2
        %s1011 = scalar_lea.vmem %s5, %s1010
      $region52: #{lstm_semrel_forward.5} parent=47 // pred_fallthru
        _
    $region48: #{lstm_semrel_forward.5} parent=5 // pred_fallthru
      _
  $region6: #{lstm_semrel_forward.5} parent=0 // loop_footer
    %s15 = sadd.s32 1, %s11
  $region7: #{lstm_semrel_forward.5} parent=0 // loop_footer_branch
    %10 = sbr.rel target = $region3
  $region8: #{lstm_semrel_forward.5} parent=0 // loop_exit
    _

</llo_original>
